<compile_context>
chip_gen: v5e
topology: v5e:2x2
jax: 0.10.0
libtpu: 0.0.40
codegen_flags: <defaults>
</compile_context>

<pallas_src>
import jax
import jax.numpy as jnp
import numpy as np
from jax.experimental import pallas as pl
from jax.experimental.pallas import tpu as pltpu

# ----------------------------- small synthetic ELECTRA config ---------------
VOCAB = 100
HIDDEN = 32
N_LAYERS = 2
N_HEADS = 4
HEAD_DIM = HIDDEN // N_HEADS
INTER = 64
MAX_POS = 16
TYPE_VOCAB = 2
NUM_LABELS = 2
NUM_LABELS_PAD = 128          # lane-dense output store
LN_EPS = 1e-12

BATCH = 2
SEQ = 8


# ----------------------------- kernel helpers --------------------------------
def _layernorm(x, g, b):
    mu = jnp.mean(x, axis=-1, keepdims=True)
    var = jnp.mean((x - mu) ** 2, axis=-1, keepdims=True)
    return (x - mu) * jax.lax.rsqrt(var + LN_EPS) * g + b


def _gelu(x):
    # TODO(synk): HF ELECTRA 'gelu' is erf-based; tanh approximation used here.
    return jax.nn.gelu(x, approximate=True)


# ----------------------------- fused per-example encoder kernel --------------
def electra_kernel(
    ids_ref, tt_ref, am_ref,          # SMEM (B, S) int32 (scalar prefetch)
    wemb_ref,                         # (VOCAB, H)    word embedding table
    pemb_ref,                         # (S, H)        position embeddings (pre-sliced)
    temb_ref,                         # (TYPE_VOCAB, H)
    embg_ref, embb_ref,               # (1, H)        embedding LayerNorm
    wqkv_ref, bqkv_ref,               # (L, H, 3H), (L, 1, 3H)  fused QKV (scale folded)
    wo_ref, bo_ref,                   # (L, H, H), (L, 1, H)
    ln1g_ref, ln1b_ref,               # (L, 1, H)
    w1_ref, b1_ref,                   # (L, H, I), (L, 1, I)
    w2_ref, b2_ref,                   # (L, I, H), (L, 1, H)
    ln2g_ref, ln2b_ref,               # (L, 1, H)
    clsw_ref, clsb_ref,               # (H, 128), (1, 128)  padded classifier
    out_ref,                          # (1, 1, 128) logits block for this example
):
    b = pl.program_id(0)

    # ---- per-example ids / token types / key mask from SMEM scalars ----------
    row = jax.lax.broadcasted_iota(jnp.int32, (SEQ, 1), 0)
    col = jax.lax.broadcasted_iota(jnp.int32, (1, SEQ), 1)
    ids_col = jnp.zeros((SEQ, 1), jnp.int32)
    tt_col = jnp.zeros((SEQ, 1), jnp.int32)
    keep_k = jnp.zeros((1, SEQ), jnp.float32)
    for s in range(SEQ):
        ids_col = ids_col + jnp.where(row == s, ids_ref[b, s], 0)
        tt_col = tt_col + jnp.where(row == s, tt_ref[b, s], 0)
        keep_k = keep_k + jnp.where(col == s, am_ref[b, s].astype(jnp.float32), 0.0)

    # ---- embeddings (word gather as one-hot MXU matmul, fused in-kernel) -----
    voc = jax.lax.broadcasted_iota(jnp.int32, (SEQ, VOCAB), 1)
    onehot = (ids_col == voc).astype(jnp.float32)                       # (S, VOCAB)
    x = jnp.dot(onehot, wemb_ref[...], preferred_element_type=jnp.float32)  # (S, H)
    x = x + pemb_ref[...]
    # TYPE_VOCAB == 2: select between the two type-embedding rows.
    x = x + jnp.where(tt_col == 0, temb_ref[0:1, :], temb_ref[1:2, :])
    x = _layernorm(x, embg_ref[...], embb_ref[...])

    # additive key-padding bias, hoisted out of the layer loop
    bias = (1.0 - keep_k) * -1e9                                        # (1, S)

    # ---- transformer layers ---------------------------------------------------
    for l in range(N_LAYERS):
        # fused QKV projection: one (S,H)x(H,3H) matmul (scale folded into Wq/bq)
        qkv = jnp.dot(x, wqkv_ref[l],
                      preferred_element_type=jnp.float32) + bqkv_ref[l]  # (S, 3H)

        ctx_heads = []
        for h in range(N_HEADS):
            q_h = qkv[:, h * HEAD_DIM:(h + 1) * HEAD_DIM]
            k_h = qkv[:, HIDDEN + h * HEAD_DIM: HIDDEN + (h + 1) * HEAD_DIM]
            v_h = qkv[:, 2 * HIDDEN + h * HEAD_DIM: 2 * HIDDEN + (h + 1) * HEAD_DIM]
            s_h = jnp.einsum('qd,kd->qk', q_h, k_h,
                             preferred_element_type=jnp.float32) + bias  # (S, S)
            s_h = s_h - jnp.max(s_h, axis=-1, keepdims=True)
            e = jnp.exp(s_h)
            p = e * pl.reciprocal(jnp.sum(e, axis=-1, keepdims=True), approx=True)
            ctx_heads.append(jnp.dot(p, v_h, preferred_element_type=jnp.float32))
        ctx = jnp.concatenate(ctx_heads, axis=-1)                        # (S, H)

        # single full-width output projection (joint contraction over heads*dh)
        attn_out = jnp.dot(ctx, wo_ref[l],
                           preferred_element_type=jnp.float32) + bo_ref[l]
        x = _layernorm(x + attn_out, ln1g_ref[l], ln1b_ref[l])

        # feed forward
        h1 = _gelu(jnp.dot(x, w1_ref[l],
                           preferred_element_type=jnp.float32) + b1_ref[l])
        ffn = jnp.dot(h1, w2_ref[l],
                      preferred_element_type=jnp.float32) + b2_ref[l]
        x = _layernorm(x + ffn, ln2g_ref[l], ln2b_ref[l])

    # ---- [CLS] pooling + classifier (dropout p=0.3 identity at inference) ----
    pooled = x[0:1, :]                                                   # (1, H)
    logits = jnp.dot(pooled, clsw_ref[...],
                     preferred_element_type=jnp.float32) + clsb_ref[...]  # (1, 128)
    out_ref[...] = logits[None].astype(out_ref.dtype)                     # (1, 1, 128)


# ----------------------------- one-time parameter repack ----------------------
def pack_params(p):
    scale = 1.0 / float(np.sqrt(HEAD_DIM))
    packed = dict(p)
    packed["wqkv"] = jnp.concatenate([p["wq"] * scale, p["wk"], p["wv"]], axis=-1)
    packed["bqkv"] = jnp.concatenate([p["bq"] * scale, p["bk"], p["bv"]], axis=-1)
    packed["pos_emb_s"] = p["pos_emb"][:SEQ]
    clsw = jnp.zeros((HIDDEN, NUM_LABELS_PAD), jnp.float32)
    packed["cls_w_pad"] = clsw.at[:, :NUM_LABELS].set(p["cls_w"])
    clsb = jnp.zeros((1, NUM_LABELS_PAD), jnp.float32)
    packed["cls_b_pad"] = clsb.at[:, :NUM_LABELS].set(p["cls_b"])
    return packed


# ----------------------------- model forward ----------------------------------
def custom_electra_forward(packed, input_ids, attention_mask=None,
                           token_type_ids=None):
    B, S = input_ids.shape
    assert B == BATCH and S == SEQ
    if attention_mask is None:
        attention_mask = jnp.ones((B, S), dtype=jnp.int32)
    if token_type_ids is None:
        token_type_ids = jnp.zeros((B, S), dtype=jnp.int32)

    weights = (
        packed["word_emb"], packed["pos_emb_s"], packed["type_emb"],
        packed["emb_ln_g"], packed["emb_ln_b"],
        packed["wqkv"], packed["bqkv"], packed["wo"], packed["bo"],
        packed["ln1_g"], packed["ln1_b"],
        packed["w1"], packed["b1"], packed["w2"], packed["b2"],
        packed["ln2_g"], packed["ln2_b"],
        packed["cls_w_pad"], packed["cls_b_pad"],
    )

    # every weight is VMEM-resident as a single full block at every grid step
    def whole(arr):
        nd = arr.ndim
        return pl.BlockSpec(arr.shape, lambda b, *_prefetch, _nd=nd: (0,) * _nd)

    grid_spec = pltpu.PrefetchScalarGridSpec(
        num_scalar_prefetch=3,                # input_ids, token_type_ids, attention_mask
        grid=(BATCH,),
        in_specs=[whole(w) for w in weights],
        out_specs=pl.BlockSpec((1, 1, NUM_LABELS_PAD),
                               lambda b, ids, tts, am: (b, 0, 0)),
    )

    out = pl.pallas_call(
        electra_kernel,
        grid_spec=grid_spec,
        out_shape=jax.ShapeDtypeStruct((BATCH, 1, NUM_LABELS_PAD), jnp.float32),
        compiler_params=pltpu.CompilerParams(
            dimension_semantics=("parallel",)),
    )(input_ids.astype(jnp.int32), token_type_ids.astype(jnp.int32),
      attention_mask.astype(jnp.int32), *weights)

    return out[:, 0, :NUM_LABELS]            # (B, NUM_LABELS)


# ----------------------------- parameter init (deterministic) ----------------
def init_params(key):
    def nrm(key, shape, scale=0.02):
        return scale * jax.random.normal(key, shape, dtype=jnp.float32)

    keys = jax.random.split(key, 16)
    p = {}
    p["word_emb"] = nrm(keys[0], (VOCAB, HIDDEN))
    p["pos_emb"] = nrm(keys[1], (MAX_POS, HIDDEN))
    p["type_emb"] = nrm(keys[2], (TYPE_VOCAB, HIDDEN))
    p["emb_ln_g"] = jnp.ones((1, HIDDEN), jnp.float32)
    p["emb_ln_b"] = jnp.zeros((1, HIDDEN), jnp.float32)

    L = N_LAYERS
    p["wq"] = nrm(keys[3], (L, HIDDEN, HIDDEN))
    p["wk"] = nrm(keys[4], (L, HIDDEN, HIDDEN))
    p["wv"] = nrm(keys[5], (L, HIDDEN, HIDDEN))
    p["wo"] = nrm(keys[6], (L, HIDDEN, HIDDEN))
    p["bq"] = jnp.zeros((L, 1, HIDDEN), jnp.float32)
    p["bk"] = jnp.zeros((L, 1, HIDDEN), jnp.float32)
    p["bv"] = jnp.zeros((L, 1, HIDDEN), jnp.float32)
    p["bo"] = jnp.zeros((L, 1, HIDDEN), jnp.float32)
    p["ln1_g"] = jnp.ones((L, 1, HIDDEN), jnp.float32)
    p["ln1_b"] = jnp.zeros((L, 1, HIDDEN), jnp.float32)
    p["w1"] = nrm(keys[7], (L, HIDDEN, INTER))
    p["b1"] = jnp.zeros((L, 1, INTER), jnp.float32)
    p["w2"] = nrm(keys[8], (L, INTER, HIDDEN))
    p["b2"] = jnp.zeros((L, 1, HIDDEN), jnp.float32)
    p["ln2_g"] = jnp.ones((L, 1, HIDDEN), jnp.float32)
    p["ln2_b"] = jnp.zeros((L, 1, HIDDEN), jnp.float32)

    p["cls_w"] = nrm(keys[9], (HIDDEN, NUM_LABELS))
    p["cls_b"] = jnp.zeros((1, NUM_LABELS), jnp.float32)
    return p


# ----------------------------- pure-JAX reference -----------------------------
def reference_forward(params, input_ids, attention_mask, token_type_ids):
    B, S = input_ids.shape
    x = (params["word_emb"][input_ids]
         + params["pos_emb"][:S][None, :, :]
         + params["type_emb"][token_type_ids])
    add_mask = (1.0 - attention_mask.astype(jnp.float32))[:, None, None, :] * -1e9

    def ln(x, g, b):
        mu = jnp.mean(x, -1, keepdims=True)
        var = jnp.mean((x - mu) ** 2, -1, keepdims=True)
        return (x - mu) * jax.lax.rsqrt(var + LN_EPS) * g + b

    x = ln(x, params["emb_ln_g"][0], params["emb_ln_b"][0])
    scale = 1.0 / float(np.sqrt(HEAD_DIM))
    for l in range(N_LAYERS):
        q = x @ params["wq"][l] + params["bq"][l]
        k = x @ params["wk"][l] + params["bk"][l]
        v = x @ params["wv"][l] + params["bv"][l]
        qh = q.reshape(B, S, N_HEADS, HEAD_DIM).transpose(0, 2, 1, 3)
        kh = k.reshape(B, S, N_HEADS, HEAD_DIM).transpose(0, 2, 1, 3)
        vh = v.reshape(B, S, N_HEADS, HEAD_DIM).transpose(0, 2, 1, 3)
        s = jnp.einsum("bhqd,bhkd->bhqk", qh, kh) * scale + add_mask
        p = jax.nn.softmax(s, axis=-1)
        ctx = jnp.einsum("bhqk,bhkd->bhqd", p, vh)
        ctx = ctx.transpose(0, 2, 1, 3).reshape(B, S, HIDDEN)
        attn_out = ctx @ params["wo"][l] + params["bo"][l]
        x = ln(x + attn_out, params["ln1_g"][l], params["ln1_b"][l])
        h1 = jax.nn.gelu(x @ params["w1"][l] + params["b1"][l], approximate=True)
        ffn = h1 @ params["w2"][l] + params["b2"][l]
        x = ln(x + ffn, params["ln2_g"][l], params["ln2_b"][l])
    pooled = x[:, 0, :]
    return pooled @ params["cls_w"] + params["cls_b"]


# ----------------------------- main -------------------------------------------
if __name__ == "__main__":
    key = jax.random.PRNGKey(0)
    pkey, ikey = jax.random.split(key)
    params = init_params(pkey)
    packed = pack_params(params)          # one-time weight repack (QKV fuse, pad, fold scale)

    input_ids = jax.random.randint(ikey, (BATCH, SEQ), 0, VOCAB, dtype=jnp.int32)
    attention_mask = jnp.ones((BATCH, SEQ), dtype=jnp.int32)
    token_type_ids = jnp.zeros((BATCH, SEQ), dtype=jnp.int32)

    logits = custom_electra_forward(packed, input_ids, attention_mask,
                                    token_type_ids)
    logits = jax.block_until_ready(logits)

    ref = reference_forward(params, input_ids, attention_mask, token_type_ids)
    np.testing.assert_allclose(np.asarray(logits), np.asarray(ref),
                               rtol=1e-2, atol=1e-2)

    assert logits.shape == (BATCH, NUM_LABELS)
    print("KERNEL_OK")
</pallas_src>

<mosaic_0001>
module attributes {stable_mosaic.version = 11 : i64} {
  func.func @electra_kernel(%arg0: i32, %arg1: memref<2x8xi32, #tpu.memory_space<smem>>, %arg2: memref<2x8xi32, #tpu.memory_space<smem>>, %arg3: memref<2x8xi32, #tpu.memory_space<smem>>, %arg4: memref<100x32xf32, #tpu.memory_space<vmem>>, %arg5: memref<8x32xf32, #tpu.memory_space<vmem>>, %arg6: memref<2x32xf32, #tpu.memory_space<vmem>>, %arg7: memref<1x32xf32, #tpu.memory_space<vmem>>, %arg8: memref<1x32xf32, #tpu.memory_space<vmem>>, %arg9: memref<2x32x96xf32, #tpu.memory_space<vmem>>, %arg10: memref<2x1x96xf32, #tpu.memory_space<vmem>>, %arg11: memref<2x32x32xf32, #tpu.memory_space<vmem>>, %arg12: memref<2x1x32xf32, #tpu.memory_space<vmem>>, %arg13: memref<2x1x32xf32, #tpu.memory_space<vmem>>, %arg14: memref<2x1x32xf32, #tpu.memory_space<vmem>>, %arg15: memref<2x32x64xf32, #tpu.memory_space<vmem>>, %arg16: memref<2x1x64xf32, #tpu.memory_space<vmem>>, %arg17: memref<2x64x32xf32, #tpu.memory_space<vmem>>, %arg18: memref<2x1x32xf32, #tpu.memory_space<vmem>>, %arg19: memref<2x1x32xf32, #tpu.memory_space<vmem>>, %arg20: memref<2x1x32xf32, #tpu.memory_space<vmem>>, %arg21: memref<32x128xf32, #tpu.memory_space<vmem>>, %arg22: memref<1x128xf32, #tpu.memory_space<vmem>>, %arg23: memref<1x1x128xf32, #tpu.memory_space<vmem>>) attributes {dimension_semantics = [#tpu.dimension_semantics<parallel>], iteration_bounds = array<i64: 2>, scalar_prefetch = 3 : i64, scratch_operands = 0 : i64, tpu.core_type = #tpu.core_type<tc>, window_params = [{pipeline_mode = #tpu.pipeline_mode<synchronous>, transform_indices = @transform_0, window_bounds = array<i64: 100, 32>}, {pipeline_mode = #tpu.pipeline_mode<synchronous>, transform_indices = @transform_1, window_bounds = array<i64: 8, 32>}, {pipeline_mode = #tpu.pipeline_mode<synchronous>, transform_indices = @transform_2, window_bounds = array<i64: 2, 32>}, {pipeline_mode = #tpu.pipeline_mode<synchronous>, transform_indices = @transform_3, window_bounds = array<i64: 1, 32>}, {pipeline_mode = #tpu.pipeline_mode<synchronous>, transform_indices = @transform_4, window_bounds = array<i64: 1, 32>}, {pipeline_mode = #tpu.pipeline_mode<synchronous>, transform_indices = @transform_5, window_bounds = array<i64: 2, 32, 96>}, {pipeline_mode = #tpu.pipeline_mode<synchronous>, transform_indices = @transform_6, window_bounds = array<i64: 2, 1, 96>}, {pipeline_mode = #tpu.pipeline_mode<synchronous>, transform_indices = @transform_7, window_bounds = array<i64: 2, 32, 32>}, {pipeline_mode = #tpu.pipeline_mode<synchronous>, transform_indices = @transform_8, window_bounds = array<i64: 2, 1, 32>}, {pipeline_mode = #tpu.pipeline_mode<synchronous>, transform_indices = @transform_9, window_bounds = array<i64: 2, 1, 32>}, {pipeline_mode = #tpu.pipeline_mode<synchronous>, transform_indices = @transform_10, window_bounds = array<i64: 2, 1, 32>}, {pipeline_mode = #tpu.pipeline_mode<synchronous>, transform_indices = @transform_11, window_bounds = array<i64: 2, 32, 64>}, {pipeline_mode = #tpu.pipeline_mode<synchronous>, transform_indices = @transform_12, window_bounds = array<i64: 2, 1, 64>}, {pipeline_mode = #tpu.pipeline_mode<synchronous>, transform_indices = @transform_13, window_bounds = array<i64: 2, 64, 32>}, {pipeline_mode = #tpu.pipeline_mode<synchronous>, transform_indices = @transform_14, window_bounds = array<i64: 2, 1, 32>}, {pipeline_mode = #tpu.pipeline_mode<synchronous>, transform_indices = @transform_15, window_bounds = array<i64: 2, 1, 32>}, {pipeline_mode = #tpu.pipeline_mode<synchronous>, transform_indices = @transform_16, window_bounds = array<i64: 2, 1, 32>}, {pipeline_mode = #tpu.pipeline_mode<synchronous>, transform_indices = @transform_17, window_bounds = array<i64: 32, 128>}, {pipeline_mode = #tpu.pipeline_mode<synchronous>, transform_indices = @transform_18, window_bounds = array<i64: 1, 128>}, {transform_indices = @transform_19, window_bounds = array<i64: 1, 1, 128>}]} {
    %0 = tpu.iota {dimensions = array<i32: 0>} : vector<8x1xi32>
    %1 = tpu.iota {dimensions = array<i32: 1>} : vector<1x8xi32>
    %c0_i32 = arith.constant 0 : i32
    %2 = vector.broadcast %c0_i32 : i32 to vector<8x1xi32>
    %c0_i32_0 = arith.constant 0 : i32
    %3 = vector.broadcast %c0_i32_0 : i32 to vector<8x1xi32>
    %cst = arith.constant 0.000000e+00 : f32
    %4 = vector.broadcast %cst : f32 to vector<1x8xf32>
    %c0_i32_1 = arith.constant 0 : i32
    %5 = vector.broadcast %c0_i32_1 : i32 to vector<8x1xi32>
    %6 = arith.cmpi eq, %0, %5 : vector<8x1xi32>
    %7 = arith.index_cast %arg0 : i32 to index
    %c0 = arith.constant 0 : index
    %8 = memref.load %arg1[%7, %c0] : memref<2x8xi32, #tpu.memory_space<smem>>
    %c0_i32_2 = arith.constant 0 : i32
    %9 = vector.broadcast %8 : i32 to vector<8x1xi32>
    %10 = vector.broadcast %c0_i32_2 : i32 to vector<8x1xi32>
    %11 = arith.select %6, %9, %10 : vector<8x1xi1>, vector<8x1xi32>
    %12 = arith.addi %2, %11 : vector<8x1xi32>
    %c0_i32_3 = arith.constant 0 : i32
    %13 = vector.broadcast %c0_i32_3 : i32 to vector<8x1xi32>
    %14 = arith.cmpi eq, %0, %13 : vector<8x1xi32>
    %15 = arith.index_cast %arg0 : i32 to index
    %c0_4 = arith.constant 0 : index
    %16 = memref.load %arg2[%15, %c0_4] : memref<2x8xi32, #tpu.memory_space<smem>>
    %c0_i32_5 = arith.constant 0 : i32
    %17 = vector.broadcast %16 : i32 to vector<8x1xi32>
    %18 = vector.broadcast %c0_i32_5 : i32 to vector<8x1xi32>
    %19 = arith.select %14, %17, %18 : vector<8x1xi1>, vector<8x1xi32>
    %20 = arith.addi %3, %19 : vector<8x1xi32>
    %c0_i32_6 = arith.constant 0 : i32
    %21 = vector.broadcast %c0_i32_6 : i32 to vector<1x8xi32>
    %22 = arith.cmpi eq, %1, %21 : vector<1x8xi32>
    %23 = arith.index_cast %arg0 : i32 to index
    %c0_7 = arith.constant 0 : index
    %24 = memref.load %arg3[%23, %c0_7] : memref<2x8xi32, #tpu.memory_space<smem>>
    %25 = arith.sitofp %24 : i32 to f32
    %cst_8 = arith.constant 0.000000e+00 : f32
    %26 = vector.broadcast %25 : f32 to vector<1x8xf32>
    %27 = vector.broadcast %cst_8 : f32 to vector<1x8xf32>
    %28 = arith.select %22, %26, %27 : vector<1x8xi1>, vector<1x8xf32>
    %29 = arith.addf %4, %28 : vector<1x8xf32>
    %c1_i32 = arith.constant 1 : i32
    %30 = vector.broadcast %c1_i32 : i32 to vector<8x1xi32>
    %31 = arith.cmpi eq, %0, %30 : vector<8x1xi32>
    %32 = arith.index_cast %arg0 : i32 to index
    %c1 = arith.constant 1 : index
    %33 = memref.load %arg1[%32, %c1] : memref<2x8xi32, #tpu.memory_space<smem>>
    %c0_i32_9 = arith.constant 0 : i32
    %34 = vector.broadcast %33 : i32 to vector<8x1xi32>
    %35 = vector.broadcast %c0_i32_9 : i32 to vector<8x1xi32>
    %36 = arith.select %31, %34, %35 : vector<8x1xi1>, vector<8x1xi32>
    %37 = arith.addi %12, %36 : vector<8x1xi32>
    %c1_i32_10 = arith.constant 1 : i32
    %38 = vector.broadcast %c1_i32_10 : i32 to vector<8x1xi32>
    %39 = arith.cmpi eq, %0, %38 : vector<8x1xi32>
    %40 = arith.index_cast %arg0 : i32 to index
    %c1_11 = arith.constant 1 : index
    %41 = memref.load %arg2[%40, %c1_11] : memref<2x8xi32, #tpu.memory_space<smem>>
    %c0_i32_12 = arith.constant 0 : i32
    %42 = vector.broadcast %41 : i32 to vector<8x1xi32>
    %43 = vector.broadcast %c0_i32_12 : i32 to vector<8x1xi32>
    %44 = arith.select %39, %42, %43 : vector<8x1xi1>, vector<8x1xi32>
    %45 = arith.addi %20, %44 : vector<8x1xi32>
    %c1_i32_13 = arith.constant 1 : i32
    %46 = vector.broadcast %c1_i32_13 : i32 to vector<1x8xi32>
    %47 = arith.cmpi eq, %1, %46 : vector<1x8xi32>
    %48 = arith.index_cast %arg0 : i32 to index
    %c1_14 = arith.constant 1 : index
    %49 = memref.load %arg3[%48, %c1_14] : memref<2x8xi32, #tpu.memory_space<smem>>
    %50 = arith.sitofp %49 : i32 to f32
    %cst_15 = arith.constant 0.000000e+00 : f32
    %51 = vector.broadcast %50 : f32 to vector<1x8xf32>
    %52 = vector.broadcast %cst_15 : f32 to vector<1x8xf32>
    %53 = arith.select %47, %51, %52 : vector<1x8xi1>, vector<1x8xf32>
    %54 = arith.addf %29, %53 : vector<1x8xf32>
    %c2_i32 = arith.constant 2 : i32
    %55 = vector.broadcast %c2_i32 : i32 to vector<8x1xi32>
    %56 = arith.cmpi eq, %0, %55 : vector<8x1xi32>
    %57 = arith.index_cast %arg0 : i32 to index
    %c2 = arith.constant 2 : index
    %58 = memref.load %arg1[%57, %c2] : memref<2x8xi32, #tpu.memory_space<smem>>
    %c0_i32_16 = arith.constant 0 : i32
    %59 = vector.broadcast %58 : i32 to vector<8x1xi32>
    %60 = vector.broadcast %c0_i32_16 : i32 to vector<8x1xi32>
    %61 = arith.select %56, %59, %60 : vector<8x1xi1>, vector<8x1xi32>
    %62 = arith.addi %37, %61 : vector<8x1xi32>
    %c2_i32_17 = arith.constant 2 : i32
    %63 = vector.broadcast %c2_i32_17 : i32 to vector<8x1xi32>
    %64 = arith.cmpi eq, %0, %63 : vector<8x1xi32>
    %65 = arith.index_cast %arg0 : i32 to index
    %c2_18 = arith.constant 2 : index
    %66 = memref.load %arg2[%65, %c2_18] : memref<2x8xi32, #tpu.memory_space<smem>>
    %c0_i32_19 = arith.constant 0 : i32
    %67 = vector.broadcast %66 : i32 to vector<8x1xi32>
    %68 = vector.broadcast %c0_i32_19 : i32 to vector<8x1xi32>
    %69 = arith.select %64, %67, %68 : vector<8x1xi1>, vector<8x1xi32>
    %70 = arith.addi %45, %69 : vector<8x1xi32>
    %c2_i32_20 = arith.constant 2 : i32
    %71 = vector.broadcast %c2_i32_20 : i32 to vector<1x8xi32>
    %72 = arith.cmpi eq, %1, %71 : vector<1x8xi32>
    %73 = arith.index_cast %arg0 : i32 to index
    %c2_21 = arith.constant 2 : index
    %74 = memref.load %arg3[%73, %c2_21] : memref<2x8xi32, #tpu.memory_space<smem>>
    %75 = arith.sitofp %74 : i32 to f32
    %cst_22 = arith.constant 0.000000e+00 : f32
    %76 = vector.broadcast %75 : f32 to vector<1x8xf32>
    %77 = vector.broadcast %cst_22 : f32 to vector<1x8xf32>
    %78 = arith.select %72, %76, %77 : vector<1x8xi1>, vector<1x8xf32>
    %79 = arith.addf %54, %78 : vector<1x8xf32>
    %c3_i32 = arith.constant 3 : i32
    %80 = vector.broadcast %c3_i32 : i32 to vector<8x1xi32>
    %81 = arith.cmpi eq, %0, %80 : vector<8x1xi32>
    %82 = arith.index_cast %arg0 : i32 to index
    %c3 = arith.constant 3 : index
    %83 = memref.load %arg1[%82, %c3] : memref<2x8xi32, #tpu.memory_space<smem>>
    %c0_i32_23 = arith.constant 0 : i32
    %84 = vector.broadcast %83 : i32 to vector<8x1xi32>
    %85 = vector.broadcast %c0_i32_23 : i32 to vector<8x1xi32>
    %86 = arith.select %81, %84, %85 : vector<8x1xi1>, vector<8x1xi32>
    %87 = arith.addi %62, %86 : vector<8x1xi32>
    %c3_i32_24 = arith.constant 3 : i32
    %88 = vector.broadcast %c3_i32_24 : i32 to vector<8x1xi32>
    %89 = arith.cmpi eq, %0, %88 : vector<8x1xi32>
    %90 = arith.index_cast %arg0 : i32 to index
    %c3_25 = arith.constant 3 : index
    %91 = memref.load %arg2[%90, %c3_25] : memref<2x8xi32, #tpu.memory_space<smem>>
    %c0_i32_26 = arith.constant 0 : i32
    %92 = vector.broadcast %91 : i32 to vector<8x1xi32>
    %93 = vector.broadcast %c0_i32_26 : i32 to vector<8x1xi32>
    %94 = arith.select %89, %92, %93 : vector<8x1xi1>, vector<8x1xi32>
    %95 = arith.addi %70, %94 : vector<8x1xi32>
    %c3_i32_27 = arith.constant 3 : i32
    %96 = vector.broadcast %c3_i32_27 : i32 to vector<1x8xi32>
    %97 = arith.cmpi eq, %1, %96 : vector<1x8xi32>
    %98 = arith.index_cast %arg0 : i32 to index
    %c3_28 = arith.constant 3 : index
    %99 = memref.load %arg3[%98, %c3_28] : memref<2x8xi32, #tpu.memory_space<smem>>
    %100 = arith.sitofp %99 : i32 to f32
    %cst_29 = arith.constant 0.000000e+00 : f32
    %101 = vector.broadcast %100 : f32 to vector<1x8xf32>
    %102 = vector.broadcast %cst_29 : f32 to vector<1x8xf32>
    %103 = arith.select %97, %101, %102 : vector<1x8xi1>, vector<1x8xf32>
    %104 = arith.addf %79, %103 : vector<1x8xf32>
    %c4_i32 = arith.constant 4 : i32
    %105 = vector.broadcast %c4_i32 : i32 to vector<8x1xi32>
    %106 = arith.cmpi eq, %0, %105 : vector<8x1xi32>
    %107 = arith.index_cast %arg0 : i32 to index
    %c4 = arith.constant 4 : index
    %108 = memref.load %arg1[%107, %c4] : memref<2x8xi32, #tpu.memory_space<smem>>
    %c0_i32_30 = arith.constant 0 : i32
    %109 = vector.broadcast %108 : i32 to vector<8x1xi32>
    %110 = vector.broadcast %c0_i32_30 : i32 to vector<8x1xi32>
    %111 = arith.select %106, %109, %110 : vector<8x1xi1>, vector<8x1xi32>
    %112 = arith.addi %87, %111 : vector<8x1xi32>
    %c4_i32_31 = arith.constant 4 : i32
    %113 = vector.broadcast %c4_i32_31 : i32 to vector<8x1xi32>
    %114 = arith.cmpi eq, %0, %113 : vector<8x1xi32>
    %115 = arith.index_cast %arg0 : i32 to index
    %c4_32 = arith.constant 4 : index
    %116 = memref.load %arg2[%115, %c4_32] : memref<2x8xi32, #tpu.memory_space<smem>>
    %c0_i32_33 = arith.constant 0 : i32
    %117 = vector.broadcast %116 : i32 to vector<8x1xi32>
    %118 = vector.broadcast %c0_i32_33 : i32 to vector<8x1xi32>
    %119 = arith.select %114, %117, %118 : vector<8x1xi1>, vector<8x1xi32>
    %120 = arith.addi %95, %119 : vector<8x1xi32>
    %c4_i32_34 = arith.constant 4 : i32
    %121 = vector.broadcast %c4_i32_34 : i32 to vector<1x8xi32>
    %122 = arith.cmpi eq, %1, %121 : vector<1x8xi32>
    %123 = arith.index_cast %arg0 : i32 to index
    %c4_35 = arith.constant 4 : index
    %124 = memref.load %arg3[%123, %c4_35] : memref<2x8xi32, #tpu.memory_space<smem>>
    %125 = arith.sitofp %124 : i32 to f32
    %cst_36 = arith.constant 0.000000e+00 : f32
    %126 = vector.broadcast %125 : f32 to vector<1x8xf32>
    %127 = vector.broadcast %cst_36 : f32 to vector<1x8xf32>
    %128 = arith.select %122, %126, %127 : vector<1x8xi1>, vector<1x8xf32>
    %129 = arith.addf %104, %128 : vector<1x8xf32>
    %c5_i32 = arith.constant 5 : i32
    %130 = vector.broadcast %c5_i32 : i32 to vector<8x1xi32>
    %131 = arith.cmpi eq, %0, %130 : vector<8x1xi32>
    %132 = arith.index_cast %arg0 : i32 to index
    %c5 = arith.constant 5 : index
    %133 = memref.load %arg1[%132, %c5] : memref<2x8xi32, #tpu.memory_space<smem>>
    %c0_i32_37 = arith.constant 0 : i32
    %134 = vector.broadcast %133 : i32 to vector<8x1xi32>
    %135 = vector.broadcast %c0_i32_37 : i32 to vector<8x1xi32>
    %136 = arith.select %131, %134, %135 : vector<8x1xi1>, vector<8x1xi32>
    %137 = arith.addi %112, %136 : vector<8x1xi32>
    %c5_i32_38 = arith.constant 5 : i32
    %138 = vector.broadcast %c5_i32_38 : i32 to vector<8x1xi32>
    %139 = arith.cmpi eq, %0, %138 : vector<8x1xi32>
    %140 = arith.index_cast %arg0 : i32 to index
    %c5_39 = arith.constant 5 : index
    %141 = memref.load %arg2[%140, %c5_39] : memref<2x8xi32, #tpu.memory_space<smem>>
    %c0_i32_40 = arith.constant 0 : i32
    %142 = vector.broadcast %141 : i32 to vector<8x1xi32>
    %143 = vector.broadcast %c0_i32_40 : i32 to vector<8x1xi32>
    %144 = arith.select %139, %142, %143 : vector<8x1xi1>, vector<8x1xi32>
    %145 = arith.addi %120, %144 : vector<8x1xi32>
    %c5_i32_41 = arith.constant 5 : i32
    %146 = vector.broadcast %c5_i32_41 : i32 to vector<1x8xi32>
    %147 = arith.cmpi eq, %1, %146 : vector<1x8xi32>
    %148 = arith.index_cast %arg0 : i32 to index
    %c5_42 = arith.constant 5 : index
    %149 = memref.load %arg3[%148, %c5_42] : memref<2x8xi32, #tpu.memory_space<smem>>
    %150 = arith.sitofp %149 : i32 to f32
    %cst_43 = arith.constant 0.000000e+00 : f32
    %151 = vector.broadcast %150 : f32 to vector<1x8xf32>
    %152 = vector.broadcast %cst_43 : f32 to vector<1x8xf32>
    %153 = arith.select %147, %151, %152 : vector<1x8xi1>, vector<1x8xf32>
    %154 = arith.addf %129, %153 : vector<1x8xf32>
    %c6_i32 = arith.constant 6 : i32
    %155 = vector.broadcast %c6_i32 : i32 to vector<8x1xi32>
    %156 = arith.cmpi eq, %0, %155 : vector<8x1xi32>
    %157 = arith.index_cast %arg0 : i32 to index
    %c6 = arith.constant 6 : index
    %158 = memref.load %arg1[%157, %c6] : memref<2x8xi32, #tpu.memory_space<smem>>
    %c0_i32_44 = arith.constant 0 : i32
    %159 = vector.broadcast %158 : i32 to vector<8x1xi32>
    %160 = vector.broadcast %c0_i32_44 : i32 to vector<8x1xi32>
    %161 = arith.select %156, %159, %160 : vector<8x1xi1>, vector<8x1xi32>
    %162 = arith.addi %137, %161 : vector<8x1xi32>
    %c6_i32_45 = arith.constant 6 : i32
    %163 = vector.broadcast %c6_i32_45 : i32 to vector<8x1xi32>
    %164 = arith.cmpi eq, %0, %163 : vector<8x1xi32>
    %165 = arith.index_cast %arg0 : i32 to index
    %c6_46 = arith.constant 6 : index
    %166 = memref.load %arg2[%165, %c6_46] : memref<2x8xi32, #tpu.memory_space<smem>>
    %c0_i32_47 = arith.constant 0 : i32
    %167 = vector.broadcast %166 : i32 to vector<8x1xi32>
    %168 = vector.broadcast %c0_i32_47 : i32 to vector<8x1xi32>
    %169 = arith.select %164, %167, %168 : vector<8x1xi1>, vector<8x1xi32>
    %170 = arith.addi %145, %169 : vector<8x1xi32>
    %c6_i32_48 = arith.constant 6 : i32
    %171 = vector.broadcast %c6_i32_48 : i32 to vector<1x8xi32>
    %172 = arith.cmpi eq, %1, %171 : vector<1x8xi32>
    %173 = arith.index_cast %arg0 : i32 to index
    %c6_49 = arith.constant 6 : index
    %174 = memref.load %arg3[%173, %c6_49] : memref<2x8xi32, #tpu.memory_space<smem>>
    %175 = arith.sitofp %174 : i32 to f32
    %cst_50 = arith.constant 0.000000e+00 : f32
    %176 = vector.broadcast %175 : f32 to vector<1x8xf32>
    %177 = vector.broadcast %cst_50 : f32 to vector<1x8xf32>
    %178 = arith.select %172, %176, %177 : vector<1x8xi1>, vector<1x8xf32>
    %179 = arith.addf %154, %178 : vector<1x8xf32>
    %c7_i32 = arith.constant 7 : i32
    %180 = vector.broadcast %c7_i32 : i32 to vector<8x1xi32>
    %181 = arith.cmpi eq, %0, %180 : vector<8x1xi32>
    %182 = arith.index_cast %arg0 : i32 to index
    %c7 = arith.constant 7 : index
    %183 = memref.load %arg1[%182, %c7] : memref<2x8xi32, #tpu.memory_space<smem>>
    %c0_i32_51 = arith.constant 0 : i32
    %184 = vector.broadcast %183 : i32 to vector<8x1xi32>
    %185 = vector.broadcast %c0_i32_51 : i32 to vector<8x1xi32>
    %186 = arith.select %181, %184, %185 : vector<8x1xi1>, vector<8x1xi32>
    %187 = arith.addi %162, %186 : vector<8x1xi32>
    %c7_i32_52 = arith.constant 7 : i32
    %188 = vector.broadcast %c7_i32_52 : i32 to vector<8x1xi32>
    %189 = arith.cmpi eq, %0, %188 : vector<8x1xi32>
    %190 = arith.index_cast %arg0 : i32 to index
    %c7_53 = arith.constant 7 : index
    %191 = memref.load %arg2[%190, %c7_53] : memref<2x8xi32, #tpu.memory_space<smem>>
    %c0_i32_54 = arith.constant 0 : i32
    %192 = vector.broadcast %191 : i32 to vector<8x1xi32>
    %193 = vector.broadcast %c0_i32_54 : i32 to vector<8x1xi32>
    %194 = arith.select %189, %192, %193 : vector<8x1xi1>, vector<8x1xi32>
    %195 = arith.addi %170, %194 : vector<8x1xi32>
    %c7_i32_55 = arith.constant 7 : i32
    %196 = vector.broadcast %c7_i32_55 : i32 to vector<1x8xi32>
    %197 = arith.cmpi eq, %1, %196 : vector<1x8xi32>
    %198 = arith.index_cast %arg0 : i32 to index
    %c7_56 = arith.constant 7 : index
    %199 = memref.load %arg3[%198, %c7_56] : memref<2x8xi32, #tpu.memory_space<smem>>
    %200 = arith.sitofp %199 : i32 to f32
    %cst_57 = arith.constant 0.000000e+00 : f32
    %201 = vector.broadcast %200 : f32 to vector<1x8xf32>
    %202 = vector.broadcast %cst_57 : f32 to vector<1x8xf32>
    %203 = arith.select %197, %201, %202 : vector<1x8xi1>, vector<1x8xf32>
    %204 = arith.addf %179, %203 : vector<1x8xf32>
    %205 = tpu.iota {dimensions = array<i32: 1>} : vector<8x100xi32>
    %206 = vector.broadcast %187 : vector<8x1xi32> to vector<8x100xi32>
    %207 = arith.cmpi eq, %206, %205 : vector<8x100xi32>
    %208 = arith.extui %207 : vector<8x100xi1> to vector<8x100xi32>
    %209 = arith.sitofp %208 : vector<8x100xi32> to vector<8x100xf32>
    %c0_58 = arith.constant 0 : index
    %c0_59 = arith.constant 0 : index
    %210 = vector.load %arg4[%c0_58, %c0_59] : memref<100x32xf32, #tpu.memory_space<vmem>>, vector<100x32xf32>
    %cst_60 = arith.constant dense<0.000000e+00> : vector<8x32xf32>
    %211 = tpu.matmul %209, %210, %cst_60 {dimension_numbers = #tpu.dot_dimension_numbers<[1], [0], [0], [1], [0, 0, 1, 1], [], []>} : vector<8x100xf32>, vector<100x32xf32>, vector<8x32xf32> -> vector<8x32xf32>
    %c0_61 = arith.constant 0 : index
    %c0_62 = arith.constant 0 : index
    %212 = vector.load %arg5[%c0_61, %c0_62] : memref<8x32xf32, #tpu.memory_space<vmem>>, vector<8x32xf32>
    %213 = arith.addf %211, %212 : vector<8x32xf32>
    %c0_i32_63 = arith.constant 0 : i32
    %214 = vector.broadcast %c0_i32_63 : i32 to vector<8x1xi32>
    %215 = arith.cmpi eq, %195, %214 : vector<8x1xi32>
    %c0_64 = arith.constant 0 : index
    %c0_65 = arith.constant 0 : index
    %216 = vector.load %arg6[%c0_64, %c0_65] : memref<2x32xf32, #tpu.memory_space<vmem>>, vector<1x32xf32>
    %c1_66 = arith.constant 1 : index
    %c0_67 = arith.constant 0 : index
    %217 = vector.load %arg6[%c1_66, %c0_67] : memref<2x32xf32, #tpu.memory_space<vmem>>, vector<1x32xf32>
    %218 = vector.shape_cast %215 : vector<8x1xi1> to vector<8x1xi1>
    %219 = vector.broadcast %218 : vector<8x1xi1> to vector<8x32xi1>
    %220 = vector.shape_cast %216 : vector<1x32xf32> to vector<1x32xf32>
    %221 = vector.broadcast %220 : vector<1x32xf32> to vector<8x32xf32>
    %222 = vector.shape_cast %217 : vector<1x32xf32> to vector<1x32xf32>
    %223 = vector.broadcast %222 : vector<1x32xf32> to vector<8x32xf32>
    %224 = arith.select %219, %221, %223 : vector<8x32xi1>, vector<8x32xf32>
    %225 = arith.addf %213, %224 : vector<8x32xf32>
    %c0_68 = arith.constant 0 : index
    %c0_69 = arith.constant 0 : index
    %226 = vector.load %arg7[%c0_68, %c0_69] : memref<1x32xf32, #tpu.memory_space<vmem>>, vector<1x32xf32>
    %c0_70 = arith.constant 0 : index
    %c0_71 = arith.constant 0 : index
    %227 = vector.load %arg8[%c0_70, %c0_71] : memref<1x32xf32, #tpu.memory_space<vmem>>, vector<1x32xf32>
    %cst_72 = arith.constant dense<0.000000e+00> : vector<8xf32>
    %228 = vector.multi_reduction <add>, %225, %cst_72 [1] : vector<8x32xf32> to vector<8xf32>
    %229 = vector.shape_cast %228 : vector<8xf32> to vector<8x1xf32>
    %cst_73 = arith.constant 3.200000e+01 : f32
    %230 = vector.broadcast %cst_73 : f32 to vector<8x1xf32>
    %231 = arith.divf %229, %230 : vector<8x1xf32>
    %232 = vector.broadcast %231 : vector<8x1xf32> to vector<8x32xf32>
    %233 = arith.subf %225, %232 : vector<8x32xf32>
    %234 = arith.mulf %233, %233 : vector<8x32xf32>
    %cst_74 = arith.constant dense<0.000000e+00> : vector<8xf32>
    %235 = vector.multi_reduction <add>, %234, %cst_74 [1] : vector<8x32xf32> to vector<8xf32>
    %236 = vector.shape_cast %235 : vector<8xf32> to vector<8x1xf32>
    %cst_75 = arith.constant 3.200000e+01 : f32
    %237 = vector.broadcast %cst_75 : f32 to vector<8x1xf32>
    %238 = arith.divf %236, %237 : vector<8x1xf32>
    %239 = vector.broadcast %231 : vector<8x1xf32> to vector<8x32xf32>
    %240 = arith.subf %225, %239 : vector<8x32xf32>
    %cst_76 = arith.constant 9.99999996E-13 : f32
    %241 = vector.broadcast %cst_76 : f32 to vector<8x1xf32>
    %242 = arith.addf %238, %241 : vector<8x1xf32>
    %243 = math.rsqrt %242 : vector<8x1xf32>
    %244 = vector.broadcast %243 : vector<8x1xf32> to vector<8x32xf32>
    %245 = arith.mulf %240, %244 : vector<8x32xf32>
    %246 = vector.broadcast %226 : vector<1x32xf32> to vector<8x32xf32>
    %247 = arith.mulf %245, %246 : vector<8x32xf32>
    %248 = vector.broadcast %227 : vector<1x32xf32> to vector<8x32xf32>
    %249 = arith.addf %247, %248 : vector<8x32xf32>
    %cst_77 = arith.constant 1.000000e+00 : f32
    %250 = vector.broadcast %cst_77 : f32 to vector<1x8xf32>
    %251 = arith.subf %250, %204 : vector<1x8xf32>
    %cst_78 = arith.constant -1.000000e+09 : f32
    %252 = vector.broadcast %cst_78 : f32 to vector<1x8xf32>
    %253 = arith.mulf %251, %252 : vector<1x8xf32>
    %c0_79 = arith.constant 0 : index
    %c0_80 = arith.constant 0 : index
    %c0_81 = arith.constant 0 : index
    %254 = vector.load %arg9[%c0_79, %c0_80, %c0_81] : memref<2x32x96xf32, #tpu.memory_space<vmem>>, vector<1x32x96xf32>
    %255 = vector.shape_cast %254 : vector<1x32x96xf32> to vector<32x96xf32>
    %cst_82 = arith.constant dense<0.000000e+00> : vector<8x96xf32>
    %256 = tpu.matmul %249, %255, %cst_82 {dimension_numbers = #tpu.dot_dimension_numbers<[1], [0], [0], [1], [0, 0, 1, 1], [], []>} : vector<8x32xf32>, vector<32x96xf32>, vector<8x96xf32> -> vector<8x96xf32>
    %c0_83 = arith.constant 0 : index
    %c0_84 = arith.constant 0 : index
    %c0_85 = arith.constant 0 : index
    %257 = vector.load %arg10[%c0_83, %c0_84, %c0_85] : memref<2x1x96xf32, #tpu.memory_space<vmem>>, vector<1x1x96xf32>
    %258 = vector.shape_cast %257 : vector<1x1x96xf32> to vector<1x96xf32>
    %259 = vector.broadcast %258 : vector<1x96xf32> to vector<8x96xf32>
    %260 = arith.addf %256, %259 : vector<8x96xf32>
    %261 = vector.extract_strided_slice %260 {offsets = [0, 0], sizes = [8, 8], strides = [1, 1]} : vector<8x96xf32> to vector<8x8xf32>
    %262 = vector.extract_strided_slice %260 {offsets = [0, 32], sizes = [8, 8], strides = [1, 1]} : vector<8x96xf32> to vector<8x8xf32>
    %263 = vector.extract_strided_slice %260 {offsets = [0, 64], sizes = [8, 8], strides = [1, 1]} : vector<8x96xf32> to vector<8x8xf32>
    "tpu.trace_start"() <{level = 10 : i32, message = "qd,kd->qk"}> : () -> ()
    %cst_86 = arith.constant dense<0.000000e+00> : vector<8x8xf32>
    %264 = tpu.matmul %261, %262, %cst_86 {dimension_numbers = #tpu.dot_dimension_numbers<[1], [1], [0], [0], [0, 0, 1, 0], [], []>} : vector<8x8xf32>, vector<8x8xf32>, vector<8x8xf32> -> vector<8x8xf32>
    "tpu.trace_stop"() : () -> ()
    %265 = vector.broadcast %253 : vector<1x8xf32> to vector<8x8xf32>
    %266 = arith.addf %264, %265 : vector<8x8xf32>
    %cst_87 = arith.constant dense<0xFF800000> : vector<8xf32>
    %267 = vector.multi_reduction <maximumf>, %266, %cst_87 [1] : vector<8x8xf32> to vector<8xf32>
    %268 = vector.shape_cast %267 : vector<8xf32> to vector<8x1xf32>
    %269 = vector.broadcast %268 : vector<8x1xf32> to vector<8x8xf32>
    %270 = arith.subf %266, %269 : vector<8x8xf32>
    %271 = math.exp %270 : vector<8x8xf32>
    %cst_88 = arith.constant dense<0.000000e+00> : vector<8xf32>
    %272 = vector.multi_reduction <add>, %271, %cst_88 [1] : vector<8x8xf32> to vector<8xf32>
    %273 = vector.shape_cast %272 : vector<8xf32> to vector<8x1xf32>
    %274 = tpu.reciprocal %273 {approx = true} : vector<8x1xf32> -> vector<8x1xf32>
    %275 = vector.broadcast %274 : vector<8x1xf32> to vector<8x8xf32>
    %276 = arith.mulf %271, %275 : vector<8x8xf32>
    %cst_89 = arith.constant dense<0.000000e+00> : vector<8x8xf32>
    %277 = tpu.matmul %276, %263, %cst_89 {dimension_numbers = #tpu.dot_dimension_numbers<[1], [0], [0], [1], [0, 0, 1, 1], [], []>} : vector<8x8xf32>, vector<8x8xf32>, vector<8x8xf32> -> vector<8x8xf32>
    %278 = vector.extract_strided_slice %260 {offsets = [0, 8], sizes = [8, 8], strides = [1, 1]} : vector<8x96xf32> to vector<8x8xf32>
    %279 = vector.extract_strided_slice %260 {offsets = [0, 40], sizes = [8, 8], strides = [1, 1]} : vector<8x96xf32> to vector<8x8xf32>
    %280 = vector.extract_strided_slice %260 {offsets = [0, 72], sizes = [8, 8], strides = [1, 1]} : vector<8x96xf32> to vector<8x8xf32>
    "tpu.trace_start"() <{level = 10 : i32, message = "qd,kd->qk"}> : () -> ()
    %cst_90 = arith.constant dense<0.000000e+00> : vector<8x8xf32>
    %281 = tpu.matmul %278, %279, %cst_90 {dimension_numbers = #tpu.dot_dimension_numbers<[1], [1], [0], [0], [0, 0, 1, 0], [], []>} : vector<8x8xf32>, vector<8x8xf32>, vector<8x8xf32> -> vector<8x8xf32>
    "tpu.trace_stop"() : () -> ()
    %282 = vector.broadcast %253 : vector<1x8xf32> to vector<8x8xf32>
    %283 = arith.addf %281, %282 : vector<8x8xf32>
    %cst_91 = arith.constant dense<0xFF800000> : vector<8xf32>
    %284 = vector.multi_reduction <maximumf>, %283, %cst_91 [1] : vector<8x8xf32> to vector<8xf32>
    %285 = vector.shape_cast %284 : vector<8xf32> to vector<8x1xf32>
    %286 = vector.broadcast %285 : vector<8x1xf32> to vector<8x8xf32>
    %287 = arith.subf %283, %286 : vector<8x8xf32>
    %288 = math.exp %287 : vector<8x8xf32>
    %cst_92 = arith.constant dense<0.000000e+00> : vector<8xf32>
    %289 = vector.multi_reduction <add>, %288, %cst_92 [1] : vector<8x8xf32> to vector<8xf32>
    %290 = vector.shape_cast %289 : vector<8xf32> to vector<8x1xf32>
    %291 = tpu.reciprocal %290 {approx = true} : vector<8x1xf32> -> vector<8x1xf32>
    %292 = vector.broadcast %291 : vector<8x1xf32> to vector<8x8xf32>
    %293 = arith.mulf %288, %292 : vector<8x8xf32>
    %cst_93 = arith.constant dense<0.000000e+00> : vector<8x8xf32>
    %294 = tpu.matmul %293, %280, %cst_93 {dimension_numbers = #tpu.dot_dimension_numbers<[1], [0], [0], [1], [0, 0, 1, 1], [], []>} : vector<8x8xf32>, vector<8x8xf32>, vector<8x8xf32> -> vector<8x8xf32>
    %295 = vector.extract_strided_slice %260 {offsets = [0, 16], sizes = [8, 8], strides = [1, 1]} : vector<8x96xf32> to vector<8x8xf32>
    %296 = vector.extract_strided_slice %260 {offsets = [0, 48], sizes = [8, 8], strides = [1, 1]} : vector<8x96xf32> to vector<8x8xf32>
    %297 = vector.extract_strided_slice %260 {offsets = [0, 80], sizes = [8, 8], strides = [1, 1]} : vector<8x96xf32> to vector<8x8xf32>
    "tpu.trace_start"() <{level = 10 : i32, message = "qd,kd->qk"}> : () -> ()
    %cst_94 = arith.constant dense<0.000000e+00> : vector<8x8xf32>
    %298 = tpu.matmul %295, %296, %cst_94 {dimension_numbers = #tpu.dot_dimension_numbers<[1], [1], [0], [0], [0, 0, 1, 0], [], []>} : vector<8x8xf32>, vector<8x8xf32>, vector<8x8xf32> -> vector<8x8xf32>
    "tpu.trace_stop"() : () -> ()
    %299 = vector.broadcast %253 : vector<1x8xf32> to vector<8x8xf32>
    %300 = arith.addf %298, %299 : vector<8x8xf32>
    %cst_95 = arith.constant dense<0xFF800000> : vector<8xf32>
    %301 = vector.multi_reduction <maximumf>, %300, %cst_95 [1] : vector<8x8xf32> to vector<8xf32>
    %302 = vector.shape_cast %301 : vector<8xf32> to vector<8x1xf32>
    %303 = vector.broadcast %302 : vector<8x1xf32> to vector<8x8xf32>
    %304 = arith.subf %300, %303 : vector<8x8xf32>
    %305 = math.exp %304 : vector<8x8xf32>
    %cst_96 = arith.constant dense<0.000000e+00> : vector<8xf32>
    %306 = vector.multi_reduction <add>, %305, %cst_96 [1] : vector<8x8xf32> to vector<8xf32>
    %307 = vector.shape_cast %306 : vector<8xf32> to vector<8x1xf32>
    %308 = tpu.reciprocal %307 {approx = true} : vector<8x1xf32> -> vector<8x1xf32>
    %309 = vector.broadcast %308 : vector<8x1xf32> to vector<8x8xf32>
    %310 = arith.mulf %305, %309 : vector<8x8xf32>
    %cst_97 = arith.constant dense<0.000000e+00> : vector<8x8xf32>
    %311 = tpu.matmul %310, %297, %cst_97 {dimension_numbers = #tpu.dot_dimension_numbers<[1], [0], [0], [1], [0, 0, 1, 1], [], []>} : vector<8x8xf32>, vector<8x8xf32>, vector<8x8xf32> -> vector<8x8xf32>
    %312 = vector.extract_strided_slice %260 {offsets = [0, 24], sizes = [8, 8], strides = [1, 1]} : vector<8x96xf32> to vector<8x8xf32>
    %313 = vector.extract_strided_slice %260 {offsets = [0, 56], sizes = [8, 8], strides = [1, 1]} : vector<8x96xf32> to vector<8x8xf32>
    %314 = vector.extract_strided_slice %260 {offsets = [0, 88], sizes = [8, 8], strides = [1, 1]} : vector<8x96xf32> to vector<8x8xf32>
    "tpu.trace_start"() <{level = 10 : i32, message = "qd,kd->qk"}> : () -> ()
    %cst_98 = arith.constant dense<0.000000e+00> : vector<8x8xf32>
    %315 = tpu.matmul %312, %313, %cst_98 {dimension_numbers = #tpu.dot_dimension_numbers<[1], [1], [0], [0], [0, 0, 1, 0], [], []>} : vector<8x8xf32>, vector<8x8xf32>, vector<8x8xf32> -> vector<8x8xf32>
    "tpu.trace_stop"() : () -> ()
    %316 = vector.broadcast %253 : vector<1x8xf32> to vector<8x8xf32>
    %317 = arith.addf %315, %316 : vector<8x8xf32>
    %cst_99 = arith.constant dense<0xFF800000> : vector<8xf32>
    %318 = vector.multi_reduction <maximumf>, %317, %cst_99 [1] : vector<8x8xf32> to vector<8xf32>
    %319 = vector.shape_cast %318 : vector<8xf32> to vector<8x1xf32>
    %320 = vector.broadcast %319 : vector<8x1xf32> to vector<8x8xf32>
    %321 = arith.subf %317, %320 : vector<8x8xf32>
    %322 = math.exp %321 : vector<8x8xf32>
    %cst_100 = arith.constant dense<0.000000e+00> : vector<8xf32>
    %323 = vector.multi_reduction <add>, %322, %cst_100 [1] : vector<8x8xf32> to vector<8xf32>
    %324 = vector.shape_cast %323 : vector<8xf32> to vector<8x1xf32>
    %325 = tpu.reciprocal %324 {approx = true} : vector<8x1xf32> -> vector<8x1xf32>
    %326 = vector.broadcast %325 : vector<8x1xf32> to vector<8x8xf32>
    %327 = arith.mulf %322, %326 : vector<8x8xf32>
    %cst_101 = arith.constant dense<0.000000e+00> : vector<8x8xf32>
    %328 = tpu.matmul %327, %314, %cst_101 {dimension_numbers = #tpu.dot_dimension_numbers<[1], [0], [0], [1], [0, 0, 1, 1], [], []>} : vector<8x8xf32>, vector<8x8xf32>, vector<8x8xf32> -> vector<8x8xf32>
    %329 = tpu.concatenate %277, %294, %311, %328 in 1 : vector<8x8xf32>, vector<8x8xf32>, vector<8x8xf32>, vector<8x8xf32> -> vector<8x32xf32>
    %c0_102 = arith.constant 0 : index
    %c0_103 = arith.constant 0 : index
    %c0_104 = arith.constant 0 : index
    %330 = vector.load %arg11[%c0_102, %c0_103, %c0_104] : memref<2x32x32xf32, #tpu.memory_space<vmem>>, vector<1x32x32xf32>
    %331 = vector.shape_cast %330 : vector<1x32x32xf32> to vector<32x32xf32>
    %cst_105 = arith.constant dense<0.000000e+00> : vector<8x32xf32>
    %332 = tpu.matmul %329, %331, %cst_105 {dimension_numbers = #tpu.dot_dimension_numbers<[1], [0], [0], [1], [0, 0, 1, 1], [], []>} : vector<8x32xf32>, vector<32x32xf32>, vector<8x32xf32> -> vector<8x32xf32>
    %c0_106 = arith.constant 0 : index
    %c0_107 = arith.constant 0 : index
    %c0_108 = arith.constant 0 : index
    %333 = vector.load %arg12[%c0_106, %c0_107, %c0_108] : memref<2x1x32xf32, #tpu.memory_space<vmem>>, vector<1x1x32xf32>
    %334 = vector.shape_cast %333 : vector<1x1x32xf32> to vector<1x32xf32>
    %335 = vector.broadcast %334 : vector<1x32xf32> to vector<8x32xf32>
    %336 = arith.addf %332, %335 : vector<8x32xf32>
    %337 = arith.addf %249, %336 : vector<8x32xf32>
    %c0_109 = arith.constant 0 : index
    %c0_110 = arith.constant 0 : index
    %c0_111 = arith.constant 0 : index
    %338 = vector.load %arg13[%c0_109, %c0_110, %c0_111] : memref<2x1x32xf32, #tpu.memory_space<vmem>>, vector<1x1x32xf32>
    %339 = vector.shape_cast %338 : vector<1x1x32xf32> to vector<1x32xf32>
    %c0_112 = arith.constant 0 : index
    %c0_113 = arith.constant 0 : index
    %c0_114 = arith.constant 0 : index
    %340 = vector.load %arg14[%c0_112, %c0_113, %c0_114] : memref<2x1x32xf32, #tpu.memory_space<vmem>>, vector<1x1x32xf32>
    %341 = vector.shape_cast %340 : vector<1x1x32xf32> to vector<1x32xf32>
    %cst_115 = arith.constant dense<0.000000e+00> : vector<8xf32>
    %342 = vector.multi_reduction <add>, %337, %cst_115 [1] : vector<8x32xf32> to vector<8xf32>
    %343 = vector.shape_cast %342 : vector<8xf32> to vector<8x1xf32>
    %cst_116 = arith.constant 3.200000e+01 : f32
    %344 = vector.broadcast %cst_116 : f32 to vector<8x1xf32>
    %345 = arith.divf %343, %344 : vector<8x1xf32>
    %346 = vector.broadcast %345 : vector<8x1xf32> to vector<8x32xf32>
    %347 = arith.subf %337, %346 : vector<8x32xf32>
    %348 = arith.mulf %347, %347 : vector<8x32xf32>
    %cst_117 = arith.constant dense<0.000000e+00> : vector<8xf32>
    %349 = vector.multi_reduction <add>, %348, %cst_117 [1] : vector<8x32xf32> to vector<8xf32>
    %350 = vector.shape_cast %349 : vector<8xf32> to vector<8x1xf32>
    %cst_118 = arith.constant 3.200000e+01 : f32
    %351 = vector.broadcast %cst_118 : f32 to vector<8x1xf32>
    %352 = arith.divf %350, %351 : vector<8x1xf32>
    %353 = vector.broadcast %345 : vector<8x1xf32> to vector<8x32xf32>
    %354 = arith.subf %337, %353 : vector<8x32xf32>
    %cst_119 = arith.constant 9.99999996E-13 : f32
    %355 = vector.broadcast %cst_119 : f32 to vector<8x1xf32>
    %356 = arith.addf %352, %355 : vector<8x1xf32>
    %357 = math.rsqrt %356 : vector<8x1xf32>
    %358 = vector.broadcast %357 : vector<8x1xf32> to vector<8x32xf32>
    %359 = arith.mulf %354, %358 : vector<8x32xf32>
    %360 = vector.broadcast %339 : vector<1x32xf32> to vector<8x32xf32>
    %361 = arith.mulf %359, %360 : vector<8x32xf32>
    %362 = vector.broadcast %341 : vector<1x32xf32> to vector<8x32xf32>
    %363 = arith.addf %361, %362 : vector<8x32xf32>
    %c0_120 = arith.constant 0 : index
    %c0_121 = arith.constant 0 : index
    %c0_122 = arith.constant 0 : index
    %364 = vector.load %arg15[%c0_120, %c0_121, %c0_122] : memref<2x32x64xf32, #tpu.memory_space<vmem>>, vector<1x32x64xf32>
    %365 = vector.shape_cast %364 : vector<1x32x64xf32> to vector<32x64xf32>
    %cst_123 = arith.constant dense<0.000000e+00> : vector<8x64xf32>
    %366 = tpu.matmul %363, %365, %cst_123 {dimension_numbers = #tpu.dot_dimension_numbers<[1], [0], [0], [1], [0, 0, 1, 1], [], []>} : vector<8x32xf32>, vector<32x64xf32>, vector<8x64xf32> -> vector<8x64xf32>
    %c0_124 = arith.constant 0 : index
    %c0_125 = arith.constant 0 : index
    %c0_126 = arith.constant 0 : index
    %367 = vector.load %arg16[%c0_124, %c0_125, %c0_126] : memref<2x1x64xf32, #tpu.memory_space<vmem>>, vector<1x1x64xf32>
    %368 = vector.shape_cast %367 : vector<1x1x64xf32> to vector<1x64xf32>
    %369 = vector.broadcast %368 : vector<1x64xf32> to vector<8x64xf32>
    %370 = arith.addf %366, %369 : vector<8x64xf32>
    %371 = arith.mulf %370, %370 : vector<8x64xf32>
    %372 = arith.mulf %370, %371 : vector<8x64xf32>
    %cst_127 = arith.constant 4.471500e-02 : f32
    %373 = vector.broadcast %cst_127 : f32 to vector<8x64xf32>
    %374 = arith.mulf %373, %372 : vector<8x64xf32>
    %375 = arith.addf %370, %374 : vector<8x64xf32>
    %cst_128 = arith.constant 0.797884583 : f32
    %376 = vector.broadcast %cst_128 : f32 to vector<8x64xf32>
    %377 = arith.mulf %376, %375 : vector<8x64xf32>
    %378 = math.tanh %377 : vector<8x64xf32>
    %cst_129 = arith.constant 1.000000e+00 : f32
    %379 = vector.broadcast %cst_129 : f32 to vector<8x64xf32>
    %380 = arith.addf %379, %378 : vector<8x64xf32>
    %cst_130 = arith.constant 5.000000e-01 : f32
    %381 = vector.broadcast %cst_130 : f32 to vector<8x64xf32>
    %382 = arith.mulf %381, %380 : vector<8x64xf32>
    %383 = arith.mulf %370, %382 : vector<8x64xf32>
    %c0_131 = arith.constant 0 : index
    %c0_132 = arith.constant 0 : index
    %c0_133 = arith.constant 0 : index
    %384 = vector.load %arg17[%c0_131, %c0_132, %c0_133] : memref<2x64x32xf32, #tpu.memory_space<vmem>>, vector<1x64x32xf32>
    %385 = vector.shape_cast %384 : vector<1x64x32xf32> to vector<64x32xf32>
    %cst_134 = arith.constant dense<0.000000e+00> : vector<8x32xf32>
    %386 = tpu.matmul %383, %385, %cst_134 {dimension_numbers = #tpu.dot_dimension_numbers<[1], [0], [0], [1], [0, 0, 1, 1], [], []>} : vector<8x64xf32>, vector<64x32xf32>, vector<8x32xf32> -> vector<8x32xf32>
    %c0_135 = arith.constant 0 : index
    %c0_136 = arith.constant 0 : index
    %c0_137 = arith.constant 0 : index
    %387 = vector.load %arg18[%c0_135, %c0_136, %c0_137] : memref<2x1x32xf32, #tpu.memory_space<vmem>>, vector<1x1x32xf32>
    %388 = vector.shape_cast %387 : vector<1x1x32xf32> to vector<1x32xf32>
    %389 = vector.broadcast %388 : vector<1x32xf32> to vector<8x32xf32>
    %390 = arith.addf %386, %389 : vector<8x32xf32>
    %391 = arith.addf %363, %390 : vector<8x32xf32>
    %c0_138 = arith.constant 0 : index
    %c0_139 = arith.constant 0 : index
    %c0_140 = arith.constant 0 : index
    %392 = vector.load %arg19[%c0_138, %c0_139, %c0_140] : memref<2x1x32xf32, #tpu.memory_space<vmem>>, vector<1x1x32xf32>
    %393 = vector.shape_cast %392 : vector<1x1x32xf32> to vector<1x32xf32>
    %c0_141 = arith.constant 0 : index
    %c0_142 = arith.constant 0 : index
    %c0_143 = arith.constant 0 : index
    %394 = vector.load %arg20[%c0_141, %c0_142, %c0_143] : memref<2x1x32xf32, #tpu.memory_space<vmem>>, vector<1x1x32xf32>
    %395 = vector.shape_cast %394 : vector<1x1x32xf32> to vector<1x32xf32>
    %cst_144 = arith.constant dense<0.000000e+00> : vector<8xf32>
    %396 = vector.multi_reduction <add>, %391, %cst_144 [1] : vector<8x32xf32> to vector<8xf32>
    %397 = vector.shape_cast %396 : vector<8xf32> to vector<8x1xf32>
    %cst_145 = arith.constant 3.200000e+01 : f32
    %398 = vector.broadcast %cst_145 : f32 to vector<8x1xf32>
    %399 = arith.divf %397, %398 : vector<8x1xf32>
    %400 = vector.broadcast %399 : vector<8x1xf32> to vector<8x32xf32>
    %401 = arith.subf %391, %400 : vector<8x32xf32>
    %402 = arith.mulf %401, %401 : vector<8x32xf32>
    %cst_146 = arith.constant dense<0.000000e+00> : vector<8xf32>
    %403 = vector.multi_reduction <add>, %402, %cst_146 [1] : vector<8x32xf32> to vector<8xf32>
    %404 = vector.shape_cast %403 : vector<8xf32> to vector<8x1xf32>
    %cst_147 = arith.constant 3.200000e+01 : f32
    %405 = vector.broadcast %cst_147 : f32 to vector<8x1xf32>
    %406 = arith.divf %404, %405 : vector<8x1xf32>
    %407 = vector.broadcast %399 : vector<8x1xf32> to vector<8x32xf32>
    %408 = arith.subf %391, %407 : vector<8x32xf32>
    %cst_148 = arith.constant 9.99999996E-13 : f32
    %409 = vector.broadcast %cst_148 : f32 to vector<8x1xf32>
    %410 = arith.addf %406, %409 : vector<8x1xf32>
    %411 = math.rsqrt %410 : vector<8x1xf32>
    %412 = vector.broadcast %411 : vector<8x1xf32> to vector<8x32xf32>
    %413 = arith.mulf %408, %412 : vector<8x32xf32>
    %414 = vector.broadcast %393 : vector<1x32xf32> to vector<8x32xf32>
    %415 = arith.mulf %413, %414 : vector<8x32xf32>
    %416 = vector.broadcast %395 : vector<1x32xf32> to vector<8x32xf32>
    %417 = arith.addf %415, %416 : vector<8x32xf32>
    %c1_149 = arith.constant 1 : index
    %c0_150 = arith.constant 0 : index
    %c0_151 = arith.constant 0 : index
    %418 = vector.load %arg9[%c1_149, %c0_150, %c0_151] : memref<2x32x96xf32, #tpu.memory_space<vmem>>, vector<1x32x96xf32>
    %419 = vector.shape_cast %418 : vector<1x32x96xf32> to vector<32x96xf32>
    %cst_152 = arith.constant dense<0.000000e+00> : vector<8x96xf32>
    %420 = tpu.matmul %417, %419, %cst_152 {dimension_numbers = #tpu.dot_dimension_numbers<[1], [0], [0], [1], [0, 0, 1, 1], [], []>} : vector<8x32xf32>, vector<32x96xf32>, vector<8x96xf32> -> vector<8x96xf32>
    %c1_153 = arith.constant 1 : index
    %c0_154 = arith.constant 0 : index
    %c0_155 = arith.constant 0 : index
    %421 = vector.load %arg10[%c1_153, %c0_154, %c0_155] : memref<2x1x96xf32, #tpu.memory_space<vmem>>, vector<1x1x96xf32>
    %422 = vector.shape_cast %421 : vector<1x1x96xf32> to vector<1x96xf32>
    %423 = vector.broadcast %422 : vector<1x96xf32> to vector<8x96xf32>
    %424 = arith.addf %420, %423 : vector<8x96xf32>
    %425 = vector.extract_strided_slice %424 {offsets = [0, 0], sizes = [8, 8], strides = [1, 1]} : vector<8x96xf32> to vector<8x8xf32>
    %426 = vector.extract_strided_slice %424 {offsets = [0, 32], sizes = [8, 8], strides = [1, 1]} : vector<8x96xf32> to vector<8x8xf32>
    %427 = vector.extract_strided_slice %424 {offsets = [0, 64], sizes = [8, 8], strides = [1, 1]} : vector<8x96xf32> to vector<8x8xf32>
    "tpu.trace_start"() <{level = 10 : i32, message = "qd,kd->qk"}> : () -> ()
    %cst_156 = arith.constant dense<0.000000e+00> : vector<8x8xf32>
    %428 = tpu.matmul %425, %426, %cst_156 {dimension_numbers = #tpu.dot_dimension_numbers<[1], [1], [0], [0], [0, 0, 1, 0], [], []>} : vector<8x8xf32>, vector<8x8xf32>, vector<8x8xf32> -> vector<8x8xf32>
    "tpu.trace_stop"() : () -> ()
    %429 = vector.broadcast %253 : vector<1x8xf32> to vector<8x8xf32>
    %430 = arith.addf %428, %429 : vector<8x8xf32>
    %cst_157 = arith.constant dense<0xFF800000> : vector<8xf32>
    %431 = vector.multi_reduction <maximumf>, %430, %cst_157 [1] : vector<8x8xf32> to vector<8xf32>
    %432 = vector.shape_cast %431 : vector<8xf32> to vector<8x1xf32>
    %433 = vector.broadcast %432 : vector<8x1xf32> to vector<8x8xf32>
    %434 = arith.subf %430, %433 : vector<8x8xf32>
    %435 = math.exp %434 : vector<8x8xf32>
    %cst_158 = arith.constant dense<0.000000e+00> : vector<8xf32>
    %436 = vector.multi_reduction <add>, %435, %cst_158 [1] : vector<8x8xf32> to vector<8xf32>
    %437 = vector.shape_cast %436 : vector<8xf32> to vector<8x1xf32>
    %438 = tpu.reciprocal %437 {approx = true} : vector<8x1xf32> -> vector<8x1xf32>
    %439 = vector.broadcast %438 : vector<8x1xf32> to vector<8x8xf32>
    %440 = arith.mulf %435, %439 : vector<8x8xf32>
    %cst_159 = arith.constant dense<0.000000e+00> : vector<8x8xf32>
    %441 = tpu.matmul %440, %427, %cst_159 {dimension_numbers = #tpu.dot_dimension_numbers<[1], [0], [0], [1], [0, 0, 1, 1], [], []>} : vector<8x8xf32>, vector<8x8xf32>, vector<8x8xf32> -> vector<8x8xf32>
    %442 = vector.extract_strided_slice %424 {offsets = [0, 8], sizes = [8, 8], strides = [1, 1]} : vector<8x96xf32> to vector<8x8xf32>
    %443 = vector.extract_strided_slice %424 {offsets = [0, 40], sizes = [8, 8], strides = [1, 1]} : vector<8x96xf32> to vector<8x8xf32>
    %444 = vector.extract_strided_slice %424 {offsets = [0, 72], sizes = [8, 8], strides = [1, 1]} : vector<8x96xf32> to vector<8x8xf32>
    "tpu.trace_start"() <{level = 10 : i32, message = "qd,kd->qk"}> : () -> ()
    %cst_160 = arith.constant dense<0.000000e+00> : vector<8x8xf32>
    %445 = tpu.matmul %442, %443, %cst_160 {dimension_numbers = #tpu.dot_dimension_numbers<[1], [1], [0], [0], [0, 0, 1, 0], [], []>} : vector<8x8xf32>, vector<8x8xf32>, vector<8x8xf32> -> vector<8x8xf32>
    "tpu.trace_stop"() : () -> ()
    %446 = vector.broadcast %253 : vector<1x8xf32> to vector<8x8xf32>
    %447 = arith.addf %445, %446 : vector<8x8xf32>
    %cst_161 = arith.constant dense<0xFF800000> : vector<8xf32>
    %448 = vector.multi_reduction <maximumf>, %447, %cst_161 [1] : vector<8x8xf32> to vector<8xf32>
    %449 = vector.shape_cast %448 : vector<8xf32> to vector<8x1xf32>
    %450 = vector.broadcast %449 : vector<8x1xf32> to vector<8x8xf32>
    %451 = arith.subf %447, %450 : vector<8x8xf32>
    %452 = math.exp %451 : vector<8x8xf32>
    %cst_162 = arith.constant dense<0.000000e+00> : vector<8xf32>
    %453 = vector.multi_reduction <add>, %452, %cst_162 [1] : vector<8x8xf32> to vector<8xf32>
    %454 = vector.shape_cast %453 : vector<8xf32> to vector<8x1xf32>
    %455 = tpu.reciprocal %454 {approx = true} : vector<8x1xf32> -> vector<8x1xf32>
    %456 = vector.broadcast %455 : vector<8x1xf32> to vector<8x8xf32>
    %457 = arith.mulf %452, %456 : vector<8x8xf32>
    %cst_163 = arith.constant dense<0.000000e+00> : vector<8x8xf32>
    %458 = tpu.matmul %457, %444, %cst_163 {dimension_numbers = #tpu.dot_dimension_numbers<[1], [0], [0], [1], [0, 0, 1, 1], [], []>} : vector<8x8xf32>, vector<8x8xf32>, vector<8x8xf32> -> vector<8x8xf32>
    %459 = vector.extract_strided_slice %424 {offsets = [0, 16], sizes = [8, 8], strides = [1, 1]} : vector<8x96xf32> to vector<8x8xf32>
    %460 = vector.extract_strided_slice %424 {offsets = [0, 48], sizes = [8, 8], strides = [1, 1]} : vector<8x96xf32> to vector<8x8xf32>
    %461 = vector.extract_strided_slice %424 {offsets = [0, 80], sizes = [8, 8], strides = [1, 1]} : vector<8x96xf32> to vector<8x8xf32>
    "tpu.trace_start"() <{level = 10 : i32, message = "qd,kd->qk"}> : () -> ()
    %cst_164 = arith.constant dense<0.000000e+00> : vector<8x8xf32>
    %462 = tpu.matmul %459, %460, %cst_164 {dimension_numbers = #tpu.dot_dimension_numbers<[1], [1], [0], [0], [0, 0, 1, 0], [], []>} : vector<8x8xf32>, vector<8x8xf32>, vector<8x8xf32> -> vector<8x8xf32>
    "tpu.trace_stop"() : () -> ()
    %463 = vector.broadcast %253 : vector<1x8xf32> to vector<8x8xf32>
    %464 = arith.addf %462, %463 : vector<8x8xf32>
    %cst_165 = arith.constant dense<0xFF800000> : vector<8xf32>
    %465 = vector.multi_reduction <maximumf>, %464, %cst_165 [1] : vector<8x8xf32> to vector<8xf32>
    %466 = vector.shape_cast %465 : vector<8xf32> to vector<8x1xf32>
    %467 = vector.broadcast %466 : vector<8x1xf32> to vector<8x8xf32>
    %468 = arith.subf %464, %467 : vector<8x8xf32>
    %469 = math.exp %468 : vector<8x8xf32>
    %cst_166 = arith.constant dense<0.000000e+00> : vector<8xf32>
    %470 = vector.multi_reduction <add>, %469, %cst_166 [1] : vector<8x8xf32> to vector<8xf32>
    %471 = vector.shape_cast %470 : vector<8xf32> to vector<8x1xf32>
    %472 = tpu.reciprocal %471 {approx = true} : vector<8x1xf32> -> vector<8x1xf32>
    %473 = vector.broadcast %472 : vector<8x1xf32> to vector<8x8xf32>
    %474 = arith.mulf %469, %473 : vector<8x8xf32>
    %cst_167 = arith.constant dense<0.000000e+00> : vector<8x8xf32>
    %475 = tpu.matmul %474, %461, %cst_167 {dimension_numbers = #tpu.dot_dimension_numbers<[1], [0], [0], [1], [0, 0, 1, 1], [], []>} : vector<8x8xf32>, vector<8x8xf32>, vector<8x8xf32> -> vector<8x8xf32>
    %476 = vector.extract_strided_slice %424 {offsets = [0, 24], sizes = [8, 8], strides = [1, 1]} : vector<8x96xf32> to vector<8x8xf32>
    %477 = vector.extract_strided_slice %424 {offsets = [0, 56], sizes = [8, 8], strides = [1, 1]} : vector<8x96xf32> to vector<8x8xf32>
    %478 = vector.extract_strided_slice %424 {offsets = [0, 88], sizes = [8, 8], strides = [1, 1]} : vector<8x96xf32> to vector<8x8xf32>
    "tpu.trace_start"() <{level = 10 : i32, message = "qd,kd->qk"}> : () -> ()
    %cst_168 = arith.constant dense<0.000000e+00> : vector<8x8xf32>
    %479 = tpu.matmul %476, %477, %cst_168 {dimension_numbers = #tpu.dot_dimension_numbers<[1], [1], [0], [0], [0, 0, 1, 0], [], []>} : vector<8x8xf32>, vector<8x8xf32>, vector<8x8xf32> -> vector<8x8xf32>
    "tpu.trace_stop"() : () -> ()
    %480 = vector.broadcast %253 : vector<1x8xf32> to vector<8x8xf32>
    %481 = arith.addf %479, %480 : vector<8x8xf32>
    %cst_169 = arith.constant dense<0xFF800000> : vector<8xf32>
    %482 = vector.multi_reduction <maximumf>, %481, %cst_169 [1] : vector<8x8xf32> to vector<8xf32>
    %483 = vector.shape_cast %482 : vector<8xf32> to vector<8x1xf32>
    %484 = vector.broadcast %483 : vector<8x1xf32> to vector<8x8xf32>
    %485 = arith.subf %481, %484 : vector<8x8xf32>
    %486 = math.exp %485 : vector<8x8xf32>
    %cst_170 = arith.constant dense<0.000000e+00> : vector<8xf32>
    %487 = vector.multi_reduction <add>, %486, %cst_170 [1] : vector<8x8xf32> to vector<8xf32>
    %488 = vector.shape_cast %487 : vector<8xf32> to vector<8x1xf32>
    %489 = tpu.reciprocal %488 {approx = true} : vector<8x1xf32> -> vector<8x1xf32>
    %490 = vector.broadcast %489 : vector<8x1xf32> to vector<8x8xf32>
    %491 = arith.mulf %486, %490 : vector<8x8xf32>
    %cst_171 = arith.constant dense<0.000000e+00> : vector<8x8xf32>
    %492 = tpu.matmul %491, %478, %cst_171 {dimension_numbers = #tpu.dot_dimension_numbers<[1], [0], [0], [1], [0, 0, 1, 1], [], []>} : vector<8x8xf32>, vector<8x8xf32>, vector<8x8xf32> -> vector<8x8xf32>
    %493 = tpu.concatenate %441, %458, %475, %492 in 1 : vector<8x8xf32>, vector<8x8xf32>, vector<8x8xf32>, vector<8x8xf32> -> vector<8x32xf32>
    %c1_172 = arith.constant 1 : index
    %c0_173 = arith.constant 0 : index
    %c0_174 = arith.constant 0 : index
    %494 = vector.load %arg11[%c1_172, %c0_173, %c0_174] : memref<2x32x32xf32, #tpu.memory_space<vmem>>, vector<1x32x32xf32>
    %495 = vector.shape_cast %494 : vector<1x32x32xf32> to vector<32x32xf32>
    %cst_175 = arith.constant dense<0.000000e+00> : vector<8x32xf32>
    %496 = tpu.matmul %493, %495, %cst_175 {dimension_numbers = #tpu.dot_dimension_numbers<[1], [0], [0], [1], [0, 0, 1, 1], [], []>} : vector<8x32xf32>, vector<32x32xf32>, vector<8x32xf32> -> vector<8x32xf32>
    %c1_176 = arith.constant 1 : index
    %c0_177 = arith.constant 0 : index
    %c0_178 = arith.constant 0 : index
    %497 = vector.load %arg12[%c1_176, %c0_177, %c0_178] : memref<2x1x32xf32, #tpu.memory_space<vmem>>, vector<1x1x32xf32>
    %498 = vector.shape_cast %497 : vector<1x1x32xf32> to vector<1x32xf32>
    %499 = vector.broadcast %498 : vector<1x32xf32> to vector<8x32xf32>
    %500 = arith.addf %496, %499 : vector<8x32xf32>
    %501 = arith.addf %417, %500 : vector<8x32xf32>
    %c1_179 = arith.constant 1 : index
    %c0_180 = arith.constant 0 : index
    %c0_181 = arith.constant 0 : index
    %502 = vector.load %arg13[%c1_179, %c0_180, %c0_181] : memref<2x1x32xf32, #tpu.memory_space<vmem>>, vector<1x1x32xf32>
    %503 = vector.shape_cast %502 : vector<1x1x32xf32> to vector<1x32xf32>
    %c1_182 = arith.constant 1 : index
    %c0_183 = arith.constant 0 : index
    %c0_184 = arith.constant 0 : index
    %504 = vector.load %arg14[%c1_182, %c0_183, %c0_184] : memref<2x1x32xf32, #tpu.memory_space<vmem>>, vector<1x1x32xf32>
    %505 = vector.shape_cast %504 : vector<1x1x32xf32> to vector<1x32xf32>
    %cst_185 = arith.constant dense<0.000000e+00> : vector<8xf32>
    %506 = vector.multi_reduction <add>, %501, %cst_185 [1] : vector<8x32xf32> to vector<8xf32>
    %507 = vector.shape_cast %506 : vector<8xf32> to vector<8x1xf32>
    %cst_186 = arith.constant 3.200000e+01 : f32
    %508 = vector.broadcast %cst_186 : f32 to vector<8x1xf32>
    %509 = arith.divf %507, %508 : vector<8x1xf32>
    %510 = vector.broadcast %509 : vector<8x1xf32> to vector<8x32xf32>
    %511 = arith.subf %501, %510 : vector<8x32xf32>
    %512 = arith.mulf %511, %511 : vector<8x32xf32>
    %cst_187 = arith.constant dense<0.000000e+00> : vector<8xf32>
    %513 = vector.multi_reduction <add>, %512, %cst_187 [1] : vector<8x32xf32> to vector<8xf32>
    %514 = vector.shape_cast %513 : vector<8xf32> to vector<8x1xf32>
    %cst_188 = arith.constant 3.200000e+01 : f32
    %515 = vector.broadcast %cst_188 : f32 to vector<8x1xf32>
    %516 = arith.divf %514, %515 : vector<8x1xf32>
    %517 = vector.broadcast %509 : vector<8x1xf32> to vector<8x32xf32>
    %518 = arith.subf %501, %517 : vector<8x32xf32>
    %cst_189 = arith.constant 9.99999996E-13 : f32
    %519 = vector.broadcast %cst_189 : f32 to vector<8x1xf32>
    %520 = arith.addf %516, %519 : vector<8x1xf32>
    %521 = math.rsqrt %520 : vector<8x1xf32>
    %522 = vector.broadcast %521 : vector<8x1xf32> to vector<8x32xf32>
    %523 = arith.mulf %518, %522 : vector<8x32xf32>
    %524 = vector.broadcast %503 : vector<1x32xf32> to vector<8x32xf32>
    %525 = arith.mulf %523, %524 : vector<8x32xf32>
    %526 = vector.broadcast %505 : vector<1x32xf32> to vector<8x32xf32>
    %527 = arith.addf %525, %526 : vector<8x32xf32>
    %c1_190 = arith.constant 1 : index
    %c0_191 = arith.constant 0 : index
    %c0_192 = arith.constant 0 : index
    %528 = vector.load %arg15[%c1_190, %c0_191, %c0_192] : memref<2x32x64xf32, #tpu.memory_space<vmem>>, vector<1x32x64xf32>
    %529 = vector.shape_cast %528 : vector<1x32x64xf32> to vector<32x64xf32>
    %cst_193 = arith.constant dense<0.000000e+00> : vector<8x64xf32>
    %530 = tpu.matmul %527, %529, %cst_193 {dimension_numbers = #tpu.dot_dimension_numbers<[1], [0], [0], [1], [0, 0, 1, 1], [], []>} : vector<8x32xf32>, vector<32x64xf32>, vector<8x64xf32> -> vector<8x64xf32>
    %c1_194 = arith.constant 1 : index
    %c0_195 = arith.constant 0 : index
    %c0_196 = arith.constant 0 : index
    %531 = vector.load %arg16[%c1_194, %c0_195, %c0_196] : memref<2x1x64xf32, #tpu.memory_space<vmem>>, vector<1x1x64xf32>
    %532 = vector.shape_cast %531 : vector<1x1x64xf32> to vector<1x64xf32>
    %533 = vector.broadcast %532 : vector<1x64xf32> to vector<8x64xf32>
    %534 = arith.addf %530, %533 : vector<8x64xf32>
    %535 = arith.mulf %534, %534 : vector<8x64xf32>
    %536 = arith.mulf %534, %535 : vector<8x64xf32>
    %cst_197 = arith.constant 4.471500e-02 : f32
    %537 = vector.broadcast %cst_197 : f32 to vector<8x64xf32>
    %538 = arith.mulf %537, %536 : vector<8x64xf32>
    %539 = arith.addf %534, %538 : vector<8x64xf32>
    %cst_198 = arith.constant 0.797884583 : f32
    %540 = vector.broadcast %cst_198 : f32 to vector<8x64xf32>
    %541 = arith.mulf %540, %539 : vector<8x64xf32>
    %542 = math.tanh %541 : vector<8x64xf32>
    %cst_199 = arith.constant 1.000000e+00 : f32
    %543 = vector.broadcast %cst_199 : f32 to vector<8x64xf32>
    %544 = arith.addf %543, %542 : vector<8x64xf32>
    %cst_200 = arith.constant 5.000000e-01 : f32
    %545 = vector.broadcast %cst_200 : f32 to vector<8x64xf32>
    %546 = arith.mulf %545, %544 : vector<8x64xf32>
    %547 = arith.mulf %534, %546 : vector<8x64xf32>
    %c1_201 = arith.constant 1 : index
    %c0_202 = arith.constant 0 : index
    %c0_203 = arith.constant 0 : index
    %548 = vector.load %arg17[%c1_201, %c0_202, %c0_203] : memref<2x64x32xf32, #tpu.memory_space<vmem>>, vector<1x64x32xf32>
    %549 = vector.shape_cast %548 : vector<1x64x32xf32> to vector<64x32xf32>
    %cst_204 = arith.constant dense<0.000000e+00> : vector<8x32xf32>
    %550 = tpu.matmul %547, %549, %cst_204 {dimension_numbers = #tpu.dot_dimension_numbers<[1], [0], [0], [1], [0, 0, 1, 1], [], []>} : vector<8x64xf32>, vector<64x32xf32>, vector<8x32xf32> -> vector<8x32xf32>
    %c1_205 = arith.constant 1 : index
    %c0_206 = arith.constant 0 : index
    %c0_207 = arith.constant 0 : index
    %551 = vector.load %arg18[%c1_205, %c0_206, %c0_207] : memref<2x1x32xf32, #tpu.memory_space<vmem>>, vector<1x1x32xf32>
    %552 = vector.shape_cast %551 : vector<1x1x32xf32> to vector<1x32xf32>
    %553 = vector.broadcast %552 : vector<1x32xf32> to vector<8x32xf32>
    %554 = arith.addf %550, %553 : vector<8x32xf32>
    %555 = arith.addf %527, %554 : vector<8x32xf32>
    %c1_208 = arith.constant 1 : index
    %c0_209 = arith.constant 0 : index
    %c0_210 = arith.constant 0 : index
    %556 = vector.load %arg19[%c1_208, %c0_209, %c0_210] : memref<2x1x32xf32, #tpu.memory_space<vmem>>, vector<1x1x32xf32>
    %557 = vector.shape_cast %556 : vector<1x1x32xf32> to vector<1x32xf32>
    %c1_211 = arith.constant 1 : index
    %c0_212 = arith.constant 0 : index
    %c0_213 = arith.constant 0 : index
    %558 = vector.load %arg20[%c1_211, %c0_212, %c0_213] : memref<2x1x32xf32, #tpu.memory_space<vmem>>, vector<1x1x32xf32>
    %559 = vector.shape_cast %558 : vector<1x1x32xf32> to vector<1x32xf32>
    %cst_214 = arith.constant dense<0.000000e+00> : vector<8xf32>
    %560 = vector.multi_reduction <add>, %555, %cst_214 [1] : vector<8x32xf32> to vector<8xf32>
    %561 = vector.shape_cast %560 : vector<8xf32> to vector<8x1xf32>
    %cst_215 = arith.constant 3.200000e+01 : f32
    %562 = vector.broadcast %cst_215 : f32 to vector<8x1xf32>
    %563 = arith.divf %561, %562 : vector<8x1xf32>
    %564 = vector.broadcast %563 : vector<8x1xf32> to vector<8x32xf32>
    %565 = arith.subf %555, %564 : vector<8x32xf32>
    %566 = arith.mulf %565, %565 : vector<8x32xf32>
    %cst_216 = arith.constant dense<0.000000e+00> : vector<8xf32>
    %567 = vector.multi_reduction <add>, %566, %cst_216 [1] : vector<8x32xf32> to vector<8xf32>
    %568 = vector.shape_cast %567 : vector<8xf32> to vector<8x1xf32>
    %cst_217 = arith.constant 3.200000e+01 : f32
    %569 = vector.broadcast %cst_217 : f32 to vector<8x1xf32>
    %570 = arith.divf %568, %569 : vector<8x1xf32>
    %571 = vector.broadcast %563 : vector<8x1xf32> to vector<8x32xf32>
    %572 = arith.subf %555, %571 : vector<8x32xf32>
    %cst_218 = arith.constant 9.99999996E-13 : f32
    %573 = vector.broadcast %cst_218 : f32 to vector<8x1xf32>
    %574 = arith.addf %570, %573 : vector<8x1xf32>
    %575 = math.rsqrt %574 : vector<8x1xf32>
    %576 = vector.broadcast %575 : vector<8x1xf32> to vector<8x32xf32>
    %577 = arith.mulf %572, %576 : vector<8x32xf32>
    %578 = vector.broadcast %557 : vector<1x32xf32> to vector<8x32xf32>
    %579 = arith.mulf %577, %578 : vector<8x32xf32>
    %580 = vector.broadcast %559 : vector<1x32xf32> to vector<8x32xf32>
    %581 = arith.addf %579, %580 : vector<8x32xf32>
    %582 = vector.extract_strided_slice %581 {offsets = [0, 0], sizes = [1, 32], strides = [1, 1]} : vector<8x32xf32> to vector<1x32xf32>
    %c0_219 = arith.constant 0 : index
    %c0_220 = arith.constant 0 : index
    %583 = vector.load %arg21[%c0_219, %c0_220] : memref<32x128xf32, #tpu.memory_space<vmem>>, vector<32x128xf32>
    %cst_221 = arith.constant dense<0.000000e+00> : vector<1x128xf32>
    %584 = tpu.matmul %582, %583, %cst_221 {dimension_numbers = #tpu.dot_dimension_numbers<[1], [0], [0], [1], [0, 0, 1, 1], [], []>} : vector<1x32xf32>, vector<32x128xf32>, vector<1x128xf32> -> vector<1x128xf32>
    %c0_222 = arith.constant 0 : index
    %c0_223 = arith.constant 0 : index
    %585 = vector.load %arg22[%c0_222, %c0_223] : memref<1x128xf32, #tpu.memory_space<vmem>>, vector<1x128xf32>
    %586 = arith.addf %584, %585 : vector<1x128xf32>
    %587 = vector.shape_cast %586 : vector<1x128xf32> to vector<1x1x128xf32>
    %c0_224 = arith.constant 0 : index
    %c0_225 = arith.constant 0 : index
    %c0_226 = arith.constant 0 : index
    %588 = vector.load %arg23[%c0_224, %c0_225, %c0_226] : memref<1x1x128xf32, #tpu.memory_space<vmem>>, vector<1x1x128xf32>
    tpu.vector_store %arg23[%c0_224, %c0_225, %c0_226], %587 {strides = array<i32>} : memref<1x1x128xf32, #tpu.memory_space<vmem>>, vector<1x1x128xf32>,
    return
  }
  func.func @transform_0(%arg0: i32, %arg1: memref<2x8xi32, #tpu.memory_space<smem>>, %arg2: memref<2x8xi32, #tpu.memory_space<smem>>, %arg3: memref<2x8xi32, #tpu.memory_space<smem>>) -> (i32, i32) {
    %c0_i32 = arith.constant 0 : i32
    %c0_i32_0 = arith.constant 0 : i32
    %c0_i32_1 = arith.constant 0 : i32
    return %c0_i32, %c0_i32_0 : i32, i32
  }
  func.func @transform_1(%arg0: i32, %arg1: memref<2x8xi32, #tpu.memory_space<smem>>, %arg2: memref<2x8xi32, #tpu.memory_space<smem>>, %arg3: memref<2x8xi32, #tpu.memory_space<smem>>) -> (i32, i32) {
    %c0_i32 = arith.constant 0 : i32
    %c0_i32_0 = arith.constant 0 : i32
    %c0_i32_1 = arith.constant 0 : i32
    return %c0_i32, %c0_i32_0 : i32, i32
  }
  func.func @transform_2(%arg0: i32, %arg1: memref<2x8xi32, #tpu.memory_space<smem>>, %arg2: memref<2x8xi32, #tpu.memory_space<smem>>, %arg3: memref<2x8xi32, #tpu.memory_space<smem>>) -> (i32, i32) {
    %c0_i32 = arith.constant 0 : i32
    %c0_i32_0 = arith.constant 0 : i32
    %c0_i32_1 = arith.constant 0 : i32
    return %c0_i32, %c0_i32_0 : i32, i32
  }
  func.func @transform_3(%arg0: i32, %arg1: memref<2x8xi32, #tpu.memory_space<smem>>, %arg2: memref<2x8xi32, #tpu.memory_space<smem>>, %arg3: memref<2x8xi32, #tpu.memory_space<smem>>) -> (i32, i32) {
    %c0_i32 = arith.constant 0 : i32
    %c0_i32_0 = arith.constant 0 : i32
    %c0_i32_1 = arith.constant 0 : i32
    return %c0_i32, %c0_i32_0 : i32, i32
  }
  func.func @transform_4(%arg0: i32, %arg1: memref<2x8xi32, #tpu.memory_space<smem>>, %arg2: memref<2x8xi32, #tpu.memory_space<smem>>, %arg3: memref<2x8xi32, #tpu.memory_space<smem>>) -> (i32, i32) {
    %c0_i32 = arith.constant 0 : i32
    %c0_i32_0 = arith.constant 0 : i32
    %c0_i32_1 = arith.constant 0 : i32
    return %c0_i32, %c0_i32_0 : i32, i32
  }
  func.func @transform_5(%arg0: i32, %arg1: memref<2x8xi32, #tpu.memory_space<smem>>, %arg2: memref<2x8xi32, #tpu.memory_space<smem>>, %arg3: memref<2x8xi32, #tpu.memory_space<smem>>) -> (i32, i32, i32) {
    %c0_i32 = arith.constant 0 : i32
    %c0_i32_0 = arith.constant 0 : i32
    %c0_i32_1 = arith.constant 0 : i32
    %c0_i32_2 = arith.constant 0 : i32
    return %c0_i32, %c0_i32_0, %c0_i32_1 : i32, i32, i32
  }
  func.func @transform_6(%arg0: i32, %arg1: memref<2x8xi32, #tpu.memory_space<smem>>, %arg2: memref<2x8xi32, #tpu.memory_space<smem>>, %arg3: memref<2x8xi32, #tpu.memory_space<smem>>) -> (i32, i32, i32) {
    %c0_i32 = arith.constant 0 : i32
    %c0_i32_0 = arith.constant 0 : i32
    %c0_i32_1 = arith.constant 0 : i32
    %c0_i32_2 = arith.constant 0 : i32
    return %c0_i32, %c0_i32_0, %c0_i32_1 : i32, i32, i32
  }
  func.func @transform_7(%arg0: i32, %arg1: memref<2x8xi32, #tpu.memory_space<smem>>, %arg2: memref<2x8xi32, #tpu.memory_space<smem>>, %arg3: memref<2x8xi32, #tpu.memory_space<smem>>) -> (i32, i32, i32) {
    %c0_i32 = arith.constant 0 : i32
    %c0_i32_0 = arith.constant 0 : i32
    %c0_i32_1 = arith.constant 0 : i32
    %c0_i32_2 = arith.constant 0 : i32
    return %c0_i32, %c0_i32_0, %c0_i32_1 : i32, i32, i32
  }
  func.func @transform_8(%arg0: i32, %arg1: memref<2x8xi32, #tpu.memory_space<smem>>, %arg2: memref<2x8xi32, #tpu.memory_space<smem>>, %arg3: memref<2x8xi32, #tpu.memory_space<smem>>) -> (i32, i32, i32) {
    %c0_i32 = arith.constant 0 : i32
    %c0_i32_0 = arith.constant 0 : i32
    %c0_i32_1 = arith.constant 0 : i32
    %c0_i32_2 = arith.constant 0 : i32
    return %c0_i32, %c0_i32_0, %c0_i32_1 : i32, i32, i32
  }
  func.func @transform_9(%arg0: i32, %arg1: memref<2x8xi32, #tpu.memory_space<smem>>, %arg2: memref<2x8xi32, #tpu.memory_space<smem>>, %arg3: memref<2x8xi32, #tpu.memory_space<smem>>) -> (i32, i32, i32) {
    %c0_i32 = arith.constant 0 : i32
    %c0_i32_0 = arith.constant 0 : i32
    %c0_i32_1 = arith.constant 0 : i32
    %c0_i32_2 = arith.constant 0 : i32
    return %c0_i32, %c0_i32_0, %c0_i32_1 : i32, i32, i32
  }
  func.func @transform_10(%arg0: i32, %arg1: memref<2x8xi32, #tpu.memory_space<smem>>, %arg2: memref<2x8xi32, #tpu.memory_space<smem>>, %arg3: memref<2x8xi32, #tpu.memory_space<smem>>) -> (i32, i32, i32) {
    %c0_i32 = arith.constant 0 : i32
    %c0_i32_0 = arith.constant 0 : i32
    %c0_i32_1 = arith.constant 0 : i32
    %c0_i32_2 = arith.constant 0 : i32
    return %c0_i32, %c0_i32_0, %c0_i32_1 : i32, i32, i32
  }
  func.func @transform_11(%arg0: i32, %arg1: memref<2x8xi32, #tpu.memory_space<smem>>, %arg2: memref<2x8xi32, #tpu.memory_space<smem>>, %arg3: memref<2x8xi32, #tpu.memory_space<smem>>) -> (i32, i32, i32) {
    %c0_i32 = arith.constant 0 : i32
    %c0_i32_0 = arith.constant 0 : i32
    %c0_i32_1 = arith.constant 0 : i32
    %c0_i32_2 = arith.constant 0 : i32
    return %c0_i32, %c0_i32_0, %c0_i32_1 : i32, i32, i32
  }
  func.func @transform_12(%arg0: i32, %arg1: memref<2x8xi32, #tpu.memory_space<smem>>, %arg2: memref<2x8xi32, #tpu.memory_space<smem>>, %arg3: memref<2x8xi32, #tpu.memory_space<smem>>) -> (i32, i32, i32) {
    %c0_i32 = arith.constant 0 : i32
    %c0_i32_0 = arith.constant 0 : i32
    %c0_i32_1 = arith.constant 0 : i32
    %c0_i32_2 = arith.constant 0 : i32
    return %c0_i32, %c0_i32_0, %c0_i32_1 : i32, i32, i32
  }
  func.func @transform_13(%arg0: i32, %arg1: memref<2x8xi32, #tpu.memory_space<smem>>, %arg2: memref<2x8xi32, #tpu.memory_space<smem>>, %arg3: memref<2x8xi32, #tpu.memory_space<smem>>) -> (i32, i32, i32) {
    %c0_i32 = arith.constant 0 : i32
    %c0_i32_0 = arith.constant 0 : i32
    %c0_i32_1 = arith.constant 0 : i32
    %c0_i32_2 = arith.constant 0 : i32
    return %c0_i32, %c0_i32_0, %c0_i32_1 : i32, i32, i32
  }
  func.func @transform_14(%arg0: i32, %arg1: memref<2x8xi32, #tpu.memory_space<smem>>, %arg2: memref<2x8xi32, #tpu.memory_space<smem>>, %arg3: memref<2x8xi32, #tpu.memory_space<smem>>) -> (i32, i32, i32) {
    %c0_i32 = arith.constant 0 : i32
    %c0_i32_0 = arith.constant 0 : i32
    %c0_i32_1 = arith.constant 0 : i32
    %c0_i32_2 = arith.constant 0 : i32
    return %c0_i32, %c0_i32_0, %c0_i32_1 : i32, i32, i32
  }
  func.func @transform_15(%arg0: i32, %arg1: memref<2x8xi32, #tpu.memory_space<smem>>, %arg2: memref<2x8xi32, #tpu.memory_space<smem>>, %arg3: memref<2x8xi32, #tpu.memory_space<smem>>) -> (i32, i32, i32) {
    %c0_i32 = arith.constant 0 : i32
    %c0_i32_0 = arith.constant 0 : i32
    %c0_i32_1 = arith.constant 0 : i32
    %c0_i32_2 = arith.constant 0 : i32
    return %c0_i32, %c0_i32_0, %c0_i32_1 : i32, i32, i32
  }
  func.func @transform_16(%arg0: i32, %arg1: memref<2x8xi32, #tpu.memory_space<smem>>, %arg2: memref<2x8xi32, #tpu.memory_space<smem>>, %arg3: memref<2x8xi32, #tpu.memory_space<smem>>) -> (i32, i32, i32) {
    %c0_i32 = arith.constant 0 : i32
    %c0_i32_0 = arith.constant 0 : i32
    %c0_i32_1 = arith.constant 0 : i32
    %c0_i32_2 = arith.constant 0 : i32
    return %c0_i32, %c0_i32_0, %c0_i32_1 : i32, i32, i32
  }
  func.func @transform_17(%arg0: i32, %arg1: memref<2x8xi32, #tpu.memory_space<smem>>, %arg2: memref<2x8xi32, #tpu.memory_space<smem>>, %arg3: memref<2x8xi32, #tpu.memory_space<smem>>) -> (i32, i32) {
    %c0_i32 = arith.constant 0 : i32
    %c0_i32_0 = arith.constant 0 : i32
    %c0_i32_1 = arith.constant 0 : i32
    return %c0_i32, %c0_i32_0 : i32, i32
  }
  func.func @transform_18(%arg0: i32, %arg1: memref<2x8xi32, #tpu.memory_space<smem>>, %arg2: memref<2x8xi32, #tpu.memory_space<smem>>, %arg3: memref<2x8xi32, #tpu.memory_space<smem>>) -> (i32, i32) {
    %c0_i32 = arith.constant 0 : i32
    %c0_i32_0 = arith.constant 0 : i32
    %c0_i32_1 = arith.constant 0 : i32
    return %c0_i32, %c0_i32_0 : i32, i32
  }
  func.func @transform_19(%arg0: i32, %arg1: memref<2x8xi32, #tpu.memory_space<smem>>, %arg2: memref<2x8xi32, #tpu.memory_space<smem>>, %arg3: memref<2x8xi32, #tpu.memory_space<smem>>) -> (i32, i32, i32) {
    %c0_i32 = arith.constant 0 : i32
    %c0_i32_0 = arith.constant 0 : i32
    %c0_i32_1 = arith.constant 0 : i32
    return %arg0, %c0_i32, %c0_i32_0 : i32, i32, i32
  }
}

</mosaic_0001>

<llo_original>
// kernel: tpu_custom_call.1
$region0: #{tpu_custom_call.1}
  #allocation0 [shape = 'u32[]', space=smem, size = 0x4, offset = 0x4, fixed_abs, tag = 'smem constant byte address 0x4 - core index']
  #allocation1 [shape = 'u32[72,128]{1,0:T(1,128)}', space=vmem, size = 0x9000, scoped, tag = 'internal scratch']
  #allocation2 [shape = 's32[1]{0}', space=sflag, size = 0x4, scoped, tag = 'scoped memory for tpu_custom_call.1']
  #allocation3 [shape = 'u8[1024]{0}', space=smem, size = 0x400, scoped, tag = 'prefetched SMEM operand 0']
  #allocation4 [shape = 'u8[1024]{0}', space=smem, size = 0x400, scoped, tag = 'prefetched SMEM operand 1']
  #allocation5 [shape = 'u8[1024]{0}', space=smem, size = 0x400, scoped, tag = 'prefetched SMEM operand 2']
  %s0 = inlined_call_operand.vmem [shape: s32[2,8], index: 0, kind: input, shape index: {}]
  %s1 = inlined_call_operand.vmem [shape: s32[2,8], index: 1, kind: input, shape index: {}]
  %s2 = inlined_call_operand.vmem [shape: s32[2,8], index: 2, kind: input, shape index: {}]
  %s3 = inlined_call_operand.vmem [shape: f32[100,32], index: 3, kind: input, shape index: {}]
  %s4 = inlined_call_operand.vmem [shape: f32[8,32], index: 4, kind: input, shape index: {}]
  %s5 = inlined_call_operand.vmem [shape: f32[2,32], index: 5, kind: input, shape index: {}]
  %s6 = inlined_call_operand.vmem [shape: f32[1,32], index: 6, kind: input, shape index: {}]
  %s7 = inlined_call_operand.vmem [shape: f32[1,32], index: 7, kind: input, shape index: {}]
  %s8 = inlined_call_operand.vmem [shape: f32[2,32,96], index: 8, kind: input, shape index: {}]
  %s9 = inlined_call_operand.vmem [shape: f32[2,1,96], index: 9, kind: input, shape index: {}]
  %s10 = inlined_call_operand.vmem [shape: f32[2,32,32], index: 10, kind: input, shape index: {}]
  %s11 = inlined_call_operand.vmem [shape: f32[2,1,32], index: 11, kind: input, shape index: {}]
  %s12 = inlined_call_operand.vmem [shape: f32[2,1,32], index: 12, kind: input, shape index: {}]
  %s13 = inlined_call_operand.vmem [shape: f32[2,1,32], index: 13, kind: input, shape index: {}]
  %s14 = inlined_call_operand.vmem [shape: f32[2,32,64], index: 14, kind: input, shape index: {}]
  %s15 = inlined_call_operand.vmem [shape: f32[2,1,64], index: 15, kind: input, shape index: {}]
  %s16 = inlined_call_operand.vmem [shape: f32[2,64,32], index: 16, kind: input, shape index: {}]
  %s17 = inlined_call_operand.vmem [shape: f32[2,1,32], index: 17, kind: input, shape index: {}]
  %s18 = inlined_call_operand.vmem [shape: f32[2,1,32], index: 18, kind: input, shape index: {}]
  %s19 = inlined_call_operand.vmem [shape: f32[2,1,32], index: 19, kind: input, shape index: {}]
  %s20 = inlined_call_operand.vmem [shape: f32[32,128], index: 20, kind: input, shape index: {}]
  %s21 = inlined_call_operand.vmem [shape: f32[1,128], index: 21, kind: input, shape index: {}]
  %s22 = inlined_call_operand.hbm [shape: f32[2,1,128], index: 22, kind: output, shape index: {}]
  %s23 = sld [smem:[#allocation0]]
  $region109: #{tpu_custom_call.1} parent=0
    _
  %s25 = ssub.s32 1, %s23
  %s26 = scalar_select 0, %s25, %s23
  %s28 = sshll.u32 %s0, 4
  %s29 = int_to_ptr.vmem [resolvable:$true] %s28
  %31 = dma.vmem_to_smem %s29, 32, [#allocation3], [#allocation2]
  %s33 = sshll.u32 %s1, 4
  %s34 = int_to_ptr.vmem [resolvable:$true] %s33
  %36 = dma.vmem_to_smem %s34, 32, [#allocation4], [#allocation2]
  %s38 = sshll.u32 %s2, 4
  %s39 = int_to_ptr.vmem [resolvable:$true] %s38
  %41 = dma.vmem_to_smem %s39, 32, [#allocation5], [#allocation2]
  %43 = dma.done [#allocation2], 96
  %44 = sfence
  $region1: #{tpu_custom_call.1} parent=0
    #allocation6 [shape = 'u8[1024]{0}', space=vmem, size = 0x400, scoped, tag = 'output window, operand 0']
    #allocation7 [shape = 's32[2]{0}', space=sflag, size = 0x8, scoped, tag = 'scoped memory for tpu_custom_call.1']
    %45 = vsyncpa [#allocation7], 0
    %s46 = scalar_lea.sflag [#allocation7], 1
    %47 = vsyncpa %s46, 0
    loop: start=0, step=1, limit=4
    $region2: #{tpu_custom_call.1} parent=1 // loop_pre_header
      _
    $region3: #{tpu_custom_call.1} parent=1 // loop_header
      %s49 = sphi 0, %s53
      %p50 = scmp.ge.s32.totalorder %s49, 4
      %s57 = sphi 0, %s57
      %s59 = sphi 0, %s57
      %s60 = sphi 0, %s59
      %s74 = sphi 0, %s60
      %s78 = sphi 0, %s78
      %s80 = sphi 0, %s78
      %s81 = sphi 0, %s80
      %s95 = sphi 0, %s81
      %s99 = sphi 0, %s99
      %s101 = sphi 0, %s99
      %s102 = sphi 0, %s101
      %s116 = sphi 0, %s102
      %s120 = sphi 0, %s120
      %s122 = sphi 0, %s120
      %s123 = sphi 0, %s122
      %s137 = sphi 0, %s123
      %s141 = sphi 0, %s141
      %s143 = sphi 0, %s141
      %s144 = sphi 0, %s143
      %s158 = sphi 0, %s144
      %s162 = sphi 0, %s162
      %s164 = sphi 0, %s162
      %s165 = sphi 0, %s164
      %s179 = sphi 0, %s165
      %s183 = sphi 0, %s183
      %s185 = sphi 0, %s183
      %s186 = sphi 0, %s185
      %s200 = sphi 0, %s186
      %s204 = sphi 0, %s204
      %s206 = sphi 0, %s204
      %s207 = sphi 0, %s206
      %s221 = sphi 0, %s207
      %s225 = sphi 0, %s225
      %s227 = sphi 0, %s225
      %s228 = sphi 0, %s227
      %s242 = sphi 0, %s228
      %s246 = sphi 0, %s246
      %s248 = sphi 0, %s246
      %s249 = sphi 0, %s248
      %s263 = sphi 0, %s249
      %s267 = sphi 0, %s267
      %s269 = sphi 0, %s267
      %s270 = sphi 0, %s269
      %s284 = sphi 0, %s270
      %s288 = sphi 0, %s288
      %s290 = sphi 0, %s288
      %s291 = sphi 0, %s290
      %s305 = sphi 0, %s291
      %s309 = sphi 0, %s309
      %s311 = sphi 0, %s309
      %s312 = sphi 0, %s311
      %s326 = sphi 0, %s312
      %s330 = sphi 0, %s330
      %s332 = sphi 0, %s330
      %s333 = sphi 0, %s332
      %s347 = sphi 0, %s333
      %s351 = sphi 0, %s351
      %s353 = sphi 0, %s351
      %s354 = sphi 0, %s353
      %s368 = sphi 0, %s354
      %s372 = sphi 0, %s372
      %s374 = sphi 0, %s372
      %s375 = sphi 0, %s374
      %s389 = sphi 0, %s375
      %s393 = sphi 0, %s393
      %s395 = sphi 0, %s393
      %s396 = sphi 0, %s395
      %s410 = sphi 0, %s396
      %s414 = sphi 0, %s414
      %s416 = sphi 0, %s414
      %s417 = sphi 0, %s416
      %s431 = sphi 0, %s417
      %s435 = sphi 0, %s435
      %s437 = sphi 0, %s435
      %s438 = sphi 0, %s437
      %s452 = sphi 0, %s438
      %s458 = sphi 0, %s460
      %s461 = sphi 0, %s458
      %s462 = sphi 0, %s461
      %s478 = sphi 0, %s462
    $region4: #{tpu_custom_call.1} parent=1 // loop_header_branch
      %52 = sbr.rel (%p50) target = $region8
    $region5: #{tpu_custom_call.1} parent=1 // loop_body
      %s54 = ssub.s32 %s49, 1
      %s55 = ssub.s32 %s49, 2
      %s56 = sadd.s32 %s49, 1
      %s58 = sadd.s32 %s57, 1
      %p61 = scmp.eq.s32.totalorder %s49, 1
      %p62 = scmp.ne.s32.totalorder %s57, %s59
      %p63 = scmp.eq.s32.totalorder %s49, 0
      %p64 = por %p62, %p63
      %p65 = scmp.ne.s32.totalorder %s57, %s59
      %p66 = scmp.eq.s32.totalorder %s54, 1
      %p67 = por %p65, %p66
      %p68 = scmp.ne.s32.totalorder %s59, %s60
      %p69 = scmp.eq.s32.totalorder %s54, 0
      %p70 = por %p68, %p69
      %p71 = scmp.ne.s32.totalorder %s59, %s60
      %p72 = scmp.eq.s32.totalorder %s55, 1
      %p73 = por %p71, %p72
      %p75 = scmp.ne.s32.totalorder %s60, %s74
      %p76 = scmp.eq.s32.totalorder %s55, 0
      %p77 = por %p75, %p76
      %s79 = sadd.s32 %s78, 1
      %p82 = scmp.eq.s32.totalorder %s49, 1
      %p83 = scmp.ne.s32.totalorder %s78, %s80
      %p84 = scmp.eq.s32.totalorder %s49, 0
      %p85 = por %p83, %p84
      %p86 = scmp.ne.s32.totalorder %s78, %s80
      %p87 = scmp.eq.s32.totalorder %s54, 1
      %p88 = por %p86, %p87
      %p89 = scmp.ne.s32.totalorder %s80, %s81
      %p90 = scmp.eq.s32.totalorder %s54, 0
      %p91 = por %p89, %p90
      %p92 = scmp.ne.s32.totalorder %s80, %s81
      %p93 = scmp.eq.s32.totalorder %s55, 1
      %p94 = por %p92, %p93
      %p96 = scmp.ne.s32.totalorder %s81, %s95
      %p97 = scmp.eq.s32.totalorder %s55, 0
      %p98 = por %p96, %p97
      %s100 = sadd.s32 %s99, 1
      %p103 = scmp.eq.s32.totalorder %s49, 1
      %p104 = scmp.ne.s32.totalorder %s99, %s101
      %p105 = scmp.eq.s32.totalorder %s49, 0
      %p106 = por %p104, %p105
      %p107 = scmp.ne.s32.totalorder %s99, %s101
      %p108 = scmp.eq.s32.totalorder %s54, 1
      %p109 = por %p107, %p108
      %p110 = scmp.ne.s32.totalorder %s101, %s102
      %p111 = scmp.eq.s32.totalorder %s54, 0
      %p112 = por %p110, %p111
      %p113 = scmp.ne.s32.totalorder %s101, %s102
      %p114 = scmp.eq.s32.totalorder %s55, 1
      %p115 = por %p113, %p114
      %p117 = scmp.ne.s32.totalorder %s102, %s116
      %p118 = scmp.eq.s32.totalorder %s55, 0
      %p119 = por %p117, %p118
      %s121 = sadd.s32 %s120, 1
      %p124 = scmp.eq.s32.totalorder %s49, 1
      %p125 = scmp.ne.s32.totalorder %s120, %s122
      %p126 = scmp.eq.s32.totalorder %s49, 0
      %p127 = por %p125, %p126
      %p128 = scmp.ne.s32.totalorder %s120, %s122
      %p129 = scmp.eq.s32.totalorder %s54, 1
      %p130 = por %p128, %p129
      %p131 = scmp.ne.s32.totalorder %s122, %s123
      %p132 = scmp.eq.s32.totalorder %s54, 0
      %p133 = por %p131, %p132
      %p134 = scmp.ne.s32.totalorder %s122, %s123
      %p135 = scmp.eq.s32.totalorder %s55, 1
      %p136 = por %p134, %p135
      %p138 = scmp.ne.s32.totalorder %s123, %s137
      %p139 = scmp.eq.s32.totalorder %s55, 0
      %p140 = por %p138, %p139
      %s142 = sadd.s32 %s141, 1
      %p145 = scmp.eq.s32.totalorder %s49, 1
      %p146 = scmp.ne.s32.totalorder %s141, %s143
      %p147 = scmp.eq.s32.totalorder %s49, 0
      %p148 = por %p146, %p147
      %p149 = scmp.ne.s32.totalorder %s141, %s143
      %p150 = scmp.eq.s32.totalorder %s54, 1
      %p151 = por %p149, %p150
      %p152 = scmp.ne.s32.totalorder %s143, %s144
      %p153 = scmp.eq.s32.totalorder %s54, 0
      %p154 = por %p152, %p153
      %p155 = scmp.ne.s32.totalorder %s143, %s144
      %p156 = scmp.eq.s32.totalorder %s55, 1
      %p157 = por %p155, %p156
      %p159 = scmp.ne.s32.totalorder %s144, %s158
      %p160 = scmp.eq.s32.totalorder %s55, 0
      %p161 = por %p159, %p160
      %s163 = sadd.s32 %s162, 1
      %p166 = scmp.eq.s32.totalorder %s49, 1
      %p167 = scmp.ne.s32.totalorder %s162, %s164
      %p168 = scmp.eq.s32.totalorder %s49, 0
      %p169 = por %p167, %p168
      %p170 = scmp.ne.s32.totalorder %s162, %s164
      %p171 = scmp.eq.s32.totalorder %s54, 1
      %p172 = por %p170, %p171
      %p173 = scmp.ne.s32.totalorder %s164, %s165
      %p174 = scmp.eq.s32.totalorder %s54, 0
      %p175 = por %p173, %p174
      %p176 = scmp.ne.s32.totalorder %s164, %s165
      %p177 = scmp.eq.s32.totalorder %s55, 1
      %p178 = por %p176, %p177
      %p180 = scmp.ne.s32.totalorder %s165, %s179
      %p181 = scmp.eq.s32.totalorder %s55, 0
      %p182 = por %p180, %p181
      %s184 = sadd.s32 %s183, 1
      %p187 = scmp.eq.s32.totalorder %s49, 1
      %p188 = scmp.ne.s32.totalorder %s183, %s185
      %p189 = scmp.eq.s32.totalorder %s49, 0
      %p190 = por %p188, %p189
      %p191 = scmp.ne.s32.totalorder %s183, %s185
      %p192 = scmp.eq.s32.totalorder %s54, 1
      %p193 = por %p191, %p192
      %p194 = scmp.ne.s32.totalorder %s185, %s186
      %p195 = scmp.eq.s32.totalorder %s54, 0
      %p196 = por %p194, %p195
      %p197 = scmp.ne.s32.totalorder %s185, %s186
      %p198 = scmp.eq.s32.totalorder %s55, 1
      %p199 = por %p197, %p198
      %p201 = scmp.ne.s32.totalorder %s186, %s200
      %p202 = scmp.eq.s32.totalorder %s55, 0
      %p203 = por %p201, %p202
      %s205 = sadd.s32 %s204, 1
      %p208 = scmp.eq.s32.totalorder %s49, 1
      %p209 = scmp.ne.s32.totalorder %s204, %s206
      %p210 = scmp.eq.s32.totalorder %s49, 0
      %p211 = por %p209, %p210
      %p212 = scmp.ne.s32.totalorder %s204, %s206
      %p213 = scmp.eq.s32.totalorder %s54, 1
      %p214 = por %p212, %p213
      %p215 = scmp.ne.s32.totalorder %s206, %s207
      %p216 = scmp.eq.s32.totalorder %s54, 0
      %p217 = por %p215, %p216
      %p218 = scmp.ne.s32.totalorder %s206, %s207
      %p219 = scmp.eq.s32.totalorder %s55, 1
      %p220 = por %p218, %p219
      %p222 = scmp.ne.s32.totalorder %s207, %s221
      %p223 = scmp.eq.s32.totalorder %s55, 0
      %p224 = por %p222, %p223
      %s226 = sadd.s32 %s225, 1
      %p229 = scmp.eq.s32.totalorder %s49, 1
      %p230 = scmp.ne.s32.totalorder %s225, %s227
      %p231 = scmp.eq.s32.totalorder %s49, 0
      %p232 = por %p230, %p231
      %p233 = scmp.ne.s32.totalorder %s225, %s227
      %p234 = scmp.eq.s32.totalorder %s54, 1
      %p235 = por %p233, %p234
      %p236 = scmp.ne.s32.totalorder %s227, %s228
      %p237 = scmp.eq.s32.totalorder %s54, 0
      %p238 = por %p236, %p237
      %p239 = scmp.ne.s32.totalorder %s227, %s228
      %p240 = scmp.eq.s32.totalorder %s55, 1
      %p241 = por %p239, %p240
      %p243 = scmp.ne.s32.totalorder %s228, %s242
      %p244 = scmp.eq.s32.totalorder %s55, 0
      %p245 = por %p243, %p244
      %s247 = sadd.s32 %s246, 1
      %p250 = scmp.eq.s32.totalorder %s49, 1
      %p251 = scmp.ne.s32.totalorder %s246, %s248
      %p252 = scmp.eq.s32.totalorder %s49, 0
      %p253 = por %p251, %p252
      %p254 = scmp.ne.s32.totalorder %s246, %s248
      %p255 = scmp.eq.s32.totalorder %s54, 1
      %p256 = por %p254, %p255
      %p257 = scmp.ne.s32.totalorder %s248, %s249
      %p258 = scmp.eq.s32.totalorder %s54, 0
      %p259 = por %p257, %p258
      %p260 = scmp.ne.s32.totalorder %s248, %s249
      %p261 = scmp.eq.s32.totalorder %s55, 1
      %p262 = por %p260, %p261
      %p264 = scmp.ne.s32.totalorder %s249, %s263
      %p265 = scmp.eq.s32.totalorder %s55, 0
      %p266 = por %p264, %p265
      %s268 = sadd.s32 %s267, 1
      %p271 = scmp.eq.s32.totalorder %s49, 1
      %p272 = scmp.ne.s32.totalorder %s267, %s269
      %p273 = scmp.eq.s32.totalorder %s49, 0
      %p274 = por %p272, %p273
      %p275 = scmp.ne.s32.totalorder %s267, %s269
      %p276 = scmp.eq.s32.totalorder %s54, 1
      %p277 = por %p275, %p276
      %p278 = scmp.ne.s32.totalorder %s269, %s270
      %p279 = scmp.eq.s32.totalorder %s54, 0
      %p280 = por %p278, %p279
      %p281 = scmp.ne.s32.totalorder %s269, %s270
      %p282 = scmp.eq.s32.totalorder %s55, 1
      %p283 = por %p281, %p282
      %p285 = scmp.ne.s32.totalorder %s270, %s284
      %p286 = scmp.eq.s32.totalorder %s55, 0
      %p287 = por %p285, %p286
      %s289 = sadd.s32 %s288, 1
      %p292 = scmp.eq.s32.totalorder %s49, 1
      %p293 = scmp.ne.s32.totalorder %s288, %s290
      %p294 = scmp.eq.s32.totalorder %s49, 0
      %p295 = por %p293, %p294
      %p296 = scmp.ne.s32.totalorder %s288, %s290
      %p297 = scmp.eq.s32.totalorder %s54, 1
      %p298 = por %p296, %p297
      %p299 = scmp.ne.s32.totalorder %s290, %s291
      %p300 = scmp.eq.s32.totalorder %s54, 0
      %p301 = por %p299, %p300
      %p302 = scmp.ne.s32.totalorder %s290, %s291
      %p303 = scmp.eq.s32.totalorder %s55, 1
      %p304 = por %p302, %p303
      %p306 = scmp.ne.s32.totalorder %s291, %s305
      %p307 = scmp.eq.s32.totalorder %s55, 0
      %p308 = por %p306, %p307
      %s310 = sadd.s32 %s309, 1
      %p313 = scmp.eq.s32.totalorder %s49, 1
      %p314 = scmp.ne.s32.totalorder %s309, %s311
      %p315 = scmp.eq.s32.totalorder %s49, 0
      %p316 = por %p314, %p315
      %p317 = scmp.ne.s32.totalorder %s309, %s311
      %p318 = scmp.eq.s32.totalorder %s54, 1
      %p319 = por %p317, %p318
      %p320 = scmp.ne.s32.totalorder %s311, %s312
      %p321 = scmp.eq.s32.totalorder %s54, 0
      %p322 = por %p320, %p321
      %p323 = scmp.ne.s32.totalorder %s311, %s312
      %p324 = scmp.eq.s32.totalorder %s55, 1
      %p325 = por %p323, %p324
      %p327 = scmp.ne.s32.totalorder %s312, %s326
      %p328 = scmp.eq.s32.totalorder %s55, 0
      %p329 = por %p327, %p328
      %s331 = sadd.s32 %s330, 1
      %p334 = scmp.eq.s32.totalorder %s49, 1
      %p335 = scmp.ne.s32.totalorder %s330, %s332
      %p336 = scmp.eq.s32.totalorder %s49, 0
      %p337 = por %p335, %p336
      %p338 = scmp.ne.s32.totalorder %s330, %s332
      %p339 = scmp.eq.s32.totalorder %s54, 1
      %p340 = por %p338, %p339
      %p341 = scmp.ne.s32.totalorder %s332, %s333
      %p342 = scmp.eq.s32.totalorder %s54, 0
      %p343 = por %p341, %p342
      %p344 = scmp.ne.s32.totalorder %s332, %s333
      %p345 = scmp.eq.s32.totalorder %s55, 1
      %p346 = por %p344, %p345
      %p348 = scmp.ne.s32.totalorder %s333, %s347
      %p349 = scmp.eq.s32.totalorder %s55, 0
      %p350 = por %p348, %p349
      %s352 = sadd.s32 %s351, 1
      %p355 = scmp.eq.s32.totalorder %s49, 1
      %p356 = scmp.ne.s32.totalorder %s351, %s353
      %p357 = scmp.eq.s32.totalorder %s49, 0
      %p358 = por %p356, %p357
      %p359 = scmp.ne.s32.totalorder %s351, %s353
      %p360 = scmp.eq.s32.totalorder %s54, 1
      %p361 = por %p359, %p360
      %p362 = scmp.ne.s32.totalorder %s353, %s354
      %p363 = scmp.eq.s32.totalorder %s54, 0
      %p364 = por %p362, %p363
      %p365 = scmp.ne.s32.totalorder %s353, %s354
      %p366 = scmp.eq.s32.totalorder %s55, 1
      %p367 = por %p365, %p366
      %p369 = scmp.ne.s32.totalorder %s354, %s368
      %p370 = scmp.eq.s32.totalorder %s55, 0
      %p371 = por %p369, %p370
      %s373 = sadd.s32 %s372, 1
      %p376 = scmp.eq.s32.totalorder %s49, 1
      %p377 = scmp.ne.s32.totalorder %s372, %s374
      %p378 = scmp.eq.s32.totalorder %s49, 0
      %p379 = por %p377, %p378
      %p380 = scmp.ne.s32.totalorder %s372, %s374
      %p381 = scmp.eq.s32.totalorder %s54, 1
      %p382 = por %p380, %p381
      %p383 = scmp.ne.s32.totalorder %s374, %s375
      %p384 = scmp.eq.s32.totalorder %s54, 0
      %p385 = por %p383, %p384
      %p386 = scmp.ne.s32.totalorder %s374, %s375
      %p387 = scmp.eq.s32.totalorder %s55, 1
      %p388 = por %p386, %p387
      %p390 = scmp.ne.s32.totalorder %s375, %s389
      %p391 = scmp.eq.s32.totalorder %s55, 0
      %p392 = por %p390, %p391
      %s394 = sadd.s32 %s393, 1
      %p397 = scmp.eq.s32.totalorder %s49, 1
      %p398 = scmp.ne.s32.totalorder %s393, %s395
      %p399 = scmp.eq.s32.totalorder %s49, 0
      %p400 = por %p398, %p399
      %p401 = scmp.ne.s32.totalorder %s393, %s395
      %p402 = scmp.eq.s32.totalorder %s54, 1
      %p403 = por %p401, %p402
      %p404 = scmp.ne.s32.totalorder %s395, %s396
      %p405 = scmp.eq.s32.totalorder %s54, 0
      %p406 = por %p404, %p405
      %p407 = scmp.ne.s32.totalorder %s395, %s396
      %p408 = scmp.eq.s32.totalorder %s55, 1
      %p409 = por %p407, %p408
      %p411 = scmp.ne.s32.totalorder %s396, %s410
      %p412 = scmp.eq.s32.totalorder %s55, 0
      %p413 = por %p411, %p412
      %s415 = sadd.s32 %s414, 1
      %p418 = scmp.eq.s32.totalorder %s49, 1
      %p419 = scmp.ne.s32.totalorder %s414, %s416
      %p420 = scmp.eq.s32.totalorder %s49, 0
      %p421 = por %p419, %p420
      %p422 = scmp.ne.s32.totalorder %s414, %s416
      %p423 = scmp.eq.s32.totalorder %s54, 1
      %p424 = por %p422, %p423
      %p425 = scmp.ne.s32.totalorder %s416, %s417
      %p426 = scmp.eq.s32.totalorder %s54, 0
      %p427 = por %p425, %p426
      %p428 = scmp.ne.s32.totalorder %s416, %s417
      %p429 = scmp.eq.s32.totalorder %s55, 1
      %p430 = por %p428, %p429
      %p432 = scmp.ne.s32.totalorder %s417, %s431
      %p433 = scmp.eq.s32.totalorder %s55, 0
      %p434 = por %p432, %p433
      %s436 = sadd.s32 %s435, 1
      %p439 = scmp.eq.s32.totalorder %s49, 1
      %p440 = scmp.ne.s32.totalorder %s435, %s437
      %p441 = scmp.eq.s32.totalorder %s49, 0
      %p442 = por %p440, %p441
      %p443 = scmp.ne.s32.totalorder %s435, %s437
      %p444 = scmp.eq.s32.totalorder %s54, 1
      %p445 = por %p443, %p444
      %p446 = scmp.ne.s32.totalorder %s437, %s438
      %p447 = scmp.eq.s32.totalorder %s54, 0
      %p448 = por %p446, %p447
      %p449 = scmp.ne.s32.totalorder %s437, %s438
      %p450 = scmp.eq.s32.totalorder %s55, 1
      %p451 = por %p449, %p450
      %p453 = scmp.ne.s32.totalorder %s438, %s452
      %p454 = scmp.eq.s32.totalorder %s55, 0
      %p455 = por %p453, %p454
      %s456 = ssub.s32 %s49, %s56
      %p457 = scmp.eq.s32.totalorder %s456, 0
      %s459 = sadd.s32 %s458, 1
      %s460 = scalar_select %p457, %s458, %s459
      %p463 = pneg %p457
      %p464 = scmp.eq.s32.totalorder %s49, 1
      %p465 = por %p463, %p464
      %p466 = scmp.ne.s32.totalorder %s458, %s461
      %p467 = scmp.eq.s32.totalorder %s49, 0
      %p468 = por %p466, %p467
      %p469 = scmp.ne.s32.totalorder %s458, %s461
      %p470 = scmp.eq.s32.totalorder %s54, 1
      %p471 = por %p469, %p470
      %p472 = scmp.ne.s32.totalorder %s461, %s462
      %p473 = scmp.eq.s32.totalorder %s54, 0
      %p474 = por %p472, %p473
      %p475 = scmp.ne.s32.totalorder %s461, %s462
      %p476 = scmp.eq.s32.totalorder %s55, 1
      %p477 = por %p475, %p476
      %p479 = scmp.ne.s32.totalorder %s462, %s478
      %p480 = scmp.eq.s32.totalorder %s55, 0
      %p481 = por %p479, %p480
      %p482 = scmp.le.s32.totalorder 1, %s49
      %p483 = scmp.lt.s32.totalorder %s49, 3
      %p484 = pnand %p482, %p483
      %p485 = pneg %p484
      // Predicated region
      $region9: #{tpu_custom_call.1} parent=5 // pred_check
        _
      $region10: #{tpu_custom_call.1} parent=5 // pred_check_branch
        %487 = sbr.rel (%p484) target = $region12
      $region11: #{tpu_custom_call.1} parent=5 // pred_region
        %s488 = ssub.s32 %s49, 1
        // Predicated region
        $region13: #{tpu_custom_call.1} parent=11 // pred_check
          %p489 = pneg %p70
        $region14: #{tpu_custom_call.1} parent=11 // pred_check_branch
          %491 = sbr.rel (%p489) target = $region16
        $region15: #{tpu_custom_call.1} parent=11 // pred_region
          _
        $region16: #{tpu_custom_call.1} parent=11 // pred_fallthru
          _
        // Predicated region
        $region17: #{tpu_custom_call.1} parent=11 // pred_check
          %p492 = pneg %p91
        $region18: #{tpu_custom_call.1} parent=11 // pred_check_branch
          %494 = sbr.rel (%p492) target = $region20
        $region19: #{tpu_custom_call.1} parent=11 // pred_region
          _
        $region20: #{tpu_custom_call.1} parent=11 // pred_fallthru
          _
        // Predicated region
        $region21: #{tpu_custom_call.1} parent=11 // pred_check
          %p495 = pneg %p112
        $region22: #{tpu_custom_call.1} parent=11 // pred_check_branch
          %497 = sbr.rel (%p495) target = $region24
        $region23: #{tpu_custom_call.1} parent=11 // pred_region
          _
        $region24: #{tpu_custom_call.1} parent=11 // pred_fallthru
          _
        // Predicated region
        $region25: #{tpu_custom_call.1} parent=11 // pred_check
          %p498 = pneg %p133
        $region26: #{tpu_custom_call.1} parent=11 // pred_check_branch
          %500 = sbr.rel (%p498) target = $region28
        $region27: #{tpu_custom_call.1} parent=11 // pred_region
          _
        $region28: #{tpu_custom_call.1} parent=11 // pred_fallthru
          _
        // Predicated region
        $region29: #{tpu_custom_call.1} parent=11 // pred_check
          %p501 = pneg %p154
        $region30: #{tpu_custom_call.1} parent=11 // pred_check_branch
          %503 = sbr.rel (%p501) target = $region32
        $region31: #{tpu_custom_call.1} parent=11 // pred_region
          _
        $region32: #{tpu_custom_call.1} parent=11 // pred_fallthru
          _
        // Predicated region
        $region33: #{tpu_custom_call.1} parent=11 // pred_check
          %p504 = pneg %p175
        $region34: #{tpu_custom_call.1} parent=11 // pred_check_branch
          %506 = sbr.rel (%p504) target = $region36
        $region35: #{tpu_custom_call.1} parent=11 // pred_region
          _
        $region36: #{tpu_custom_call.1} parent=11 // pred_fallthru
          _
        // Predicated region
        $region37: #{tpu_custom_call.1} parent=11 // pred_check
          %p507 = pneg %p196
        $region38: #{tpu_custom_call.1} parent=11 // pred_check_branch
          %509 = sbr.rel (%p507) target = $region40
        $region39: #{tpu_custom_call.1} parent=11 // pred_region
          _
        $region40: #{tpu_custom_call.1} parent=11 // pred_fallthru
          _
        // Predicated region
        $region41: #{tpu_custom_call.1} parent=11 // pred_check
          %p510 = pneg %p217
        $region42: #{tpu_custom_call.1} parent=11 // pred_check_branch
          %512 = sbr.rel (%p510) target = $region44
        $region43: #{tpu_custom_call.1} parent=11 // pred_region
          _
        $region44: #{tpu_custom_call.1} parent=11 // pred_fallthru
          _
        // Predicated region
        $region45: #{tpu_custom_call.1} parent=11 // pred_check
          %p513 = pneg %p238
        $region46: #{tpu_custom_call.1} parent=11 // pred_check_branch
          %515 = sbr.rel (%p513) target = $region48
        $region47: #{tpu_custom_call.1} parent=11 // pred_region
          _
        $region48: #{tpu_custom_call.1} parent=11 // pred_fallthru
          _
        // Predicated region
        $region49: #{tpu_custom_call.1} parent=11 // pred_check
          %p516 = pneg %p259
        $region50: #{tpu_custom_call.1} parent=11 // pred_check_branch
          %518 = sbr.rel (%p516) target = $region52
        $region51: #{tpu_custom_call.1} parent=11 // pred_region
          _
        $region52: #{tpu_custom_call.1} parent=11 // pred_fallthru
          _
        // Predicated region
        $region53: #{tpu_custom_call.1} parent=11 // pred_check
          %p519 = pneg %p280
        $region54: #{tpu_custom_call.1} parent=11 // pred_check_branch
          %521 = sbr.rel (%p519) target = $region56
        $region55: #{tpu_custom_call.1} parent=11 // pred_region
          _
        $region56: #{tpu_custom_call.1} parent=11 // pred_fallthru
          _
        // Predicated region
        $region57: #{tpu_custom_call.1} parent=11 // pred_check
          %p522 = pneg %p301
        $region58: #{tpu_custom_call.1} parent=11 // pred_check_branch
          %524 = sbr.rel (%p522) target = $region60
        $region59: #{tpu_custom_call.1} parent=11 // pred_region
          _
        $region60: #{tpu_custom_call.1} parent=11 // pred_fallthru
          _
        // Predicated region
        $region61: #{tpu_custom_call.1} parent=11 // pred_check
          %p525 = pneg %p322
        $region62: #{tpu_custom_call.1} parent=11 // pred_check_branch
          %527 = sbr.rel (%p525) target = $region64
        $region63: #{tpu_custom_call.1} parent=11 // pred_region
          _
        $region64: #{tpu_custom_call.1} parent=11 // pred_fallthru
          _
        // Predicated region
        $region65: #{tpu_custom_call.1} parent=11 // pred_check
          %p528 = pneg %p343
        $region66: #{tpu_custom_call.1} parent=11 // pred_check_branch
          %530 = sbr.rel (%p528) target = $region68
        $region67: #{tpu_custom_call.1} parent=11 // pred_region
          _
        $region68: #{tpu_custom_call.1} parent=11 // pred_fallthru
          _
        // Predicated region
        $region69: #{tpu_custom_call.1} parent=11 // pred_check
          %p531 = pneg %p364
        $region70: #{tpu_custom_call.1} parent=11 // pred_check_branch
          %533 = sbr.rel (%p531) target = $region72
        $region71: #{tpu_custom_call.1} parent=11 // pred_region
          _
        $region72: #{tpu_custom_call.1} parent=11 // pred_fallthru
          _
        // Predicated region
        $region73: #{tpu_custom_call.1} parent=11 // pred_check
          %p534 = pneg %p385
        $region74: #{tpu_custom_call.1} parent=11 // pred_check_branch
          %536 = sbr.rel (%p534) target = $region76
        $region75: #{tpu_custom_call.1} parent=11 // pred_region
          _
        $region76: #{tpu_custom_call.1} parent=11 // pred_fallthru
          _
        // Predicated region
        $region77: #{tpu_custom_call.1} parent=11 // pred_check
          %p537 = pneg %p406
        $region78: #{tpu_custom_call.1} parent=11 // pred_check_branch
          %539 = sbr.rel (%p537) target = $region80
        $region79: #{tpu_custom_call.1} parent=11 // pred_region
          _
        $region80: #{tpu_custom_call.1} parent=11 // pred_fallthru
          _
        // Predicated region
        $region81: #{tpu_custom_call.1} parent=11 // pred_check
          %p540 = pneg %p427
        $region82: #{tpu_custom_call.1} parent=11 // pred_check_branch
          %542 = sbr.rel (%p540) target = $region84
        $region83: #{tpu_custom_call.1} parent=11 // pred_region
          _
        $region84: #{tpu_custom_call.1} parent=11 // pred_fallthru
          _
        // Predicated region
        $region85: #{tpu_custom_call.1} parent=11 // pred_check
          %p543 = pneg %p448
        $region86: #{tpu_custom_call.1} parent=11 // pred_check_branch
          %545 = sbr.rel (%p543) target = $region88
        $region87: #{tpu_custom_call.1} parent=11 // pred_region
          _
        $region88: #{tpu_custom_call.1} parent=11 // pred_fallthru
          _
      $region12: #{tpu_custom_call.1} parent=5 // pred_fallthru
        _
      %p546 = scmp.lt.s32.totalorder %s49, 2
      // Predicated region
      $region89: #{tpu_custom_call.1} parent=5 // pred_check
        %p547 = pneg %p546
      $region90: #{tpu_custom_call.1} parent=5 // pred_check_branch
        %549 = sbr.rel (%p547) target = $region92
      $region91: #{tpu_custom_call.1} parent=5 // pred_region
        _
      $region92: #{tpu_custom_call.1} parent=5 // pred_fallthru
        _
      %p550 = scmp.le.s32.totalorder 1, %s49
      %p551 = scmp.lt.s32.totalorder %s49, 3
      %p552 = pnand %p550, %p551
      %p553 = pneg %p552
      // Predicated region
      $region93: #{tpu_custom_call.1} parent=5 // pred_check
        _
      $region94: #{tpu_custom_call.1} parent=5 // pred_check_branch
        %555 = sbr.rel (%p552) target = $region96
      $region95: #{tpu_custom_call.1} parent=5 // pred_region
        %s556 = ssub.s32 %s49, 1
        %p557 = pneg %p70
        %p558 = pneg %p67
        %p559 = pneg %p91
        %p560 = pneg %p88
        %p561 = pneg %p112
        %p562 = pneg %p109
        %p563 = pneg %p133
        %p564 = pneg %p130
        %p565 = pneg %p154
        %p566 = pneg %p151
        %p567 = pneg %p175
        %p568 = pneg %p172
        %p569 = pneg %p196
        %p570 = pneg %p193
        %p571 = pneg %p217
        %p572 = pneg %p214
        %p573 = pneg %p238
        %p574 = pneg %p235
        %p575 = pneg %p259
        %p576 = pneg %p256
        %p577 = pneg %p280
        %p578 = pneg %p277
        %p579 = pneg %p301
        %p580 = pneg %p298
        %p581 = pneg %p322
        %p582 = pneg %p319
        %p583 = pneg %p343
        %p584 = pneg %p340
        %p585 = pneg %p364
        %p586 = pneg %p361
        %p587 = pneg %p385
        %p588 = pneg %p382
        %p589 = pneg %p406
        %p590 = pneg %p403
        %p591 = pneg %p427
        %p592 = pneg %p424
        %p593 = pneg %p448
        %p594 = pneg %p445
        %p595 = pneg %p474
        %p596 = pneg %p471
        %s597 = sand.u32 %s461, 1
        %s598 = scalar_lea.sflag [#allocation7], %s597
        %s599 = sand.u32 %s461, 1
        %s600 = scalar_lea.vmem [#allocation6], %s599
        %v601 = vlaneseq
        %v602 = vshrl.u32 %v601, 7
        %v603 = vlaneseq
        %v604 = vand.u32 %v603, 127
        %vm605 = vcmp.eq.s32.totalorder %v602, 0
        %s606 = smul.u32 %s54, 128
        %s607 = sld [smem:[#allocation3 + %s606]]
        %v608 = vstv %s607
        %v609 = vsel %vm605, %v608, 0
        %s610 = sld [smem:[#allocation4 + %s606]]
        %v611 = vstv %s610
        %v612 = vsel %vm605, %v611, 0
        %vm613 = vcmp.eq.s32.totalorder %v604, 0
        %s614 = sld [smem:[#allocation5 + %s606]]
        %s615 = scvt.s32.f32 %s614
        %v616 = vstv %s615
        %v617 = vsel %vm613, %v616, 0.0
        %v618 = vadd.f32 %v617, 0.0
        %vm619 = vcmp.eq.s32.totalorder %v602, 1
        %s620 = sadd.s32 %s606, 1
        %s621 = sld [smem:[#allocation3 + %s620]]
        %v622 = vstv %s621
        %v623 = vsel %vm619, %v622, 0
        %v624 = vadd.s32 %v609, %v623
        %s625 = sld [smem:[#allocation4 + %s620]]
        %v626 = vstv %s625
        %v627 = vsel %vm619, %v626, 0
        %v628 = vadd.s32 %v612, %v627
        %vm629 = vcmp.eq.s32.totalorder %v604, 1
        %s630 = sld [smem:[#allocation5 + %s620]]
        %s631 = scvt.s32.f32 %s630
        %v632 = vstv %s631
        %v633 = vsel %vm629, %v632, 0.0
        %v634 = vadd.f32 %v618, %v633
        %vm635 = vcmp.eq.s32.totalorder %v602, 2
        %s636 = sadd.s32 %s606, 2
        %s637 = sld [smem:[#allocation3 + %s636]]
        %v638 = vstv %s637
        %v639 = vsel %vm635, %v638, 0
        %v640 = vadd.s32 %v624, %v639
        %s641 = sld [smem:[#allocation4 + %s636]]
        %v642 = vstv %s641
        %v643 = vsel %vm635, %v642, 0
        %v644 = vadd.s32 %v628, %v643
        %vm645 = vcmp.eq.s32.totalorder %v604, 2
        %s646 = sld [smem:[#allocation5 + %s636]]
        %s647 = scvt.s32.f32 %s646
        %v648 = vstv %s647
        %v649 = vsel %vm645, %v648, 0.0
        %v650 = vadd.f32 %v634, %v649
        %vm651 = vcmp.eq.s32.totalorder %v602, 3
        %s652 = sadd.s32 %s606, 3
        %s653 = sld [smem:[#allocation3 + %s652]]
        %v654 = vstv %s653
        %v655 = vsel %vm651, %v654, 0
        %v656 = vadd.s32 %v640, %v655
        %s657 = sld [smem:[#allocation4 + %s652]]
        %v658 = vstv %s657
        %v659 = vsel %vm651, %v658, 0
        %v660 = vadd.s32 %v644, %v659
        %vm661 = vcmp.eq.s32.totalorder %v604, 3
        %s662 = sld [smem:[#allocation5 + %s652]]
        %s663 = scvt.s32.f32 %s662
        %v664 = vstv %s663
        %v665 = vsel %vm661, %v664, 0.0
        %v666 = vadd.f32 %v650, %v665
        %vm667 = vcmp.eq.s32.totalorder %v602, 4
        %s668 = sadd.s32 %s606, 4
        %s669 = sld [smem:[#allocation3 + %s668]]
        %v670 = vstv %s669
        %v671 = vsel %vm667, %v670, 0
        %v672 = vadd.s32 %v656, %v671
        %s673 = sld [smem:[#allocation4 + %s668]]
        %v674 = vstv %s673
        %v675 = vsel %vm667, %v674, 0
        %v676 = vadd.s32 %v660, %v675
        %vm677 = vcmp.eq.s32.totalorder %v604, 4
        %s678 = sld [smem:[#allocation5 + %s668]]
        %s679 = scvt.s32.f32 %s678
        %v680 = vstv %s679
        %v681 = vsel %vm677, %v680, 0.0
        %v682 = vadd.f32 %v666, %v681
        %vm683 = vcmp.eq.s32.totalorder %v602, 5
        %s684 = sadd.s32 %s606, 5
        %s685 = sld [smem:[#allocation3 + %s684]]
        %v686 = vstv %s685
        %v687 = vsel %vm683, %v686, 0
        %v688 = vadd.s32 %v672, %v687
        %s689 = sld [smem:[#allocation4 + %s684]]
        %v690 = vstv %s689
        %v691 = vsel %vm683, %v690, 0
        %v692 = vadd.s32 %v676, %v691
        %vm693 = vcmp.eq.s32.totalorder %v604, 5
        %s694 = sld [smem:[#allocation5 + %s684]]
        %s695 = scvt.s32.f32 %s694
        %v696 = vstv %s695
        %v697 = vsel %vm693, %v696, 0.0
        %v698 = vadd.f32 %v682, %v697
        %vm699 = vcmp.eq.s32.totalorder %v602, 6
        %s700 = sadd.s32 %s606, 6
        %s701 = sld [smem:[#allocation3 + %s700]]
        %v702 = vstv %s701
        %v703 = vsel %vm699, %v702, 0
        %v704 = vadd.s32 %v688, %v703
        %s705 = sld [smem:[#allocation4 + %s700]]
        %v706 = vstv %s705
        %v707 = vsel %vm699, %v706, 0
        %v708 = vadd.s32 %v692, %v707
        %vm709 = vcmp.eq.s32.totalorder %v604, 6
        %s710 = sld [smem:[#allocation5 + %s700]]
        %s711 = scvt.s32.f32 %s710
        %v712 = vstv %s711
        %v713 = vsel %vm709, %v712, 0.0
        %v714 = vadd.f32 %v698, %v713
        %vm715 = vcmp.eq.s32.totalorder %v602, 7
        %s716 = sadd.s32 %s606, 7
        %s717 = sld [smem:[#allocation3 + %s716]]
        %v718 = vstv %s717
        %v719 = vsel %vm715, %v718, 0
        %v720 = vadd.s32 %v704, %v719
        %s721 = sld [smem:[#allocation4 + %s716]]
        %v722 = vstv %s721
        %v723 = vsel %vm715, %v722, 0
        %v724 = vadd.s32 %v708, %v723
        %vm725 = vcmp.eq.s32.totalorder %v604, 7
        %s726 = sld [smem:[#allocation5 + %s716]]
        %s727 = scvt.s32.f32 %s726
        %v728 = vstv %s727
        %v729 = vsel %vm725, %v728, 0.0
        %v730 = vadd.f32 %v714, %v729
        %vm731 = vcmp.eq.s32.totalorder %v720, %v604
        %v732 = vsel %vm731, 1, 0
        %v733 = vcvt.s32.f32 %v732
        %v734 = vld [vmem:[%s3] sm:$0xff]
        %v735 = vld [vmem:[%s3 + $0x8] sm:$0xff]
        %v736 = vld [vmem:[%s3 + $0x10] sm:$0xff]
        %v737 = vld [vmem:[%s3 + $0x18] sm:$0xff]
        %v738 = vld [vmem:[%s3 + $0x20] sm:$0xff]
        %v739 = vld [vmem:[%s3 + $0x28] sm:$0xff]
        %v740 = vld [vmem:[%s3 + $0x30] sm:$0xff]
        %v741 = vld [vmem:[%s3 + $0x38] sm:$0xff]
        %v742 = vld [vmem:[%s3 + $0x40] sm:$0xff]
        %v743 = vld [vmem:[%s3 + $0x48] sm:$0xff]
        %v744 = vld [vmem:[%s3 + $0x50] sm:$0xff]
        %v745 = vld [vmem:[%s3 + $0x58] sm:$0xff]
        %v746 = vld [vmem:[%s3 + $0x60] sm:$0xf]
        %v747 = vld [vmem:[%s4] sm:$0xff]
        %vm748 = vcmask 818176
        %v750 = vsel %vm748, %v733, 0
        %vm752 = vcmask 1043456
        %v754 = vsel %vm752, %v746, 0
        %756 = vmatpush.msra.mxu0 0.0
        %757 = vmatpush.msra.mxu0 0.0
        %758 = vmatpush.msra.mxu0 0.0
        %759 = vmatpush.msra.mxu0 %v754
        %760 = vmatpush.msra.mxu0 %v745
        %761 = vmatpush.msra.mxu0 %v744
        %762 = vmatpush.msra.mxu0 %v743
        %763 = vmatpush.msra.mxu0 %v742
        %764 = vmatpush.msra.mxu0 %v741
        %765 = vmatpush.msra.mxu0 %v740
        %766 = vmatpush.msra.mxu0 %v739
        %767 = vmatpush.msra.mxu0 %v738
        %768 = vmatpush.msra.mxu0 %v737
        %769 = vmatpush.msra.mxu0 %v736
        %770 = vmatpush.msra.mxu0 %v735
        %771 = vmatpush.msra.mxu0 %v734
        %772 = vmatmul.f32.gmra.mxu0 %v750
        %v773 = vpop.f32.mrf.mxu0
        %v774 = vadd.f32 %v747, %v773
        %775 = vdwg.mxu0
        %vm776 = vcmp.eq.s32.totalorder %v724, 0
        %v777 = vld [vmem:[%s5] sm:$0x1]
        %v778 = vld [vmem:[%s5 + $0x1] sm:$0x1]
        %v779 = vsel %vm776, 1, 0
        %vm780 = vcmp.eq.s32.totalorder %v779, 1
        %v781 = vperm.slane %v777, 0
        %v782 = vperm.slane %v778, 0
        %v783 = vsel %vm780, %v781, %v782
        %v784 = vadd.f32 %v774, %v783
        %v785 = vld [vmem:[%s6] sm:$0x1]
        %v786 = vld [vmem:[%s7] sm:$0x1]
        %vm787 = vcmask 261120
        %v788 = vsel %vm787, %v784, 0.0
        %789 = vadd.xlane.f32.xlu0 %v788
        %v790 = vpop.xlane.xlu0 %789
        %v791 = vrcp.pop 32.0
        %v792 = vmul.f32 32.0, %v791
        %v793 = vsub.f32 1.0, %v792
        %v794 = vmul.f32 %v791, %v793
        %v795 = vadd.f32 %v791, %v794
        %vm796 = vweird.f32 %v791
        %v797 = vsel %vm796, %v791, %v795
        %v798 = vmul.f32 %v790, %v797
        %v799 = vsub.f32 %v784, %v798
        %v800 = vmul.f32 %v799, %v799
        %v801 = vsel %vm787, %v800, 0.0
        %802 = vadd.xlane.f32.xlu0 %v801
        %v803 = vpop.xlane.xlu0 %802
        %v804 = vmul.f32 %v803, %v797
        %v805 = vadd.f32 %v804, 1e-12
        %v806 = vrsqrt.pop %v805
        %v807 = vmul.f32 %v806, %v805
        %v808 = vmul.f32 %v807, %v806
        %v809 = vmul.f32 0.5, %v808
        %v810 = vsub.f32 1.5, %v809
        %v811 = vmul.f32 %v806, %v810
        %vm812 = vweird.f32 %v805
        %vm813 = vweird.f32 %v806
        %vm814 = vmor %vm812, %vm813
        %v815 = vsel %vm814, %v806, %v811
        %v816 = vmul.f32 %v799, %v815
        %v818 = vperm.slane %v785, 0
        %v820 = vmul.f32 %v816, %v818
        %v822 = vperm.slane %v786, 0
        %v824 = vadd.f32 %v820, %v822
        %v825 = vsub.f32 1.0, %v730
        %v826 = vmul.f32 %v825, -1e+09
        %v827 = vld [vmem:[%s8] sm:$0xff]
        %v828 = vld [vmem:[%s8 + $0x8] sm:$0xff]
        %v829 = vld [vmem:[%s8 + $0x10] sm:$0xff]
        %v830 = vld [vmem:[%s8 + $0x18] sm:$0xff]
        %v831 = vld [vmem:[%s9] sm:$0x1]
        %v833 = vperm.slane %v831, 0
        %v836 = vsel %vm787, %v824, 0
        %838 = vmatpush.msra.mxu0 0.0
        %839 = vmatpush.msra.mxu0 0.0
        %840 = vmatpush.msra.mxu0 0.0
        %841 = vmatpush.msra.mxu0 0.0
        %842 = vmatpush.msra.mxu0 0.0
        %843 = vmatpush.msra.mxu0 0.0
        %844 = vmatpush.msra.mxu0 0.0
        %845 = vmatpush.msra.mxu0 0.0
        %846 = vmatpush.msra.mxu0 0.0
        %847 = vmatpush.msra.mxu0 0.0
        %848 = vmatpush.msra.mxu0 0.0
        %849 = vmatpush.msra.mxu0 0.0
        %850 = vmatpush.msra.mxu0 %v830
        %851 = vmatpush.msra.mxu0 %v829
        %852 = vmatpush.msra.mxu0 %v828
        %853 = vmatpush.msra.mxu0 %v827
        %854 = vmatmul.f32.gmra.mxu0 %v836
        %v855 = vpop.f32.mrf.mxu0
        %v856 = vadd.f32 %v833, %v855
        %857 = vdwg.mxu0
        %859 = vrot.lane.b32.xlu0 %v856, 96
        %v860 = vpop.permute.xlu0 %859
        %vm861 = vcmask 64512
        %v862 = vsel %vm861, %v856, 0
        %v864 = vsel %vm861, %v860, 0
        %866 = vmatpush.xpose.msra.mxu0 0.0
        %867 = vmatpush.xpose.msra.mxu0 0.0
        %868 = vmatpush.xpose.msra.mxu0 0.0
        %869 = vmatpush.xpose.msra.mxu0 0.0
        %870 = vmatpush.xpose.msra.mxu0 0.0
        %871 = vmatpush.xpose.msra.mxu0 0.0
        %872 = vmatpush.xpose.msra.mxu0 0.0
        %873 = vmatpush.xpose.msra.mxu0 0.0
        %874 = vmatpush.xpose.msra.mxu0 0.0
        %875 = vmatpush.xpose.msra.mxu0 0.0
        %876 = vmatpush.xpose.msra.mxu0 0.0
        %877 = vmatpush.xpose.msra.mxu0 0.0
        %878 = vmatpush.xpose.msra.mxu0 0.0
        %879 = vmatpush.xpose.msra.mxu0 0.0
        %880 = vmatpush.xpose.msra.mxu0 0.0
        %881 = vmatpush.xpose.msra.mxu0 %v864
        %882 = vmatmul.f32.gmra.mxu0 %v862
        %v883 = vpop.f32.mrf.mxu0
        %v884 = vadd.f32 %v826, %v883
        %885 = vdwg.mxu0
        %v886 = vsel %vm861, %v884, -inf
        %887 = vmax.xlane.f32.xlu0 %v886
        %v888 = vpop.xlane.xlu0 %887
        %v889 = vsub.f32 %v884, %v888
        %v890 = vmul.f32 %v889, 1.442695
        %v891 = vpow.pop %v890
        %v892 = vsel %vm861, %v891, 0.0
        %893 = vadd.xlane.f32.xlu0 %v892
        %v894 = vpop.xlane.xlu0 %893
        %v895 = vrcp.pop %v894
        %v896 = vmul.f32 %v891, %v895
        %897 = vrot.lane.b32.xlu0 %v856, 64
        %v898 = vpop.permute.xlu0 %897
        %v901 = vsel %vm861, %v896, 0
        %903 = vmatpush.msra.mxu0 0.0
        %904 = vmatpush.msra.mxu0 0.0
        %905 = vmatpush.msra.mxu0 0.0
        %906 = vmatpush.msra.mxu0 0.0
        %907 = vmatpush.msra.mxu0 0.0
        %908 = vmatpush.msra.mxu0 0.0
        %909 = vmatpush.msra.mxu0 0.0
        %910 = vmatpush.msra.mxu0 0.0
        %911 = vmatpush.msra.mxu0 0.0
        %912 = vmatpush.msra.mxu0 0.0
        %913 = vmatpush.msra.mxu0 0.0
        %914 = vmatpush.msra.mxu0 0.0
        %915 = vmatpush.msra.mxu0 0.0
        %916 = vmatpush.msra.mxu0 0.0
        %917 = vmatpush.msra.mxu0 0.0
        %918 = vmatpush.msra.mxu0 %v898
        %919 = vmatmul.f32.gmra.mxu0 %v901
        %v920 = vpop.f32.mrf.mxu0
        %v921 = vadd.f32 0.0, %v920
        %922 = vdwg.mxu0
        %923 = vrot.lane.b32.xlu0 %v856, 120
        %v924 = vpop.permute.xlu0 %923
        %925 = vrot.lane.b32.xlu0 %v856, 88
        %v926 = vpop.permute.xlu0 %925
        %v927 = vsel %vm861, %v924, 0
        %v929 = vsel %vm861, %v926, 0
        %931 = vmatpush.xpose.msra.mxu0 0.0
        %932 = vmatpush.xpose.msra.mxu0 0.0
        %933 = vmatpush.xpose.msra.mxu0 0.0
        %934 = vmatpush.xpose.msra.mxu0 0.0
        %935 = vmatpush.xpose.msra.mxu0 0.0
        %936 = vmatpush.xpose.msra.mxu0 0.0
        %937 = vmatpush.xpose.msra.mxu0 0.0
        %938 = vmatpush.xpose.msra.mxu0 0.0
        %939 = vmatpush.xpose.msra.mxu0 0.0
        %940 = vmatpush.xpose.msra.mxu0 0.0
        %941 = vmatpush.xpose.msra.mxu0 0.0
        %942 = vmatpush.xpose.msra.mxu0 0.0
        %943 = vmatpush.xpose.msra.mxu0 0.0
        %944 = vmatpush.xpose.msra.mxu0 0.0
        %945 = vmatpush.xpose.msra.mxu0 0.0
        %946 = vmatpush.xpose.msra.mxu0 %v929
        %947 = vmatmul.f32.gmra.mxu0 %v927
        %v948 = vpop.f32.mrf.mxu0
        %v949 = vadd.f32 %v826, %v948
        %950 = vdwg.mxu0
        %v951 = vsel %vm861, %v949, -inf
        %952 = vmax.xlane.f32.xlu0 %v951
        %v953 = vpop.xlane.xlu0 %952
        %v954 = vsub.f32 %v949, %v953
        %v955 = vmul.f32 %v954, 1.442695
        %v956 = vpow.pop %v955
        %v957 = vsel %vm861, %v956, 0.0
        %958 = vadd.xlane.f32.xlu0 %v957
        %v959 = vpop.xlane.xlu0 %958
        %v960 = vrcp.pop %v959
        %v961 = vmul.f32 %v956, %v960
        %962 = vrot.lane.b32.xlu0 %v856, 56
        %v963 = vpop.permute.xlu0 %962
        %v966 = vsel %vm861, %v961, 0
        %968 = vmatpush.msra.mxu0 0.0
        %969 = vmatpush.msra.mxu0 0.0
        %970 = vmatpush.msra.mxu0 0.0
        %971 = vmatpush.msra.mxu0 0.0
        %972 = vmatpush.msra.mxu0 0.0
        %973 = vmatpush.msra.mxu0 0.0
        %974 = vmatpush.msra.mxu0 0.0
        %975 = vmatpush.msra.mxu0 0.0
        %976 = vmatpush.msra.mxu0 0.0
        %977 = vmatpush.msra.mxu0 0.0
        %978 = vmatpush.msra.mxu0 0.0
        %979 = vmatpush.msra.mxu0 0.0
        %980 = vmatpush.msra.mxu0 0.0
        %981 = vmatpush.msra.mxu0 0.0
        %982 = vmatpush.msra.mxu0 0.0
        %983 = vmatpush.msra.mxu0 %v963
        %984 = vmatmul.f32.gmra.mxu0 %v966
        %v985 = vpop.f32.mrf.mxu0
        %v986 = vadd.f32 0.0, %v985
        %987 = vdwg.mxu0
        %988 = vrot.lane.b32.xlu0 %v856, 112
        %v989 = vpop.permute.xlu0 %988
        %990 = vrot.lane.b32.xlu0 %v856, 80
        %v991 = vpop.permute.xlu0 %990
        %v992 = vsel %vm861, %v989, 0
        %v994 = vsel %vm861, %v991, 0
        %996 = vmatpush.xpose.msra.mxu0 0.0
        %997 = vmatpush.xpose.msra.mxu0 0.0
        %998 = vmatpush.xpose.msra.mxu0 0.0
        %999 = vmatpush.xpose.msra.mxu0 0.0
        %1000 = vmatpush.xpose.msra.mxu0 0.0
        %1001 = vmatpush.xpose.msra.mxu0 0.0
        %1002 = vmatpush.xpose.msra.mxu0 0.0
        %1003 = vmatpush.xpose.msra.mxu0 0.0
        %1004 = vmatpush.xpose.msra.mxu0 0.0
        %1005 = vmatpush.xpose.msra.mxu0 0.0
        %1006 = vmatpush.xpose.msra.mxu0 0.0
        %1007 = vmatpush.xpose.msra.mxu0 0.0
        %1008 = vmatpush.xpose.msra.mxu0 0.0
        %1009 = vmatpush.xpose.msra.mxu0 0.0
        %1010 = vmatpush.xpose.msra.mxu0 0.0
        %1011 = vmatpush.xpose.msra.mxu0 %v994
        %1012 = vmatmul.f32.gmra.mxu0 %v992
        %v1013 = vpop.f32.mrf.mxu0
        %v1014 = vadd.f32 %v826, %v1013
        %1015 = vdwg.mxu0
        %v1016 = vsel %vm861, %v1014, -inf
        %1017 = vmax.xlane.f32.xlu0 %v1016
        %v1018 = vpop.xlane.xlu0 %1017
        %v1019 = vsub.f32 %v1014, %v1018
        %v1020 = vmul.f32 %v1019, 1.442695
        %v1021 = vpow.pop %v1020
        %v1022 = vsel %vm861, %v1021, 0.0
        %1023 = vadd.xlane.f32.xlu0 %v1022
        %v1024 = vpop.xlane.xlu0 %1023
        %v1025 = vrcp.pop %v1024
        %v1026 = vmul.f32 %v1021, %v1025
        %1027 = vrot.lane.b32.xlu0 %v856, 48
        %v1028 = vpop.permute.xlu0 %1027
        %v1031 = vsel %vm861, %v1026, 0
        %1033 = vmatpush.msra.mxu0 0.0
        %1034 = vmatpush.msra.mxu0 0.0
        %1035 = vmatpush.msra.mxu0 0.0
        %1036 = vmatpush.msra.mxu0 0.0
        %1037 = vmatpush.msra.mxu0 0.0
        %1038 = vmatpush.msra.mxu0 0.0
        %1039 = vmatpush.msra.mxu0 0.0
        %1040 = vmatpush.msra.mxu0 0.0
        %1041 = vmatpush.msra.mxu0 0.0
        %1042 = vmatpush.msra.mxu0 0.0
        %1043 = vmatpush.msra.mxu0 0.0
        %1044 = vmatpush.msra.mxu0 0.0
        %1045 = vmatpush.msra.mxu0 0.0
        %1046 = vmatpush.msra.mxu0 0.0
        %1047 = vmatpush.msra.mxu0 0.0
        %1048 = vmatpush.msra.mxu0 %v1028
        %1049 = vmatmul.f32.gmra.mxu0 %v1031
        %v1050 = vpop.f32.mrf.mxu0
        %v1051 = vadd.f32 0.0, %v1050
        %1052 = vdwg.mxu0
        %1053 = vrot.lane.b32.xlu0 %v856, 104
        %v1054 = vpop.permute.xlu0 %1053
        %1055 = vrot.lane.b32.xlu0 %v856, 72
        %v1056 = vpop.permute.xlu0 %1055
        %v1057 = vsel %vm861, %v1054, 0
        %v1059 = vsel %vm861, %v1056, 0
        %1061 = vmatpush.xpose.msra.mxu0 0.0
        %1062 = vmatpush.xpose.msra.mxu0 0.0
        %1063 = vmatpush.xpose.msra.mxu0 0.0
        %1064 = vmatpush.xpose.msra.mxu0 0.0
        %1065 = vmatpush.xpose.msra.mxu0 0.0
        %1066 = vmatpush.xpose.msra.mxu0 0.0
        %1067 = vmatpush.xpose.msra.mxu0 0.0
        %1068 = vmatpush.xpose.msra.mxu0 0.0
        %1069 = vmatpush.xpose.msra.mxu0 0.0
        %1070 = vmatpush.xpose.msra.mxu0 0.0
        %1071 = vmatpush.xpose.msra.mxu0 0.0
        %1072 = vmatpush.xpose.msra.mxu0 0.0
        %1073 = vmatpush.xpose.msra.mxu0 0.0
        %1074 = vmatpush.xpose.msra.mxu0 0.0
        %1075 = vmatpush.xpose.msra.mxu0 0.0
        %1076 = vmatpush.xpose.msra.mxu0 %v1059
        %1077 = vmatmul.f32.gmra.mxu0 %v1057
        %v1078 = vpop.f32.mrf.mxu0
        %v1079 = vadd.f32 %v826, %v1078
        %1080 = vdwg.mxu0
        %v1081 = vsel %vm861, %v1079, -inf
        %1082 = vmax.xlane.f32.xlu0 %v1081
        %v1083 = vpop.xlane.xlu0 %1082
        %v1084 = vsub.f32 %v1079, %v1083
        %v1085 = vmul.f32 %v1084, 1.442695
        %v1086 = vpow.pop %v1085
        %v1087 = vsel %vm861, %v1086, 0.0
        %1088 = vadd.xlane.f32.xlu0 %v1087
        %v1089 = vpop.xlane.xlu0 %1088
        %v1090 = vrcp.pop %v1089
        %v1091 = vmul.f32 %v1086, %v1090
        %1092 = vrot.lane.b32.xlu0 %v856, 40
        %v1093 = vpop.permute.xlu0 %1092
        %v1096 = vsel %vm861, %v1091, 0
        %1098 = vmatpush.msra.mxu0 0.0
        %1099 = vmatpush.msra.mxu0 0.0
        %1100 = vmatpush.msra.mxu0 0.0
        %1101 = vmatpush.msra.mxu0 0.0
        %1102 = vmatpush.msra.mxu0 0.0
        %1103 = vmatpush.msra.mxu0 0.0
        %1104 = vmatpush.msra.mxu0 0.0
        %1105 = vmatpush.msra.mxu0 0.0
        %1106 = vmatpush.msra.mxu0 0.0
        %1107 = vmatpush.msra.mxu0 0.0
        %1108 = vmatpush.msra.mxu0 0.0
        %1109 = vmatpush.msra.mxu0 0.0
        %1110 = vmatpush.msra.mxu0 0.0
        %1111 = vmatpush.msra.mxu0 0.0
        %1112 = vmatpush.msra.mxu0 0.0
        %1113 = vmatpush.msra.mxu0 %v1093
        %1114 = vmatmul.f32.gmra.mxu0 %v1096
        %v1115 = vpop.f32.mrf.mxu0
        %v1116 = vadd.f32 0.0, %v1115
        %1117 = vdwg.mxu0
        %1119 = vrot.lane.b32.xlu0 %v986, 8
        %v1120 = vpop.permute.xlu0 %1119
        %1123 = vrot.lane.b32.xlu0 %v1051, 16
        %v1124 = vpop.permute.xlu0 %1123
        %1127 = vrot.lane.b32.xlu0 %v1116, 24
        %v1128 = vpop.permute.xlu0 %1127
        %v1130 = vsel %vm861, %v921, %v1120
        %vm1131 = vcmask 130048
        %v1132 = vsel %vm1131, %v1130, %v1124
        %vm1133 = vcmask 195584
        %v1134 = vsel %vm1133, %v1132, %v1128
        %v1135 = vld [vmem:[%s10] sm:$0xff]
        %v1136 = vld [vmem:[%s10 + $0x8] sm:$0xff]
        %v1137 = vld [vmem:[%s10 + $0x10] sm:$0xff]
        %v1138 = vld [vmem:[%s10 + $0x18] sm:$0xff]
        %v1139 = vld [vmem:[%s11] sm:$0x1]
        %v1141 = vperm.slane %v1139, 0
        %v1144 = vsel %vm787, %v1134, 0
        %1146 = vmatpush.msra.mxu0 0.0
        %1147 = vmatpush.msra.mxu0 0.0
        %1148 = vmatpush.msra.mxu0 0.0
        %1149 = vmatpush.msra.mxu0 0.0
        %1150 = vmatpush.msra.mxu0 0.0
        %1151 = vmatpush.msra.mxu0 0.0
        %1152 = vmatpush.msra.mxu0 0.0
        %1153 = vmatpush.msra.mxu0 0.0
        %1154 = vmatpush.msra.mxu0 0.0
        %1155 = vmatpush.msra.mxu0 0.0
        %1156 = vmatpush.msra.mxu0 0.0
        %1157 = vmatpush.msra.mxu0 0.0
        %1158 = vmatpush.msra.mxu0 %v1138
        %1159 = vmatpush.msra.mxu0 %v1137
        %1160 = vmatpush.msra.mxu0 %v1136
        %1161 = vmatpush.msra.mxu0 %v1135
        %1162 = vmatmul.f32.gmra.mxu0 %v1144
        %v1163 = vpop.f32.mrf.mxu0
        %v1164 = vadd.f32 %v1141, %v1163
        %1165 = vdwg.mxu0
        %v1166 = vadd.f32 %v824, %v1164
        %v1167 = vld [vmem:[%s12] sm:$0x1]
        %v1168 = vld [vmem:[%s13] sm:$0x1]
        %v1169 = vsel %vm787, %v1166, 0.0
        %1170 = vadd.xlane.f32.xlu0 %v1169
        %v1171 = vpop.xlane.xlu0 %1170
        %v1172 = vmul.f32 %v1171, %v797
        %v1173 = vsub.f32 %v1166, %v1172
        %v1174 = vmul.f32 %v1173, %v1173
        %v1175 = vsel %vm787, %v1174, 0.0
        %1176 = vadd.xlane.f32.xlu0 %v1175
        %v1177 = vpop.xlane.xlu0 %1176
        %v1178 = vmul.f32 %v1177, %v797
        %v1179 = vadd.f32 %v1178, 1e-12
        %v1180 = vrsqrt.pop %v1179
        %v1181 = vmul.f32 %v1180, %v1179
        %v1182 = vmul.f32 %v1181, %v1180
        %v1183 = vmul.f32 0.5, %v1182
        %v1184 = vsub.f32 1.5, %v1183
        %v1185 = vmul.f32 %v1180, %v1184
        %vm1186 = vweird.f32 %v1179
        %vm1187 = vweird.f32 %v1180
        %vm1188 = vmor %vm1186, %vm1187
        %v1189 = vsel %vm1188, %v1180, %v1185
        %v1190 = vmul.f32 %v1173, %v1189
        %v1192 = vperm.slane %v1167, 0
        %v1194 = vmul.f32 %v1190, %v1192
        %v1196 = vperm.slane %v1168, 0
        %v1198 = vadd.f32 %v1194, %v1196
        %v1199 = vld [vmem:[%s14] sm:$0xff]
        %v1200 = vld [vmem:[%s14 + $0x8] sm:$0xff]
        %v1201 = vld [vmem:[%s14 + $0x10] sm:$0xff]
        %v1202 = vld [vmem:[%s14 + $0x18] sm:$0xff]
        %v1203 = vld [vmem:[%s15] sm:$0x1]
        %v1205 = vperm.slane %v1203, 0
        %v1208 = vsel %vm787, %v1198, 0
        %1210 = vmatpush.msra.mxu0 0.0
        %1211 = vmatpush.msra.mxu0 0.0
        %1212 = vmatpush.msra.mxu0 0.0
        %1213 = vmatpush.msra.mxu0 0.0
        %1214 = vmatpush.msra.mxu0 0.0
        %1215 = vmatpush.msra.mxu0 0.0
        %1216 = vmatpush.msra.mxu0 0.0
        %1217 = vmatpush.msra.mxu0 0.0
        %1218 = vmatpush.msra.mxu0 0.0
        %1219 = vmatpush.msra.mxu0 0.0
        %1220 = vmatpush.msra.mxu0 0.0
        %1221 = vmatpush.msra.mxu0 0.0
        %1222 = vmatpush.msra.mxu0 %v1202
        %1223 = vmatpush.msra.mxu0 %v1201
        %1224 = vmatpush.msra.mxu0 %v1200
        %1225 = vmatpush.msra.mxu0 %v1199
        %1226 = vmatmul.f32.gmra.mxu0 %v1208
        %v1227 = vpop.f32.mrf.mxu0
        %v1228 = vadd.f32 %v1205, %v1227
        %1229 = vdwg.mxu0
        %v1230 = vmul.f32 %v1228, %v1228
        %v1231 = vmul.f32 %v1228, %v1230
        %v1232 = vmul.f32 %v1231, 0.044715
        %v1233 = vadd.f32 %v1228, %v1232
        %v1234 = vmul.f32 %v1233, 0.7978846
        %v1235 = vtanh.pop %v1234
        %v1236 = vadd.f32 %v1235, 1.0
        %v1237 = vmul.f32 %v1236, 0.5
        %v1238 = vmul.f32 %v1228, %v1237
        %v1239 = vld [vmem:[%s16] sm:$0xff]
        %v1240 = vld [vmem:[%s16 + $0x8] sm:$0xff]
        %v1241 = vld [vmem:[%s16 + $0x10] sm:$0xff]
        %v1242 = vld [vmem:[%s16 + $0x18] sm:$0xff]
        %v1243 = vld [vmem:[%s16 + $0x20] sm:$0xff]
        %v1244 = vld [vmem:[%s16 + $0x28] sm:$0xff]
        %v1245 = vld [vmem:[%s16 + $0x30] sm:$0xff]
        %v1246 = vld [vmem:[%s16 + $0x38] sm:$0xff]
        %v1247 = vld [vmem:[%s17] sm:$0x1]
        %v1249 = vperm.slane %v1247, 0
        %vm1251 = vcmask 523264
        %v1253 = vsel %vm1251, %v1238, 0
        %1255 = vmatpush.msra.mxu0 0.0
        %1256 = vmatpush.msra.mxu0 0.0
        %1257 = vmatpush.msra.mxu0 0.0
        %1258 = vmatpush.msra.mxu0 0.0
        %1259 = vmatpush.msra.mxu0 0.0
        %1260 = vmatpush.msra.mxu0 0.0
        %1261 = vmatpush.msra.mxu0 0.0
        %1262 = vmatpush.msra.mxu0 0.0
        %1263 = vmatpush.msra.mxu0 %v1246
        %1264 = vmatpush.msra.mxu0 %v1245
        %1265 = vmatpush.msra.mxu0 %v1244
        %1266 = vmatpush.msra.mxu0 %v1243
        %1267 = vmatpush.msra.mxu0 %v1242
        %1268 = vmatpush.msra.mxu0 %v1241
        %1269 = vmatpush.msra.mxu0 %v1240
        %1270 = vmatpush.msra.mxu0 %v1239
        %1271 = vmatmul.f32.gmra.mxu0 %v1253
        %v1272 = vpop.f32.mrf.mxu0
        %v1273 = vadd.f32 %v1249, %v1272
        %1274 = vdwg.mxu0
        %v1275 = vadd.f32 %v1198, %v1273
        %v1276 = vld [vmem:[%s18] sm:$0x1]
        %v1277 = vld [vmem:[%s19] sm:$0x1]
        %v1278 = vsel %vm787, %v1275, 0.0
        %1279 = vadd.xlane.f32.xlu0 %v1278
        %v1280 = vpop.xlane.xlu0 %1279
        %v1281 = vmul.f32 %v1280, %v797
        %v1282 = vsub.f32 %v1275, %v1281
        %v1283 = vmul.f32 %v1282, %v1282
        %v1284 = vsel %vm787, %v1283, 0.0
        %1285 = vadd.xlane.f32.xlu0 %v1284
        %v1286 = vpop.xlane.xlu0 %1285
        %v1287 = vmul.f32 %v1286, %v797
        %v1288 = vadd.f32 %v1287, 1e-12
        %v1289 = vrsqrt.pop %v1288
        %v1290 = vmul.f32 %v1289, %v1288
        %v1291 = vmul.f32 %v1290, %v1289
        %v1292 = vmul.f32 0.5, %v1291
        %v1293 = vsub.f32 1.5, %v1292
        %v1294 = vmul.f32 %v1289, %v1293
        %vm1295 = vweird.f32 %v1288
        %vm1296 = vweird.f32 %v1289
        %vm1297 = vmor %vm1295, %vm1296
        %v1298 = vsel %vm1297, %v1289, %v1294
        %v1299 = vmul.f32 %v1282, %v1298
        %v1301 = vperm.slane %v1276, 0
        %v1303 = vmul.f32 %v1299, %v1301
        %v1305 = vperm.slane %v1277, 0
        %v1307 = vadd.f32 %v1303, %v1305
        %s1308 = scalar_lea.vmem %s8, 32
        %v1309 = vld [vmem:[%s1308] sm:$0xff]
        %v1310 = vld [vmem:[%s1308 + $0x8] sm:$0xff]
        %v1311 = vld [vmem:[%s1308 + $0x10] sm:$0xff]
        %v1312 = vld [vmem:[%s1308 + $0x18] sm:$0xff]
        %s1313 = scalar_lea.vmem %s9, 1
        %v1314 = vld [vmem:[%s1313] sm:$0x1]
        %v1316 = vperm.slane %v1314, 0
        %v1319 = vsel %vm787, %v1307, 0
        %1321 = vmatpush.msra.mxu0 0.0
        %1322 = vmatpush.msra.mxu0 0.0
        %1323 = vmatpush.msra.mxu0 0.0
        %1324 = vmatpush.msra.mxu0 0.0
        %1325 = vmatpush.msra.mxu0 0.0
        %1326 = vmatpush.msra.mxu0 0.0
        %1327 = vmatpush.msra.mxu0 0.0
        %1328 = vmatpush.msra.mxu0 0.0
        %1329 = vmatpush.msra.mxu0 0.0
        %1330 = vmatpush.msra.mxu0 0.0
        %1331 = vmatpush.msra.mxu0 0.0
        %1332 = vmatpush.msra.mxu0 0.0
        %1333 = vmatpush.msra.mxu0 %v1312
        %1334 = vmatpush.msra.mxu0 %v1311
        %1335 = vmatpush.msra.mxu0 %v1310
        %1336 = vmatpush.msra.mxu0 %v1309
        %1337 = vmatmul.f32.gmra.mxu0 %v1319
        %v1338 = vpop.f32.mrf.mxu0
        %v1339 = vadd.f32 %v1316, %v1338
        %1340 = vdwg.mxu0
        %1342 = vrot.lane.b32.xlu0 %v1339, 96
        %v1343 = vpop.permute.xlu0 %1342
        %v1344 = vsel %vm861, %v1339, 0
        %v1346 = vsel %vm861, %v1343, 0
        %1348 = vmatpush.xpose.msra.mxu0 0.0
        %1349 = vmatpush.xpose.msra.mxu0 0.0
        %1350 = vmatpush.xpose.msra.mxu0 0.0
        %1351 = vmatpush.xpose.msra.mxu0 0.0
        %1352 = vmatpush.xpose.msra.mxu0 0.0
        %1353 = vmatpush.xpose.msra.mxu0 0.0
        %1354 = vmatpush.xpose.msra.mxu0 0.0
        %1355 = vmatpush.xpose.msra.mxu0 0.0
        %1356 = vmatpush.xpose.msra.mxu0 0.0
        %1357 = vmatpush.xpose.msra.mxu0 0.0
        %1358 = vmatpush.xpose.msra.mxu0 0.0
        %1359 = vmatpush.xpose.msra.mxu0 0.0
        %1360 = vmatpush.xpose.msra.mxu0 0.0
        %1361 = vmatpush.xpose.msra.mxu0 0.0
        %1362 = vmatpush.xpose.msra.mxu0 0.0
        %1363 = vmatpush.xpose.msra.mxu0 %v1346
        %1364 = vmatmul.f32.gmra.mxu0 %v1344
        %v1365 = vpop.f32.mrf.mxu0
        %v1366 = vadd.f32 %v826, %v1365
        %1367 = vdwg.mxu0
        %v1368 = vsel %vm861, %v1366, -inf
        %1369 = vmax.xlane.f32.xlu0 %v1368
        %v1370 = vpop.xlane.xlu0 %1369
        %v1371 = vsub.f32 %v1366, %v1370
        %v1372 = vmul.f32 %v1371, 1.442695
        %v1373 = vpow.pop %v1372
        %v1374 = vsel %vm861, %v1373, 0.0
        %1375 = vadd.xlane.f32.xlu0 %v1374
        %v1376 = vpop.xlane.xlu0 %1375
        %v1377 = vrcp.pop %v1376
        %v1378 = vmul.f32 %v1373, %v1377
        %1379 = vrot.lane.b32.xlu0 %v1339, 64
        %v1380 = vpop.permute.xlu0 %1379
        %v1383 = vsel %vm861, %v1378, 0
        %1385 = vmatpush.msra.mxu0 0.0
        %1386 = vmatpush.msra.mxu0 0.0
        %1387 = vmatpush.msra.mxu0 0.0
        %1388 = vmatpush.msra.mxu0 0.0
        %1389 = vmatpush.msra.mxu0 0.0
        %1390 = vmatpush.msra.mxu0 0.0
        %1391 = vmatpush.msra.mxu0 0.0
        %1392 = vmatpush.msra.mxu0 0.0
        %1393 = vmatpush.msra.mxu0 0.0
        %1394 = vmatpush.msra.mxu0 0.0
        %1395 = vmatpush.msra.mxu0 0.0
        %1396 = vmatpush.msra.mxu0 0.0
        %1397 = vmatpush.msra.mxu0 0.0
        %1398 = vmatpush.msra.mxu0 0.0
        %1399 = vmatpush.msra.mxu0 0.0
        %1400 = vmatpush.msra.mxu0 %v1380
        %1401 = vmatmul.f32.gmra.mxu0 %v1383
        %v1402 = vpop.f32.mrf.mxu0
        %v1403 = vadd.f32 0.0, %v1402
        %1404 = vdwg.mxu0
        %1405 = vrot.lane.b32.xlu0 %v1339, 120
        %v1406 = vpop.permute.xlu0 %1405
        %1407 = vrot.lane.b32.xlu0 %v1339, 88
        %v1408 = vpop.permute.xlu0 %1407
        %v1409 = vsel %vm861, %v1406, 0
        %v1411 = vsel %vm861, %v1408, 0
        %1413 = vmatpush.xpose.msra.mxu0 0.0
        %1414 = vmatpush.xpose.msra.mxu0 0.0
        %1415 = vmatpush.xpose.msra.mxu0 0.0
        %1416 = vmatpush.xpose.msra.mxu0 0.0
        %1417 = vmatpush.xpose.msra.mxu0 0.0
        %1418 = vmatpush.xpose.msra.mxu0 0.0
        %1419 = vmatpush.xpose.msra.mxu0 0.0
        %1420 = vmatpush.xpose.msra.mxu0 0.0
        %1421 = vmatpush.xpose.msra.mxu0 0.0
        %1422 = vmatpush.xpose.msra.mxu0 0.0
        %1423 = vmatpush.xpose.msra.mxu0 0.0
        %1424 = vmatpush.xpose.msra.mxu0 0.0
        %1425 = vmatpush.xpose.msra.mxu0 0.0
        %1426 = vmatpush.xpose.msra.mxu0 0.0
        %1427 = vmatpush.xpose.msra.mxu0 0.0
        %1428 = vmatpush.xpose.msra.mxu0 %v1411
        %1429 = vmatmul.f32.gmra.mxu0 %v1409
        %v1430 = vpop.f32.mrf.mxu0
        %v1431 = vadd.f32 %v826, %v1430
        %1432 = vdwg.mxu0
        %v1433 = vsel %vm861, %v1431, -inf
        %1434 = vmax.xlane.f32.xlu0 %v1433
        %v1435 = vpop.xlane.xlu0 %1434
        %v1436 = vsub.f32 %v1431, %v1435
        %v1437 = vmul.f32 %v1436, 1.442695
        %v1438 = vpow.pop %v1437
        %v1439 = vsel %vm861, %v1438, 0.0
        %1440 = vadd.xlane.f32.xlu0 %v1439
        %v1441 = vpop.xlane.xlu0 %1440
        %v1442 = vrcp.pop %v1441
        %v1443 = vmul.f32 %v1438, %v1442
        %1444 = vrot.lane.b32.xlu0 %v1339, 56
        %v1445 = vpop.permute.xlu0 %1444
        %v1448 = vsel %vm861, %v1443, 0
        %1450 = vmatpush.msra.mxu0 0.0
        %1451 = vmatpush.msra.mxu0 0.0
        %1452 = vmatpush.msra.mxu0 0.0
        %1453 = vmatpush.msra.mxu0 0.0
        %1454 = vmatpush.msra.mxu0 0.0
        %1455 = vmatpush.msra.mxu0 0.0
        %1456 = vmatpush.msra.mxu0 0.0
        %1457 = vmatpush.msra.mxu0 0.0
        %1458 = vmatpush.msra.mxu0 0.0
        %1459 = vmatpush.msra.mxu0 0.0
        %1460 = vmatpush.msra.mxu0 0.0
        %1461 = vmatpush.msra.mxu0 0.0
        %1462 = vmatpush.msra.mxu0 0.0
        %1463 = vmatpush.msra.mxu0 0.0
        %1464 = vmatpush.msra.mxu0 0.0
        %1465 = vmatpush.msra.mxu0 %v1445
        %1466 = vmatmul.f32.gmra.mxu0 %v1448
        %v1467 = vpop.f32.mrf.mxu0
        %v1468 = vadd.f32 0.0, %v1467
        %1469 = vdwg.mxu0
        %1470 = vrot.lane.b32.xlu0 %v1339, 112
        %v1471 = vpop.permute.xlu0 %1470
        %1472 = vrot.lane.b32.xlu0 %v1339, 80
        %v1473 = vpop.permute.xlu0 %1472
        %v1474 = vsel %vm861, %v1471, 0
        %v1476 = vsel %vm861, %v1473, 0
        %1478 = vmatpush.xpose.msra.mxu0 0.0
        %1479 = vmatpush.xpose.msra.mxu0 0.0
        %1480 = vmatpush.xpose.msra.mxu0 0.0
        %1481 = vmatpush.xpose.msra.mxu0 0.0
        %1482 = vmatpush.xpose.msra.mxu0 0.0
        %1483 = vmatpush.xpose.msra.mxu0 0.0
        %1484 = vmatpush.xpose.msra.mxu0 0.0
        %1485 = vmatpush.xpose.msra.mxu0 0.0
        %1486 = vmatpush.xpose.msra.mxu0 0.0
        %1487 = vmatpush.xpose.msra.mxu0 0.0
        %1488 = vmatpush.xpose.msra.mxu0 0.0
        %1489 = vmatpush.xpose.msra.mxu0 0.0
        %1490 = vmatpush.xpose.msra.mxu0 0.0
        %1491 = vmatpush.xpose.msra.mxu0 0.0
        %1492 = vmatpush.xpose.msra.mxu0 0.0
        %1493 = vmatpush.xpose.msra.mxu0 %v1476
        %1494 = vmatmul.f32.gmra.mxu0 %v1474
        %v1495 = vpop.f32.mrf.mxu0
        %v1496 = vadd.f32 %v826, %v1495
        %1497 = vdwg.mxu0
        %v1498 = vsel %vm861, %v1496, -inf
        %1499 = vmax.xlane.f32.xlu0 %v1498
        %v1500 = vpop.xlane.xlu0 %1499
        %v1501 = vsub.f32 %v1496, %v1500
        %v1502 = vmul.f32 %v1501, 1.442695
        %v1503 = vpow.pop %v1502
        %v1504 = vsel %vm861, %v1503, 0.0
        %1505 = vadd.xlane.f32.xlu0 %v1504
        %v1506 = vpop.xlane.xlu0 %1505
        %v1507 = vrcp.pop %v1506
        %v1508 = vmul.f32 %v1503, %v1507
        %1509 = vrot.lane.b32.xlu0 %v1339, 48
        %v1510 = vpop.permute.xlu0 %1509
        %v1513 = vsel %vm861, %v1508, 0
        %1515 = vmatpush.msra.mxu0 0.0
        %1516 = vmatpush.msra.mxu0 0.0
        %1517 = vmatpush.msra.mxu0 0.0
        %1518 = vmatpush.msra.mxu0 0.0
        %1519 = vmatpush.msra.mxu0 0.0
        %1520 = vmatpush.msra.mxu0 0.0
        %1521 = vmatpush.msra.mxu0 0.0
        %1522 = vmatpush.msra.mxu0 0.0
        %1523 = vmatpush.msra.mxu0 0.0
        %1524 = vmatpush.msra.mxu0 0.0
        %1525 = vmatpush.msra.mxu0 0.0
        %1526 = vmatpush.msra.mxu0 0.0
        %1527 = vmatpush.msra.mxu0 0.0
        %1528 = vmatpush.msra.mxu0 0.0
        %1529 = vmatpush.msra.mxu0 0.0
        %1530 = vmatpush.msra.mxu0 %v1510
        %1531 = vmatmul.f32.gmra.mxu0 %v1513
        %v1532 = vpop.f32.mrf.mxu0
        %v1533 = vadd.f32 0.0, %v1532
        %1534 = vdwg.mxu0
        %1535 = vrot.lane.b32.xlu0 %v1339, 104
        %v1536 = vpop.permute.xlu0 %1535
        %1537 = vrot.lane.b32.xlu0 %v1339, 72
        %v1538 = vpop.permute.xlu0 %1537
        %v1539 = vsel %vm861, %v1536, 0
        %v1541 = vsel %vm861, %v1538, 0
        %1543 = vmatpush.xpose.msra.mxu0 0.0
        %1544 = vmatpush.xpose.msra.mxu0 0.0
        %1545 = vmatpush.xpose.msra.mxu0 0.0
        %1546 = vmatpush.xpose.msra.mxu0 0.0
        %1547 = vmatpush.xpose.msra.mxu0 0.0
        %1548 = vmatpush.xpose.msra.mxu0 0.0
        %1549 = vmatpush.xpose.msra.mxu0 0.0
        %1550 = vmatpush.xpose.msra.mxu0 0.0
        %1551 = vmatpush.xpose.msra.mxu0 0.0
        %1552 = vmatpush.xpose.msra.mxu0 0.0
        %1553 = vmatpush.xpose.msra.mxu0 0.0
        %1554 = vmatpush.xpose.msra.mxu0 0.0
        %1555 = vmatpush.xpose.msra.mxu0 0.0
        %1556 = vmatpush.xpose.msra.mxu0 0.0
        %1557 = vmatpush.xpose.msra.mxu0 0.0
        %1558 = vmatpush.xpose.msra.mxu0 %v1541
        %1559 = vmatmul.f32.gmra.mxu0 %v1539
        %v1560 = vpop.f32.mrf.mxu0
        %v1561 = vadd.f32 %v826, %v1560
        %1562 = vdwg.mxu0
        %v1563 = vsel %vm861, %v1561, -inf
        %1564 = vmax.xlane.f32.xlu0 %v1563
        %v1565 = vpop.xlane.xlu0 %1564
        %v1566 = vsub.f32 %v1561, %v1565
        %v1567 = vmul.f32 %v1566, 1.442695
        %v1568 = vpow.pop %v1567
        %v1569 = vsel %vm861, %v1568, 0.0
        %1570 = vadd.xlane.f32.xlu0 %v1569
        %v1571 = vpop.xlane.xlu0 %1570
        %v1572 = vrcp.pop %v1571
        %v1573 = vmul.f32 %v1568, %v1572
        %1574 = vrot.lane.b32.xlu0 %v1339, 40
        %v1575 = vpop.permute.xlu0 %1574
        %v1578 = vsel %vm861, %v1573, 0
        %1580 = vmatpush.msra.mxu0 0.0
        %1581 = vmatpush.msra.mxu0 0.0
        %1582 = vmatpush.msra.mxu0 0.0
        %1583 = vmatpush.msra.mxu0 0.0
        %1584 = vmatpush.msra.mxu0 0.0
        %1585 = vmatpush.msra.mxu0 0.0
        %1586 = vmatpush.msra.mxu0 0.0
        %1587 = vmatpush.msra.mxu0 0.0
        %1588 = vmatpush.msra.mxu0 0.0
        %1589 = vmatpush.msra.mxu0 0.0
        %1590 = vmatpush.msra.mxu0 0.0
        %1591 = vmatpush.msra.mxu0 0.0
        %1592 = vmatpush.msra.mxu0 0.0
        %1593 = vmatpush.msra.mxu0 0.0
        %1594 = vmatpush.msra.mxu0 0.0
        %1595 = vmatpush.msra.mxu0 %v1575
        %1596 = vmatmul.f32.gmra.mxu0 %v1578
        %v1597 = vpop.f32.mrf.mxu0
        %v1598 = vadd.f32 0.0, %v1597
        %1599 = vdwg.mxu0
        %1601 = vrot.lane.b32.xlu0 %v1468, 8
        %v1602 = vpop.permute.xlu0 %1601
        %1605 = vrot.lane.b32.xlu0 %v1533, 16
        %v1606 = vpop.permute.xlu0 %1605
        %1609 = vrot.lane.b32.xlu0 %v1598, 24
        %v1610 = vpop.permute.xlu0 %1609
        %v1612 = vsel %vm861, %v1403, %v1602
        %v1613 = vsel %vm1131, %v1612, %v1606
        %v1614 = vsel %vm1133, %v1613, %v1610
        %s1615 = scalar_lea.vmem %s10, 32
        %v1616 = vld [vmem:[%s1615] sm:$0xff]
        %v1617 = vld [vmem:[%s1615 + $0x8] sm:$0xff]
        %v1618 = vld [vmem:[%s1615 + $0x10] sm:$0xff]
        %v1619 = vld [vmem:[%s1615 + $0x18] sm:$0xff]
        %s1620 = scalar_lea.vmem %s11, 1
        %v1621 = vld [vmem:[%s1620] sm:$0x1]
        %v1623 = vperm.slane %v1621, 0
        %v1626 = vsel %vm787, %v1614, 0
        %1628 = vmatpush.msra.mxu0 0.0
        %1629 = vmatpush.msra.mxu0 0.0
        %1630 = vmatpush.msra.mxu0 0.0
        %1631 = vmatpush.msra.mxu0 0.0
        %1632 = vmatpush.msra.mxu0 0.0
        %1633 = vmatpush.msra.mxu0 0.0
        %1634 = vmatpush.msra.mxu0 0.0
        %1635 = vmatpush.msra.mxu0 0.0
        %1636 = vmatpush.msra.mxu0 0.0
        %1637 = vmatpush.msra.mxu0 0.0
        %1638 = vmatpush.msra.mxu0 0.0
        %1639 = vmatpush.msra.mxu0 0.0
        %1640 = vmatpush.msra.mxu0 %v1619
        %1641 = vmatpush.msra.mxu0 %v1618
        %1642 = vmatpush.msra.mxu0 %v1617
        %1643 = vmatpush.msra.mxu0 %v1616
        %1644 = vmatmul.f32.gmra.mxu0 %v1626
        %v1645 = vpop.f32.mrf.mxu0
        %v1646 = vadd.f32 %v1623, %v1645
        %1647 = vdwg.mxu0
        %v1648 = vadd.f32 %v1307, %v1646
        %s1649 = scalar_lea.vmem %s12, 1
        %v1650 = vld [vmem:[%s1649] sm:$0x1]
        %s1651 = scalar_lea.vmem %s13, 1
        %v1652 = vld [vmem:[%s1651] sm:$0x1]
        %v1653 = vsel %vm787, %v1648, 0.0
        %1654 = vadd.xlane.f32.xlu0 %v1653
        %v1655 = vpop.xlane.xlu0 %1654
        %v1656 = vmul.f32 %v1655, %v797
        %v1657 = vsub.f32 %v1648, %v1656
        %v1658 = vmul.f32 %v1657, %v1657
        %v1659 = vsel %vm787, %v1658, 0.0
        %1660 = vadd.xlane.f32.xlu0 %v1659
        %v1661 = vpop.xlane.xlu0 %1660
        %v1662 = vmul.f32 %v1661, %v797
        %v1663 = vadd.f32 %v1662, 1e-12
        %v1664 = vrsqrt.pop %v1663
        %v1665 = vmul.f32 %v1664, %v1663
        %v1666 = vmul.f32 %v1665, %v1664
        %v1667 = vmul.f32 0.5, %v1666
        %v1668 = vsub.f32 1.5, %v1667
        %v1669 = vmul.f32 %v1664, %v1668
        %vm1670 = vweird.f32 %v1663
        %vm1671 = vweird.f32 %v1664
        %vm1672 = vmor %vm1670, %vm1671
        %v1673 = vsel %vm1672, %v1664, %v1669
        %v1674 = vmul.f32 %v1657, %v1673
        %v1676 = vperm.slane %v1650, 0
        %v1678 = vmul.f32 %v1674, %v1676
        %v1680 = vperm.slane %v1652, 0
        %v1682 = vadd.f32 %v1678, %v1680
        %s1683 = scalar_lea.vmem %s14, 32
        %v1684 = vld [vmem:[%s1683] sm:$0xff]
        %v1685 = vld [vmem:[%s1683 + $0x8] sm:$0xff]
        %v1686 = vld [vmem:[%s1683 + $0x10] sm:$0xff]
        %v1687 = vld [vmem:[%s1683 + $0x18] sm:$0xff]
        %s1688 = scalar_lea.vmem %s15, 1
        %v1689 = vld [vmem:[%s1688] sm:$0x1]
        %v1691 = vperm.slane %v1689, 0
        %v1694 = vsel %vm787, %v1682, 0
        %1696 = vmatpush.msra.mxu0 0.0
        %1697 = vmatpush.msra.mxu0 0.0
        %1698 = vmatpush.msra.mxu0 0.0
        %1699 = vmatpush.msra.mxu0 0.0
        %1700 = vmatpush.msra.mxu0 0.0
        %1701 = vmatpush.msra.mxu0 0.0
        %1702 = vmatpush.msra.mxu0 0.0
        %1703 = vmatpush.msra.mxu0 0.0
        %1704 = vmatpush.msra.mxu0 0.0
        %1705 = vmatpush.msra.mxu0 0.0
        %1706 = vmatpush.msra.mxu0 0.0
        %1707 = vmatpush.msra.mxu0 0.0
        %1708 = vmatpush.msra.mxu0 %v1687
        %1709 = vmatpush.msra.mxu0 %v1686
        %1710 = vmatpush.msra.mxu0 %v1685
        %1711 = vmatpush.msra.mxu0 %v1684
        %1712 = vmatmul.f32.gmra.mxu0 %v1694
        %v1713 = vpop.f32.mrf.mxu0
        %v1714 = vadd.f32 %v1691, %v1713
        %1715 = vdwg.mxu0
        %v1716 = vmul.f32 %v1714, %v1714
        %v1717 = vmul.f32 %v1714, %v1716
        %v1718 = vmul.f32 %v1717, 0.044715
        %v1719 = vadd.f32 %v1714, %v1718
        %v1720 = vmul.f32 %v1719, 0.7978846
        %v1721 = vtanh.pop %v1720
        %v1722 = vadd.f32 %v1721, 1.0
        %v1723 = vmul.f32 %v1722, 0.5
        %v1724 = vmul.f32 %v1714, %v1723
        %s1725 = scalar_lea.vmem %s16, 64
        %v1726 = vld [vmem:[%s1725] sm:$0xff]
        %v1727 = vld [vmem:[%s1725 + $0x8] sm:$0xff]
        %v1728 = vld [vmem:[%s1725 + $0x10] sm:$0xff]
        %v1729 = vld [vmem:[%s1725 + $0x18] sm:$0xff]
        %v1730 = vld [vmem:[%s1725 + $0x20] sm:$0xff]
        %v1731 = vld [vmem:[%s1725 + $0x28] sm:$0xff]
        %v1732 = vld [vmem:[%s1725 + $0x30] sm:$0xff]
        %v1733 = vld [vmem:[%s1725 + $0x38] sm:$0xff]
        %s1734 = scalar_lea.vmem %s17, 1
        %v1735 = vld [vmem:[%s1734] sm:$0x1]
        %v1737 = vperm.slane %v1735, 0
        %v1740 = vsel %vm1251, %v1724, 0
        %1742 = vmatpush.msra.mxu0 0.0
        %1743 = vmatpush.msra.mxu0 0.0
        %1744 = vmatpush.msra.mxu0 0.0
        %1745 = vmatpush.msra.mxu0 0.0
        %1746 = vmatpush.msra.mxu0 0.0
        %1747 = vmatpush.msra.mxu0 0.0
        %1748 = vmatpush.msra.mxu0 0.0
        %1749 = vmatpush.msra.mxu0 0.0
        %1750 = vmatpush.msra.mxu0 %v1733
        %1751 = vmatpush.msra.mxu0 %v1732
        %1752 = vmatpush.msra.mxu0 %v1731
        %1753 = vmatpush.msra.mxu0 %v1730
        %1754 = vmatpush.msra.mxu0 %v1729
        %1755 = vmatpush.msra.mxu0 %v1728
        %1756 = vmatpush.msra.mxu0 %v1727
        %1757 = vmatpush.msra.mxu0 %v1726
        %1758 = vmatmul.f32.gmra.mxu0 %v1740
        %v1759 = vpop.f32.mrf.mxu0
        %v1760 = vadd.f32 %v1737, %v1759
        %1761 = vdwg.mxu0
        %v1762 = vadd.f32 %v1682, %v1760
        %s1763 = scalar_lea.vmem %s18, 1
        %v1764 = vld [vmem:[%s1763] sm:$0x1]
        %s1765 = scalar_lea.vmem %s19, 1
        %v1766 = vld [vmem:[%s1765] sm:$0x1]
        %v1767 = vsel %vm787, %v1762, 0.0
        %1768 = vadd.xlane.f32.xlu0 %v1767
        %v1769 = vpop.xlane.xlu0 %1768
        %v1770 = vmul.f32 %v1769, %v797
        %v1771 = vsub.f32 %v1762, %v1770
        %v1772 = vmul.f32 %v1771, %v1771
        %v1773 = vsel %vm787, %v1772, 0.0
        %1774 = vadd.xlane.f32.xlu0 %v1773
        %v1775 = vpop.xlane.xlu0 %1774
        %v1776 = vmul.f32 %v1775, %v797
        %v1777 = vadd.f32 %v1776, 1e-12
        %v1778 = vrsqrt.pop %v1777
        %v1779 = vmul.f32 %v1778, %v1777
        %v1780 = vmul.f32 %v1779, %v1778
        %v1781 = vmul.f32 0.5, %v1780
        %v1782 = vsub.f32 1.5, %v1781
        %v1783 = vmul.f32 %v1778, %v1782
        %vm1784 = vweird.f32 %v1777
        %vm1785 = vweird.f32 %v1778
        %vm1786 = vmor %vm1784, %vm1785
        %v1787 = vsel %vm1786, %v1778, %v1783
        %v1788 = vmul.f32 %v1771, %v1787
        %v1790 = vperm.slane %v1764, 0
        %v1792 = vmul.f32 %v1788, %v1790
        %v1794 = vperm.slane %v1766, 0
        %v1796 = vadd.f32 %v1792, %v1794
        %v1797 = vld [vmem:[%s20] sm:$0xff]
        %v1798 = vld [vmem:[%s20 + $0x8] sm:$0xff]
        %v1799 = vld [vmem:[%s20 + $0x10] sm:$0xff]
        %v1800 = vld [vmem:[%s20 + $0x18] sm:$0xff]
        %v1801 = vld [vmem:[%s21] sm:$0x1]
        %v1803 = vsel %vm787, %v1796, 0
        %1805 = vmatpush.msra.mxu0 0.0
        %1806 = vmatpush.msra.mxu0 0.0
        %1807 = vmatpush.msra.mxu0 0.0
        %1808 = vmatpush.msra.mxu0 0.0
        %1809 = vmatpush.msra.mxu0 0.0
        %1810 = vmatpush.msra.mxu0 0.0
        %1811 = vmatpush.msra.mxu0 0.0
        %1812 = vmatpush.msra.mxu0 0.0
        %1813 = vmatpush.msra.mxu0 0.0
        %1814 = vmatpush.msra.mxu0 0.0
        %1815 = vmatpush.msra.mxu0 0.0
        %1816 = vmatpush.msra.mxu0 0.0
        %1817 = vmatpush.msra.mxu0 %v1800
        %1818 = vmatpush.msra.mxu0 %v1799
        %1819 = vmatpush.msra.mxu0 %v1798
        %1820 = vmatpush.msra.mxu0 %v1797
        %1821 = vmatmul.f32.gmra.mxu0 %v1803
        %v1822 = vpop.f32.mrf.mxu0
        %v1823 = vadd.f32 %v1801, %v1822
        %1824 = vdwg.mxu0
        %1825 = vst [vmem:[%s600] sm:$0x1] %v1823
        %s1826 = sand.u32 %s461, 1
        %s1827 = scalar_lea.sflag [#allocation7], %s1826
        %s1828 = sand.u32 %s461, 1
        %s1829 = scalar_lea.vmem [#allocation6], %s1828
        // Predicated region
        $region97: #{tpu_custom_call.1} parent=95 // pred_check
          %p1830 = pneg %p471
        $region98: #{tpu_custom_call.1} parent=95 // pred_check_branch
          %1832 = sbr.rel (%p1830) target = $region100
        $region99: #{tpu_custom_call.1} parent=95 // pred_region
          %1834 = vsyncadd %s1827, 0
          %s1835 = scalar_lea.hbm %s22, %s54
          %s1837 = sshll.u32 %s1829, 4
          %s1838 = int_to_ptr.vmem [resolvable:$true] %s1837
          %s1839 = sshll.u32 %s1835, 4
          %s1840 = int_to_ptr.hbm [resolvable:$true] %s1839
          %1842 = dma.vmem_to_hbm [thread:$0]  %s1838, 16, %s1840, %s1827
        $region100: #{tpu_custom_call.1} parent=95 // pred_fallthru
          _
      $region96: #{tpu_custom_call.1} parent=5 // pred_fallthru
        _
      %p1843 = scmp.le.s32.totalorder 2, %s49
      // Predicated region
      $region101: #{tpu_custom_call.1} parent=5 // pred_check
        %p1844 = pneg %p1843
      $region102: #{tpu_custom_call.1} parent=5 // pred_check_branch
        %1846 = sbr.rel (%p1844) target = $region104
      $region103: #{tpu_custom_call.1} parent=5 // pred_region
        %s1847 = ssub.s32 %s49, 2
        // Predicated region
        $region105: #{tpu_custom_call.1} parent=103 // pred_check
          %p1848 = pneg %p477
        $region106: #{tpu_custom_call.1} parent=103 // pred_check_branch
          %1850 = sbr.rel (%p1848) target = $region108
        $region107: #{tpu_custom_call.1} parent=103 // pred_region
          %s1851 = sand.u32 %s462, 1
          %s1852 = scalar_lea.sflag [#allocation7], %s1851
          %s1853 = sand.u32 %s462, 1
          %s1854 = scalar_lea.vmem [#allocation6], %s1853
          %1856 = dma.done %s1852, 16
        $region108: #{tpu_custom_call.1} parent=103 // pred_fallthru
          _
      $region104: #{tpu_custom_call.1} parent=5 // pred_fallthru
        _
    $region6: #{tpu_custom_call.1} parent=1 // loop_footer
      %s53 = sadd.s32 1, %s49
    $region7: #{tpu_custom_call.1} parent=1 // loop_footer_branch
      %48 = sbr.rel target = $region3
    $region8: #{tpu_custom_call.1} parent=1 // loop_exit
      _
    %1857 = vsyncpa [#allocation7], 1
    %s1858 = scalar_lea.sflag [#allocation7], 1
    %1859 = vsyncpa %s1858, 1

</llo_original>
